<compile_context>
chip_gen: v7x
topology: tpu7x:2x2x1
jax: 0.10.0
libtpu: 0.0.40
codegen_flags: <defaults>
</compile_context>

<pallas_src>
import jax
import jax.numpy as jnp
from jax.experimental import pallas as pl
from jax.experimental.pallas import tpu as pltpu


HIDDEN = 32
INPUT_SIZE = 3
IPAD = 8            # input feature dim padded to one sublane tile
BATCH_TILE = 8      # per-grid-step batch tile (sublane count)

# Row offsets inside the packed (128, 128) parameter slab (all 8-aligned).
P_ROWS = 128
R_WIH0 = 0      # (IPAD, 4H)  rows INPUT_SIZE..IPAD-1 are zero
R_WHH0 = 8      # (H, 4H)
R_B0 = 40       # (1, 4H)     b_ih0 + b_hh0
R_WIH1 = 48     # (H, 4H)
R_WHH1 = 80     # (H, 4H)
R_B1 = 112      # (1, 4H)     b_ih1 + b_hh1
R_FC = 120      # lanes [0:H) = fc weight row, lane H = fc bias


def _lstm_soc_kernel(x_ref, p_ref, out_ref):
    # x_ref : (T, TB, IPAD)  time-major batch tile, feature dim zero-padded
    # p_ref : (P_ROWS, 4H)   packed parameter slab
    # out_ref: (TB, 1)
    T, TB, IP = x_ref.shape
    H = HIDDEN
    H4 = 4 * H

    # ---- load parameters once (resident across the unrolled loop) ----------
    wih0 = p_ref[R_WIH0:R_WIH0 + IP, :]          # (IPAD, 4H), padded rows zero
    whh0 = p_ref[R_WHH0:R_WHH0 + H, :]           # (H, 4H)
    wih1 = p_ref[R_WIH1:R_WIH1 + H, :]           # (H, 4H)
    whh1 = p_ref[R_WHH1:R_WHH1 + H, :]           # (H, 4H)
    b0b = jnp.broadcast_to(p_ref[R_B0:R_B0 + 1, :], (TB, H4))   # hoisted
    b1b = jnp.broadcast_to(p_ref[R_B1:R_B1 + 1, :], (TB, H4))   # hoisted

    # lane mask: lanes [2H, 3H) hold the g gate (tanh); all others sigmoid.
    lane = jax.lax.broadcasted_iota(jnp.int32, (TB, H4), 1)
    g_lane = (lane >= 2 * H) & (lane < 3 * H)

    def activate(gates):
        # Single tanh push per cell: sigmoid(x) = 0.5 * tanh(x / 2) + 0.5.
        t = jnp.tanh(jnp.where(g_lane, gates, 0.5 * gates))
        act = jnp.where(g_lane, t, 0.5 * t + 0.5)
        return (act[:, 0 * H:1 * H], act[:, 1 * H:2 * H],
                act[:, 2 * H:3 * H], act[:, 3 * H:4 * H])

    zeros = jnp.zeros((TB, H), jnp.float32)
    h0, c0, h1, c1 = zeros, zeros, zeros, zeros
    # Layer-1 recurrent contribution + bias; h1 starts at zero so it is just b1.
    pre1 = b1b

    # Fully unrolled time loop (T small & static); state stays in vregs.
    for t in range(T):
        # layer-0 input projection: depends only on x -> off the serial chain.
        gx_t = jnp.dot(x_ref[t], wih0, preferred_element_type=jnp.float32) + b0b

        # layer 0: only the recurrent matmul sits on the serial chain.
        g0 = gx_t + jnp.dot(h0, whh0, preferred_element_type=jnp.float32)
        i0, f0, gg0, o0 = activate(g0)
        c0 = f0 * c0 + i0 * gg0
        h0 = o0 * jnp.tanh(c0)

        # layer 1: only h0_t @ wih1 (K=H) on the chain; whh1 term precomputed.
        g1 = jnp.dot(h0, wih1, preferred_element_type=jnp.float32) + pre1
        i1, f1, gg1, o1 = activate(g1)
        c1 = f1 * c1 + i1 * gg1
        h1 = o1 * jnp.tanh(c1)

        # Precompute next step's layer-1 recurrent term now, off its critical
        # path (overlaps with the next step's layer-0 work).
        if t + 1 < T:
            pre1 = jnp.dot(h1, whh1, preferred_element_type=jnp.float32) + b1b

    # fc on the last time-step output: VPU multiply + lane reduction.
    fc_row = p_ref[R_FC:R_FC + 1, :]              # (1, 4H)
    wfc = fc_row[:, :H]                           # (1, H)
    bfc = fc_row[:, H:H + 1]                      # (1, 1)
    out_ref[...] = jnp.sum(h1 * wfc, axis=-1, keepdims=True) + bfc


def init_params(key, input_size=INPUT_SIZE, hidden_size=HIDDEN):
    """Deterministic init mimicking PyTorch's U(-1/sqrt(H), 1/sqrt(H))."""
    k = 1.0 / jnp.sqrt(jnp.float32(hidden_size))
    keys = jax.random.split(key, 10)

    def u(rk, shape):
        return jax.random.uniform(rk, shape, jnp.float32, minval=-k, maxval=k)

    H4 = 4 * hidden_size
    return {
        # layer 0 (pre-transposed for x @ W)
        "wih0": u(keys[0], (input_size, H4)),
        "whh0": u(keys[1], (hidden_size, H4)),
        "b0": u(keys[2], (1, H4)) + u(keys[3], (1, H4)),   # b_ih + b_hh
        # layer 1
        "wih1": u(keys[4], (hidden_size, H4)),
        "whh1": u(keys[5], (hidden_size, H4)),
        "b1": u(keys[6], (1, H4)) + u(keys[7], (1, H4)),
        # fc
        "wfc": u(keys[8], (hidden_size, 1)),
        "bfc": u(keys[9], (1, 1)),
    }


def pack_params(params):
    """Pack all parameters into one (128, 4H) f32 slab with 8-aligned rows."""
    H = HIDDEN
    slab = jnp.zeros((P_ROWS, 4 * H), jnp.float32)
    slab = slab.at[R_WIH0:R_WIH0 + INPUT_SIZE, :].set(params["wih0"])
    slab = slab.at[R_WHH0:R_WHH0 + H, :].set(params["whh0"])
    slab = slab.at[R_B0, :].set(params["b0"][0])
    slab = slab.at[R_WIH1:R_WIH1 + H, :].set(params["wih1"])
    slab = slab.at[R_WHH1:R_WHH1 + H, :].set(params["whh1"])
    slab = slab.at[R_B1, :].set(params["b1"][0])
    slab = slab.at[R_FC, :H].set(params["wfc"][:, 0])
    slab = slab.at[R_FC, H].set(params["bfc"][0, 0])
    return slab


@jax.jit
def lstm_soc_forward(x_btf, param_slab):
    """x_btf: (B, T, input_size) float32, batch_first like the PyTorch module.
    param_slab: packed parameters from pack_params().  Returns (B,)."""
    x = x_btf.astype(jnp.float32)
    B, T, I = x.shape

    # time-major, pad feature dim to one sublane tile, pad batch to tile of 8.
    x_tbi = jnp.transpose(x, (1, 0, 2))                      # (T, B, I)
    x_tbi = jnp.pad(x_tbi, ((0, 0), (0, 0), (0, IPAD - I)))  # (T, B, IPAD)
    Bp = ((B + BATCH_TILE - 1) // BATCH_TILE) * BATCH_TILE
    if Bp != B:
        x_tbi = jnp.pad(x_tbi, ((0, 0), (0, Bp - B), (0, 0)))

    out = pl.pallas_call(
        _lstm_soc_kernel,
        out_shape=jax.ShapeDtypeStruct((Bp, 1), jnp.float32),
        grid=(Bp // BATCH_TILE,),
        in_specs=[
            pl.BlockSpec((T, BATCH_TILE, IPAD), lambda b: (0, b, 0)),
            pl.BlockSpec((P_ROWS, 4 * HIDDEN), lambda b: (0, 0)),
        ],
        out_specs=pl.BlockSpec((BATCH_TILE, 1), lambda b: (b, 0)),
        compiler_params=pltpu.CompilerParams(
            dimension_semantics=("parallel",)),
    )(x_tbi, param_slab)
    return out[:B, 0]  # squeeze(-1), drop batch padding


def lstm_soc_reference(x_btf, params):
    """Pure-JAX reference of the PyTorch forward, for a sanity check."""
    x = x_btf.astype(jnp.float32)
    B, T, _ = x.shape
    H = params["whh0"].shape[0]

    def cell(h, c, xt, wih, whh, b):
        g = xt @ wih + h @ whh + b
        i = jax.nn.sigmoid(g[:, :H])
        f = jax.nn.sigmoid(g[:, H:2 * H])
        gg = jnp.tanh(g[:, 2 * H:3 * H])
        o = jax.nn.sigmoid(g[:, 3 * H:])
        c = f * c + i * gg
        h = o * jnp.tanh(c)
        return h, c

    h0 = c0 = h1 = c1 = jnp.zeros((B, H), jnp.float32)
    for t in range(T):
        h0, c0 = cell(h0, c0, x[:, t, :], params["wih0"], params["whh0"], params["b0"])
        h1, c1 = cell(h1, c1, h0, params["wih1"], params["whh1"], params["b1"])
    return (h1 @ params["wfc"] + params["bfc"])[:, 0]


if __name__ == "__main__":
    # TODO(synk): pytorch_forecasting's ForecastingLSTM only adds NaN-length
    # masking when explicit sequence lengths are supplied; for plain dense
    # inputs (as in this module's forward) it is identical to nn.LSTM.
    key = jax.random.PRNGKey(0)
    k_x, k_p = jax.random.split(key)

    B, T = 8, 8
    x = jax.random.normal(k_x, (B, T, INPUT_SIZE), jnp.float32)
    params = init_params(k_p)
    slab = pack_params(params)

    soc_pred = lstm_soc_forward(x, slab)
    soc_pred = jax.block_until_ready(soc_pred)

    ref = lstm_soc_reference(x, params)
    assert soc_pred.shape == (B,)
    # Tolerance covers MXU default-precision (bf16-pass) rounding differences
    # and the re-associated (split) layer-1 matmul vs. the plain-JAX reference.
    assert jnp.allclose(soc_pred, ref, atol=2e-3, rtol=2e-3), (soc_pred, ref)

    print("KERNEL_OK")
</pallas_src>

<mosaic_0001>
module attributes {stable_mosaic.version = 11 : i64} {
  func.func @_lstm_soc_kernel(%arg0: i32, %arg1: memref<8x8x8xf32, #tpu.memory_space<vmem>>, %arg2: memref<128x128xf32, #tpu.memory_space<vmem>>, %arg3: memref<8x1xf32, #tpu.memory_space<vmem>>) attributes {dimension_semantics = [#tpu.dimension_semantics<parallel>], iteration_bounds = array<i64: 1>, scalar_prefetch = 0 : i64, scratch_operands = 0 : i64, tpu.core_type = #tpu.core_type<tc>, window_params = [{transform_indices = @transform_0, window_bounds = array<i64: 8, 8, 8>}, {pipeline_mode = #tpu.pipeline_mode<synchronous>, transform_indices = @transform_1, window_bounds = array<i64: 128, 128>}, {transform_indices = @transform_2, window_bounds = array<i64: 8, 1>}]} {
    %c0 = arith.constant 0 : index
    %c0_0 = arith.constant 0 : index
    %0 = vector.load %arg2[%c0, %c0_0] : memref<128x128xf32, #tpu.memory_space<vmem>>, vector<8x128xf32>
    %c8 = arith.constant 8 : index
    %c0_1 = arith.constant 0 : index
    %1 = vector.load %arg2[%c8, %c0_1] : memref<128x128xf32, #tpu.memory_space<vmem>>, vector<32x128xf32>
    %c48 = arith.constant 48 : index
    %c0_2 = arith.constant 0 : index
    %2 = vector.load %arg2[%c48, %c0_2] : memref<128x128xf32, #tpu.memory_space<vmem>>, vector<32x128xf32>
    %c80 = arith.constant 80 : index
    %c0_3 = arith.constant 0 : index
    %3 = vector.load %arg2[%c80, %c0_3] : memref<128x128xf32, #tpu.memory_space<vmem>>, vector<32x128xf32>
    %c40 = arith.constant 40 : index
    %c0_4 = arith.constant 0 : index
    %4 = vector.load %arg2[%c40, %c0_4] : memref<128x128xf32, #tpu.memory_space<vmem>>, vector<1x128xf32>
    %5 = vector.shape_cast %4 : vector<1x128xf32> to vector<1x128xf32>
    %6 = vector.broadcast %5 : vector<1x128xf32> to vector<8x128xf32>
    %c112 = arith.constant 112 : index
    %c0_5 = arith.constant 0 : index
    %7 = vector.load %arg2[%c112, %c0_5] : memref<128x128xf32, #tpu.memory_space<vmem>>, vector<1x128xf32>
    %8 = vector.shape_cast %7 : vector<1x128xf32> to vector<1x128xf32>
    %9 = vector.broadcast %8 : vector<1x128xf32> to vector<8x128xf32>
    %10 = tpu.iota {dimensions = array<i32: 1>} : vector<8x128xi32>
    %c64_i32 = arith.constant 64 : i32
    %11 = vector.broadcast %c64_i32 : i32 to vector<8x128xi32>
    %12 = arith.cmpi sge, %10, %11 : vector<8x128xi32>
    %c96_i32 = arith.constant 96 : i32
    %13 = vector.broadcast %c96_i32 : i32 to vector<8x128xi32>
    %14 = arith.cmpi slt, %10, %13 : vector<8x128xi32>
    %15 = arith.andi %12, %14 : vector<8x128xi1>
    %cst = arith.constant 0.000000e+00 : f32
    %16 = vector.broadcast %cst : f32 to vector<8x32xf32>
    %c0_6 = arith.constant 0 : index
    %c0_7 = arith.constant 0 : index
    %c0_8 = arith.constant 0 : index
    %17 = vector.load %arg1[%c0_6, %c0_7, %c0_8] : memref<8x8x8xf32, #tpu.memory_space<vmem>>, vector<1x8x8xf32>
    %18 = vector.shape_cast %17 : vector<1x8x8xf32> to vector<8x8xf32>
    %cst_9 = arith.constant dense<0.000000e+00> : vector<8x128xf32>
    %19 = tpu.matmul %18, %0, %cst_9 {dimension_numbers = #tpu.dot_dimension_numbers<[1], [0], [0], [1], [0, 0, 1, 1], [], []>} : vector<8x8xf32>, vector<8x128xf32>, vector<8x128xf32> -> vector<8x128xf32>
    %20 = arith.addf %19, %6 : vector<8x128xf32>
    %cst_10 = arith.constant dense<0.000000e+00> : vector<8x128xf32>
    %21 = tpu.matmul %16, %1, %cst_10 {dimension_numbers = #tpu.dot_dimension_numbers<[1], [0], [0], [1], [0, 0, 1, 1], [], []>} : vector<8x32xf32>, vector<32x128xf32>, vector<8x128xf32> -> vector<8x128xf32>
    %22 = arith.addf %20, %21 : vector<8x128xf32>
    %cst_11 = arith.constant 5.000000e-01 : f32
    %23 = vector.broadcast %cst_11 : f32 to vector<8x128xf32>
    %24 = arith.mulf %23, %22 : vector<8x128xf32>
    %25 = arith.select %15, %22, %24 : vector<8x128xi1>, vector<8x128xf32>
    %26 = math.tanh %25 : vector<8x128xf32>
    %cst_12 = arith.constant 5.000000e-01 : f32
    %27 = vector.broadcast %cst_12 : f32 to vector<8x128xf32>
    %28 = arith.mulf %27, %26 : vector<8x128xf32>
    %cst_13 = arith.constant 5.000000e-01 : f32
    %29 = vector.broadcast %cst_13 : f32 to vector<8x128xf32>
    %30 = arith.addf %28, %29 : vector<8x128xf32>
    %31 = arith.select %15, %26, %30 : vector<8x128xi1>, vector<8x128xf32>
    %32 = vector.extract_strided_slice %31 {offsets = [0, 0], sizes = [8, 32], strides = [1, 1]} : vector<8x128xf32> to vector<8x32xf32>
    %33 = vector.extract_strided_slice %31 {offsets = [0, 32], sizes = [8, 32], strides = [1, 1]} : vector<8x128xf32> to vector<8x32xf32>
    %34 = vector.extract_strided_slice %31 {offsets = [0, 64], sizes = [8, 32], strides = [1, 1]} : vector<8x128xf32> to vector<8x32xf32>
    %35 = vector.extract_strided_slice %31 {offsets = [0, 96], sizes = [8, 32], strides = [1, 1]} : vector<8x128xf32> to vector<8x32xf32>
    %36 = arith.mulf %33, %16 : vector<8x32xf32>
    %37 = arith.mulf %32, %34 : vector<8x32xf32>
    %38 = arith.addf %36, %37 : vector<8x32xf32>
    %39 = math.tanh %38 : vector<8x32xf32>
    %40 = arith.mulf %35, %39 : vector<8x32xf32>
    %cst_14 = arith.constant dense<0.000000e+00> : vector<8x128xf32>
    %41 = tpu.matmul %40, %2, %cst_14 {dimension_numbers = #tpu.dot_dimension_numbers<[1], [0], [0], [1], [0, 0, 1, 1], [], []>} : vector<8x32xf32>, vector<32x128xf32>, vector<8x128xf32> -> vector<8x128xf32>
    %42 = arith.addf %41, %9 : vector<8x128xf32>
    %cst_15 = arith.constant 5.000000e-01 : f32
    %43 = vector.broadcast %cst_15 : f32 to vector<8x128xf32>
    %44 = arith.mulf %43, %42 : vector<8x128xf32>
    %45 = arith.select %15, %42, %44 : vector<8x128xi1>, vector<8x128xf32>
    %46 = math.tanh %45 : vector<8x128xf32>
    %cst_16 = arith.constant 5.000000e-01 : f32
    %47 = vector.broadcast %cst_16 : f32 to vector<8x128xf32>
    %48 = arith.mulf %47, %46 : vector<8x128xf32>
    %cst_17 = arith.constant 5.000000e-01 : f32
    %49 = vector.broadcast %cst_17 : f32 to vector<8x128xf32>
    %50 = arith.addf %48, %49 : vector<8x128xf32>
    %51 = arith.select %15, %46, %50 : vector<8x128xi1>, vector<8x128xf32>
    %52 = vector.extract_strided_slice %51 {offsets = [0, 0], sizes = [8, 32], strides = [1, 1]} : vector<8x128xf32> to vector<8x32xf32>
    %53 = vector.extract_strided_slice %51 {offsets = [0, 32], sizes = [8, 32], strides = [1, 1]} : vector<8x128xf32> to vector<8x32xf32>
    %54 = vector.extract_strided_slice %51 {offsets = [0, 64], sizes = [8, 32], strides = [1, 1]} : vector<8x128xf32> to vector<8x32xf32>
    %55 = vector.extract_strided_slice %51 {offsets = [0, 96], sizes = [8, 32], strides = [1, 1]} : vector<8x128xf32> to vector<8x32xf32>
    %56 = arith.mulf %53, %16 : vector<8x32xf32>
    %57 = arith.mulf %52, %54 : vector<8x32xf32>
    %58 = arith.addf %56, %57 : vector<8x32xf32>
    %59 = math.tanh %58 : vector<8x32xf32>
    %60 = arith.mulf %55, %59 : vector<8x32xf32>
    %cst_18 = arith.constant dense<0.000000e+00> : vector<8x128xf32>
    %61 = tpu.matmul %60, %3, %cst_18 {dimension_numbers = #tpu.dot_dimension_numbers<[1], [0], [0], [1], [0, 0, 1, 1], [], []>} : vector<8x32xf32>, vector<32x128xf32>, vector<8x128xf32> -> vector<8x128xf32>
    %62 = arith.addf %61, %9 : vector<8x128xf32>
    %c1 = arith.constant 1 : index
    %c0_19 = arith.constant 0 : index
    %c0_20 = arith.constant 0 : index
    %63 = vector.load %arg1[%c1, %c0_19, %c0_20] : memref<8x8x8xf32, #tpu.memory_space<vmem>>, vector<1x8x8xf32>
    %64 = vector.shape_cast %63 : vector<1x8x8xf32> to vector<8x8xf32>
    %cst_21 = arith.constant dense<0.000000e+00> : vector<8x128xf32>
    %65 = tpu.matmul %64, %0, %cst_21 {dimension_numbers = #tpu.dot_dimension_numbers<[1], [0], [0], [1], [0, 0, 1, 1], [], []>} : vector<8x8xf32>, vector<8x128xf32>, vector<8x128xf32> -> vector<8x128xf32>
    %66 = arith.addf %65, %6 : vector<8x128xf32>
    %cst_22 = arith.constant dense<0.000000e+00> : vector<8x128xf32>
    %67 = tpu.matmul %40, %1, %cst_22 {dimension_numbers = #tpu.dot_dimension_numbers<[1], [0], [0], [1], [0, 0, 1, 1], [], []>} : vector<8x32xf32>, vector<32x128xf32>, vector<8x128xf32> -> vector<8x128xf32>
    %68 = arith.addf %66, %67 : vector<8x128xf32>
    %cst_23 = arith.constant 5.000000e-01 : f32
    %69 = vector.broadcast %cst_23 : f32 to vector<8x128xf32>
    %70 = arith.mulf %69, %68 : vector<8x128xf32>
    %71 = arith.select %15, %68, %70 : vector<8x128xi1>, vector<8x128xf32>
    %72 = math.tanh %71 : vector<8x128xf32>
    %cst_24 = arith.constant 5.000000e-01 : f32
    %73 = vector.broadcast %cst_24 : f32 to vector<8x128xf32>
    %74 = arith.mulf %73, %72 : vector<8x128xf32>
    %cst_25 = arith.constant 5.000000e-01 : f32
    %75 = vector.broadcast %cst_25 : f32 to vector<8x128xf32>
    %76 = arith.addf %74, %75 : vector<8x128xf32>
    %77 = arith.select %15, %72, %76 : vector<8x128xi1>, vector<8x128xf32>
    %78 = vector.extract_strided_slice %77 {offsets = [0, 0], sizes = [8, 32], strides = [1, 1]} : vector<8x128xf32> to vector<8x32xf32>
    %79 = vector.extract_strided_slice %77 {offsets = [0, 32], sizes = [8, 32], strides = [1, 1]} : vector<8x128xf32> to vector<8x32xf32>
    %80 = vector.extract_strided_slice %77 {offsets = [0, 64], sizes = [8, 32], strides = [1, 1]} : vector<8x128xf32> to vector<8x32xf32>
    %81 = vector.extract_strided_slice %77 {offsets = [0, 96], sizes = [8, 32], strides = [1, 1]} : vector<8x128xf32> to vector<8x32xf32>
    %82 = arith.mulf %79, %38 : vector<8x32xf32>
    %83 = arith.mulf %78, %80 : vector<8x32xf32>
    %84 = arith.addf %82, %83 : vector<8x32xf32>
    %85 = math.tanh %84 : vector<8x32xf32>
    %86 = arith.mulf %81, %85 : vector<8x32xf32>
    %cst_26 = arith.constant dense<0.000000e+00> : vector<8x128xf32>
    %87 = tpu.matmul %86, %2, %cst_26 {dimension_numbers = #tpu.dot_dimension_numbers<[1], [0], [0], [1], [0, 0, 1, 1], [], []>} : vector<8x32xf32>, vector<32x128xf32>, vector<8x128xf32> -> vector<8x128xf32>
    %88 = arith.addf %87, %62 : vector<8x128xf32>
    %cst_27 = arith.constant 5.000000e-01 : f32
    %89 = vector.broadcast %cst_27 : f32 to vector<8x128xf32>
    %90 = arith.mulf %89, %88 : vector<8x128xf32>
    %91 = arith.select %15, %88, %90 : vector<8x128xi1>, vector<8x128xf32>
    %92 = math.tanh %91 : vector<8x128xf32>
    %cst_28 = arith.constant 5.000000e-01 : f32
    %93 = vector.broadcast %cst_28 : f32 to vector<8x128xf32>
    %94 = arith.mulf %93, %92 : vector<8x128xf32>
    %cst_29 = arith.constant 5.000000e-01 : f32
    %95 = vector.broadcast %cst_29 : f32 to vector<8x128xf32>
    %96 = arith.addf %94, %95 : vector<8x128xf32>
    %97 = arith.select %15, %92, %96 : vector<8x128xi1>, vector<8x128xf32>
    %98 = vector.extract_strided_slice %97 {offsets = [0, 0], sizes = [8, 32], strides = [1, 1]} : vector<8x128xf32> to vector<8x32xf32>
    %99 = vector.extract_strided_slice %97 {offsets = [0, 32], sizes = [8, 32], strides = [1, 1]} : vector<8x128xf32> to vector<8x32xf32>
    %100 = vector.extract_strided_slice %97 {offsets = [0, 64], sizes = [8, 32], strides = [1, 1]} : vector<8x128xf32> to vector<8x32xf32>
    %101 = vector.extract_strided_slice %97 {offsets = [0, 96], sizes = [8, 32], strides = [1, 1]} : vector<8x128xf32> to vector<8x32xf32>
    %102 = arith.mulf %99, %58 : vector<8x32xf32>
    %103 = arith.mulf %98, %100 : vector<8x32xf32>
    %104 = arith.addf %102, %103 : vector<8x32xf32>
    %105 = math.tanh %104 : vector<8x32xf32>
    %106 = arith.mulf %101, %105 : vector<8x32xf32>
    %cst_30 = arith.constant dense<0.000000e+00> : vector<8x128xf32>
    %107 = tpu.matmul %106, %3, %cst_30 {dimension_numbers = #tpu.dot_dimension_numbers<[1], [0], [0], [1], [0, 0, 1, 1], [], []>} : vector<8x32xf32>, vector<32x128xf32>, vector<8x128xf32> -> vector<8x128xf32>
    %108 = arith.addf %107, %9 : vector<8x128xf32>
    %c2 = arith.constant 2 : index
    %c0_31 = arith.constant 0 : index
    %c0_32 = arith.constant 0 : index
    %109 = vector.load %arg1[%c2, %c0_31, %c0_32] : memref<8x8x8xf32, #tpu.memory_space<vmem>>, vector<1x8x8xf32>
    %110 = vector.shape_cast %109 : vector<1x8x8xf32> to vector<8x8xf32>
    %cst_33 = arith.constant dense<0.000000e+00> : vector<8x128xf32>
    %111 = tpu.matmul %110, %0, %cst_33 {dimension_numbers = #tpu.dot_dimension_numbers<[1], [0], [0], [1], [0, 0, 1, 1], [], []>} : vector<8x8xf32>, vector<8x128xf32>, vector<8x128xf32> -> vector<8x128xf32>
    %112 = arith.addf %111, %6 : vector<8x128xf32>
    %cst_34 = arith.constant dense<0.000000e+00> : vector<8x128xf32>
    %113 = tpu.matmul %86, %1, %cst_34 {dimension_numbers = #tpu.dot_dimension_numbers<[1], [0], [0], [1], [0, 0, 1, 1], [], []>} : vector<8x32xf32>, vector<32x128xf32>, vector<8x128xf32> -> vector<8x128xf32>
    %114 = arith.addf %112, %113 : vector<8x128xf32>
    %cst_35 = arith.constant 5.000000e-01 : f32
    %115 = vector.broadcast %cst_35 : f32 to vector<8x128xf32>
    %116 = arith.mulf %115, %114 : vector<8x128xf32>
    %117 = arith.select %15, %114, %116 : vector<8x128xi1>, vector<8x128xf32>
    %118 = math.tanh %117 : vector<8x128xf32>
    %cst_36 = arith.constant 5.000000e-01 : f32
    %119 = vector.broadcast %cst_36 : f32 to vector<8x128xf32>
    %120 = arith.mulf %119, %118 : vector<8x128xf32>
    %cst_37 = arith.constant 5.000000e-01 : f32
    %121 = vector.broadcast %cst_37 : f32 to vector<8x128xf32>
    %122 = arith.addf %120, %121 : vector<8x128xf32>
    %123 = arith.select %15, %118, %122 : vector<8x128xi1>, vector<8x128xf32>
    %124 = vector.extract_strided_slice %123 {offsets = [0, 0], sizes = [8, 32], strides = [1, 1]} : vector<8x128xf32> to vector<8x32xf32>
    %125 = vector.extract_strided_slice %123 {offsets = [0, 32], sizes = [8, 32], strides = [1, 1]} : vector<8x128xf32> to vector<8x32xf32>
    %126 = vector.extract_strided_slice %123 {offsets = [0, 64], sizes = [8, 32], strides = [1, 1]} : vector<8x128xf32> to vector<8x32xf32>
    %127 = vector.extract_strided_slice %123 {offsets = [0, 96], sizes = [8, 32], strides = [1, 1]} : vector<8x128xf32> to vector<8x32xf32>
    %128 = arith.mulf %125, %84 : vector<8x32xf32>
    %129 = arith.mulf %124, %126 : vector<8x32xf32>
    %130 = arith.addf %128, %129 : vector<8x32xf32>
    %131 = math.tanh %130 : vector<8x32xf32>
    %132 = arith.mulf %127, %131 : vector<8x32xf32>
    %cst_38 = arith.constant dense<0.000000e+00> : vector<8x128xf32>
    %133 = tpu.matmul %132, %2, %cst_38 {dimension_numbers = #tpu.dot_dimension_numbers<[1], [0], [0], [1], [0, 0, 1, 1], [], []>} : vector<8x32xf32>, vector<32x128xf32>, vector<8x128xf32> -> vector<8x128xf32>
    %134 = arith.addf %133, %108 : vector<8x128xf32>
    %cst_39 = arith.constant 5.000000e-01 : f32
    %135 = vector.broadcast %cst_39 : f32 to vector<8x128xf32>
    %136 = arith.mulf %135, %134 : vector<8x128xf32>
    %137 = arith.select %15, %134, %136 : vector<8x128xi1>, vector<8x128xf32>
    %138 = math.tanh %137 : vector<8x128xf32>
    %cst_40 = arith.constant 5.000000e-01 : f32
    %139 = vector.broadcast %cst_40 : f32 to vector<8x128xf32>
    %140 = arith.mulf %139, %138 : vector<8x128xf32>
    %cst_41 = arith.constant 5.000000e-01 : f32
    %141 = vector.broadcast %cst_41 : f32 to vector<8x128xf32>
    %142 = arith.addf %140, %141 : vector<8x128xf32>
    %143 = arith.select %15, %138, %142 : vector<8x128xi1>, vector<8x128xf32>
    %144 = vector.extract_strided_slice %143 {offsets = [0, 0], sizes = [8, 32], strides = [1, 1]} : vector<8x128xf32> to vector<8x32xf32>
    %145 = vector.extract_strided_slice %143 {offsets = [0, 32], sizes = [8, 32], strides = [1, 1]} : vector<8x128xf32> to vector<8x32xf32>
    %146 = vector.extract_strided_slice %143 {offsets = [0, 64], sizes = [8, 32], strides = [1, 1]} : vector<8x128xf32> to vector<8x32xf32>
    %147 = vector.extract_strided_slice %143 {offsets = [0, 96], sizes = [8, 32], strides = [1, 1]} : vector<8x128xf32> to vector<8x32xf32>
    %148 = arith.mulf %145, %104 : vector<8x32xf32>
    %149 = arith.mulf %144, %146 : vector<8x32xf32>
    %150 = arith.addf %148, %149 : vector<8x32xf32>
    %151 = math.tanh %150 : vector<8x32xf32>
    %152 = arith.mulf %147, %151 : vector<8x32xf32>
    %cst_42 = arith.constant dense<0.000000e+00> : vector<8x128xf32>
    %153 = tpu.matmul %152, %3, %cst_42 {dimension_numbers = #tpu.dot_dimension_numbers<[1], [0], [0], [1], [0, 0, 1, 1], [], []>} : vector<8x32xf32>, vector<32x128xf32>, vector<8x128xf32> -> vector<8x128xf32>
    %154 = arith.addf %153, %9 : vector<8x128xf32>
    %c3 = arith.constant 3 : index
    %c0_43 = arith.constant 0 : index
    %c0_44 = arith.constant 0 : index
    %155 = vector.load %arg1[%c3, %c0_43, %c0_44] : memref<8x8x8xf32, #tpu.memory_space<vmem>>, vector<1x8x8xf32>
    %156 = vector.shape_cast %155 : vector<1x8x8xf32> to vector<8x8xf32>
    %cst_45 = arith.constant dense<0.000000e+00> : vector<8x128xf32>
    %157 = tpu.matmul %156, %0, %cst_45 {dimension_numbers = #tpu.dot_dimension_numbers<[1], [0], [0], [1], [0, 0, 1, 1], [], []>} : vector<8x8xf32>, vector<8x128xf32>, vector<8x128xf32> -> vector<8x128xf32>
    %158 = arith.addf %157, %6 : vector<8x128xf32>
    %cst_46 = arith.constant dense<0.000000e+00> : vector<8x128xf32>
    %159 = tpu.matmul %132, %1, %cst_46 {dimension_numbers = #tpu.dot_dimension_numbers<[1], [0], [0], [1], [0, 0, 1, 1], [], []>} : vector<8x32xf32>, vector<32x128xf32>, vector<8x128xf32> -> vector<8x128xf32>
    %160 = arith.addf %158, %159 : vector<8x128xf32>
    %cst_47 = arith.constant 5.000000e-01 : f32
    %161 = vector.broadcast %cst_47 : f32 to vector<8x128xf32>
    %162 = arith.mulf %161, %160 : vector<8x128xf32>
    %163 = arith.select %15, %160, %162 : vector<8x128xi1>, vector<8x128xf32>
    %164 = math.tanh %163 : vector<8x128xf32>
    %cst_48 = arith.constant 5.000000e-01 : f32
    %165 = vector.broadcast %cst_48 : f32 to vector<8x128xf32>
    %166 = arith.mulf %165, %164 : vector<8x128xf32>
    %cst_49 = arith.constant 5.000000e-01 : f32
    %167 = vector.broadcast %cst_49 : f32 to vector<8x128xf32>
    %168 = arith.addf %166, %167 : vector<8x128xf32>
    %169 = arith.select %15, %164, %168 : vector<8x128xi1>, vector<8x128xf32>
    %170 = vector.extract_strided_slice %169 {offsets = [0, 0], sizes = [8, 32], strides = [1, 1]} : vector<8x128xf32> to vector<8x32xf32>
    %171 = vector.extract_strided_slice %169 {offsets = [0, 32], sizes = [8, 32], strides = [1, 1]} : vector<8x128xf32> to vector<8x32xf32>
    %172 = vector.extract_strided_slice %169 {offsets = [0, 64], sizes = [8, 32], strides = [1, 1]} : vector<8x128xf32> to vector<8x32xf32>
    %173 = vector.extract_strided_slice %169 {offsets = [0, 96], sizes = [8, 32], strides = [1, 1]} : vector<8x128xf32> to vector<8x32xf32>
    %174 = arith.mulf %171, %130 : vector<8x32xf32>
    %175 = arith.mulf %170, %172 : vector<8x32xf32>
    %176 = arith.addf %174, %175 : vector<8x32xf32>
    %177 = math.tanh %176 : vector<8x32xf32>
    %178 = arith.mulf %173, %177 : vector<8x32xf32>
    %cst_50 = arith.constant dense<0.000000e+00> : vector<8x128xf32>
    %179 = tpu.matmul %178, %2, %cst_50 {dimension_numbers = #tpu.dot_dimension_numbers<[1], [0], [0], [1], [0, 0, 1, 1], [], []>} : vector<8x32xf32>, vector<32x128xf32>, vector<8x128xf32> -> vector<8x128xf32>
    %180 = arith.addf %179, %154 : vector<8x128xf32>
    %cst_51 = arith.constant 5.000000e-01 : f32
    %181 = vector.broadcast %cst_51 : f32 to vector<8x128xf32>
    %182 = arith.mulf %181, %180 : vector<8x128xf32>
    %183 = arith.select %15, %180, %182 : vector<8x128xi1>, vector<8x128xf32>
    %184 = math.tanh %183 : vector<8x128xf32>
    %cst_52 = arith.constant 5.000000e-01 : f32
    %185 = vector.broadcast %cst_52 : f32 to vector<8x128xf32>
    %186 = arith.mulf %185, %184 : vector<8x128xf32>
    %cst_53 = arith.constant 5.000000e-01 : f32
    %187 = vector.broadcast %cst_53 : f32 to vector<8x128xf32>
    %188 = arith.addf %186, %187 : vector<8x128xf32>
    %189 = arith.select %15, %184, %188 : vector<8x128xi1>, vector<8x128xf32>
    %190 = vector.extract_strided_slice %189 {offsets = [0, 0], sizes = [8, 32], strides = [1, 1]} : vector<8x128xf32> to vector<8x32xf32>
    %191 = vector.extract_strided_slice %189 {offsets = [0, 32], sizes = [8, 32], strides = [1, 1]} : vector<8x128xf32> to vector<8x32xf32>
    %192 = vector.extract_strided_slice %189 {offsets = [0, 64], sizes = [8, 32], strides = [1, 1]} : vector<8x128xf32> to vector<8x32xf32>
    %193 = vector.extract_strided_slice %189 {offsets = [0, 96], sizes = [8, 32], strides = [1, 1]} : vector<8x128xf32> to vector<8x32xf32>
    %194 = arith.mulf %191, %150 : vector<8x32xf32>
    %195 = arith.mulf %190, %192 : vector<8x32xf32>
    %196 = arith.addf %194, %195 : vector<8x32xf32>
    %197 = math.tanh %196 : vector<8x32xf32>
    %198 = arith.mulf %193, %197 : vector<8x32xf32>
    %cst_54 = arith.constant dense<0.000000e+00> : vector<8x128xf32>
    %199 = tpu.matmul %198, %3, %cst_54 {dimension_numbers = #tpu.dot_dimension_numbers<[1], [0], [0], [1], [0, 0, 1, 1], [], []>} : vector<8x32xf32>, vector<32x128xf32>, vector<8x128xf32> -> vector<8x128xf32>
    %200 = arith.addf %199, %9 : vector<8x128xf32>
    %c4 = arith.constant 4 : index
    %c0_55 = arith.constant 0 : index
    %c0_56 = arith.constant 0 : index
    %201 = vector.load %arg1[%c4, %c0_55, %c0_56] : memref<8x8x8xf32, #tpu.memory_space<vmem>>, vector<1x8x8xf32>
    %202 = vector.shape_cast %201 : vector<1x8x8xf32> to vector<8x8xf32>
    %cst_57 = arith.constant dense<0.000000e+00> : vector<8x128xf32>
    %203 = tpu.matmul %202, %0, %cst_57 {dimension_numbers = #tpu.dot_dimension_numbers<[1], [0], [0], [1], [0, 0, 1, 1], [], []>} : vector<8x8xf32>, vector<8x128xf32>, vector<8x128xf32> -> vector<8x128xf32>
    %204 = arith.addf %203, %6 : vector<8x128xf32>
    %cst_58 = arith.constant dense<0.000000e+00> : vector<8x128xf32>
    %205 = tpu.matmul %178, %1, %cst_58 {dimension_numbers = #tpu.dot_dimension_numbers<[1], [0], [0], [1], [0, 0, 1, 1], [], []>} : vector<8x32xf32>, vector<32x128xf32>, vector<8x128xf32> -> vector<8x128xf32>
    %206 = arith.addf %204, %205 : vector<8x128xf32>
    %cst_59 = arith.constant 5.000000e-01 : f32
    %207 = vector.broadcast %cst_59 : f32 to vector<8x128xf32>
    %208 = arith.mulf %207, %206 : vector<8x128xf32>
    %209 = arith.select %15, %206, %208 : vector<8x128xi1>, vector<8x128xf32>
    %210 = math.tanh %209 : vector<8x128xf32>
    %cst_60 = arith.constant 5.000000e-01 : f32
    %211 = vector.broadcast %cst_60 : f32 to vector<8x128xf32>
    %212 = arith.mulf %211, %210 : vector<8x128xf32>
    %cst_61 = arith.constant 5.000000e-01 : f32
    %213 = vector.broadcast %cst_61 : f32 to vector<8x128xf32>
    %214 = arith.addf %212, %213 : vector<8x128xf32>
    %215 = arith.select %15, %210, %214 : vector<8x128xi1>, vector<8x128xf32>
    %216 = vector.extract_strided_slice %215 {offsets = [0, 0], sizes = [8, 32], strides = [1, 1]} : vector<8x128xf32> to vector<8x32xf32>
    %217 = vector.extract_strided_slice %215 {offsets = [0, 32], sizes = [8, 32], strides = [1, 1]} : vector<8x128xf32> to vector<8x32xf32>
    %218 = vector.extract_strided_slice %215 {offsets = [0, 64], sizes = [8, 32], strides = [1, 1]} : vector<8x128xf32> to vector<8x32xf32>
    %219 = vector.extract_strided_slice %215 {offsets = [0, 96], sizes = [8, 32], strides = [1, 1]} : vector<8x128xf32> to vector<8x32xf32>
    %220 = arith.mulf %217, %176 : vector<8x32xf32>
    %221 = arith.mulf %216, %218 : vector<8x32xf32>
    %222 = arith.addf %220, %221 : vector<8x32xf32>
    %223 = math.tanh %222 : vector<8x32xf32>
    %224 = arith.mulf %219, %223 : vector<8x32xf32>
    %cst_62 = arith.constant dense<0.000000e+00> : vector<8x128xf32>
    %225 = tpu.matmul %224, %2, %cst_62 {dimension_numbers = #tpu.dot_dimension_numbers<[1], [0], [0], [1], [0, 0, 1, 1], [], []>} : vector<8x32xf32>, vector<32x128xf32>, vector<8x128xf32> -> vector<8x128xf32>
    %226 = arith.addf %225, %200 : vector<8x128xf32>
    %cst_63 = arith.constant 5.000000e-01 : f32
    %227 = vector.broadcast %cst_63 : f32 to vector<8x128xf32>
    %228 = arith.mulf %227, %226 : vector<8x128xf32>
    %229 = arith.select %15, %226, %228 : vector<8x128xi1>, vector<8x128xf32>
    %230 = math.tanh %229 : vector<8x128xf32>
    %cst_64 = arith.constant 5.000000e-01 : f32
    %231 = vector.broadcast %cst_64 : f32 to vector<8x128xf32>
    %232 = arith.mulf %231, %230 : vector<8x128xf32>
    %cst_65 = arith.constant 5.000000e-01 : f32
    %233 = vector.broadcast %cst_65 : f32 to vector<8x128xf32>
    %234 = arith.addf %232, %233 : vector<8x128xf32>
    %235 = arith.select %15, %230, %234 : vector<8x128xi1>, vector<8x128xf32>
    %236 = vector.extract_strided_slice %235 {offsets = [0, 0], sizes = [8, 32], strides = [1, 1]} : vector<8x128xf32> to vector<8x32xf32>
    %237 = vector.extract_strided_slice %235 {offsets = [0, 32], sizes = [8, 32], strides = [1, 1]} : vector<8x128xf32> to vector<8x32xf32>
    %238 = vector.extract_strided_slice %235 {offsets = [0, 64], sizes = [8, 32], strides = [1, 1]} : vector<8x128xf32> to vector<8x32xf32>
    %239 = vector.extract_strided_slice %235 {offsets = [0, 96], sizes = [8, 32], strides = [1, 1]} : vector<8x128xf32> to vector<8x32xf32>
    %240 = arith.mulf %237, %196 : vector<8x32xf32>
    %241 = arith.mulf %236, %238 : vector<8x32xf32>
    %242 = arith.addf %240, %241 : vector<8x32xf32>
    %243 = math.tanh %242 : vector<8x32xf32>
    %244 = arith.mulf %239, %243 : vector<8x32xf32>
    %cst_66 = arith.constant dense<0.000000e+00> : vector<8x128xf32>
    %245 = tpu.matmul %244, %3, %cst_66 {dimension_numbers = #tpu.dot_dimension_numbers<[1], [0], [0], [1], [0, 0, 1, 1], [], []>} : vector<8x32xf32>, vector<32x128xf32>, vector<8x128xf32> -> vector<8x128xf32>
    %246 = arith.addf %245, %9 : vector<8x128xf32>
    %c5 = arith.constant 5 : index
    %c0_67 = arith.constant 0 : index
    %c0_68 = arith.constant 0 : index
    %247 = vector.load %arg1[%c5, %c0_67, %c0_68] : memref<8x8x8xf32, #tpu.memory_space<vmem>>, vector<1x8x8xf32>
    %248 = vector.shape_cast %247 : vector<1x8x8xf32> to vector<8x8xf32>
    %cst_69 = arith.constant dense<0.000000e+00> : vector<8x128xf32>
    %249 = tpu.matmul %248, %0, %cst_69 {dimension_numbers = #tpu.dot_dimension_numbers<[1], [0], [0], [1], [0, 0, 1, 1], [], []>} : vector<8x8xf32>, vector<8x128xf32>, vector<8x128xf32> -> vector<8x128xf32>
    %250 = arith.addf %249, %6 : vector<8x128xf32>
    %cst_70 = arith.constant dense<0.000000e+00> : vector<8x128xf32>
    %251 = tpu.matmul %224, %1, %cst_70 {dimension_numbers = #tpu.dot_dimension_numbers<[1], [0], [0], [1], [0, 0, 1, 1], [], []>} : vector<8x32xf32>, vector<32x128xf32>, vector<8x128xf32> -> vector<8x128xf32>
    %252 = arith.addf %250, %251 : vector<8x128xf32>
    %cst_71 = arith.constant 5.000000e-01 : f32
    %253 = vector.broadcast %cst_71 : f32 to vector<8x128xf32>
    %254 = arith.mulf %253, %252 : vector<8x128xf32>
    %255 = arith.select %15, %252, %254 : vector<8x128xi1>, vector<8x128xf32>
    %256 = math.tanh %255 : vector<8x128xf32>
    %cst_72 = arith.constant 5.000000e-01 : f32
    %257 = vector.broadcast %cst_72 : f32 to vector<8x128xf32>
    %258 = arith.mulf %257, %256 : vector<8x128xf32>
    %cst_73 = arith.constant 5.000000e-01 : f32
    %259 = vector.broadcast %cst_73 : f32 to vector<8x128xf32>
    %260 = arith.addf %258, %259 : vector<8x128xf32>
    %261 = arith.select %15, %256, %260 : vector<8x128xi1>, vector<8x128xf32>
    %262 = vector.extract_strided_slice %261 {offsets = [0, 0], sizes = [8, 32], strides = [1, 1]} : vector<8x128xf32> to vector<8x32xf32>
    %263 = vector.extract_strided_slice %261 {offsets = [0, 32], sizes = [8, 32], strides = [1, 1]} : vector<8x128xf32> to vector<8x32xf32>
    %264 = vector.extract_strided_slice %261 {offsets = [0, 64], sizes = [8, 32], strides = [1, 1]} : vector<8x128xf32> to vector<8x32xf32>
    %265 = vector.extract_strided_slice %261 {offsets = [0, 96], sizes = [8, 32], strides = [1, 1]} : vector<8x128xf32> to vector<8x32xf32>
    %266 = arith.mulf %263, %222 : vector<8x32xf32>
    %267 = arith.mulf %262, %264 : vector<8x32xf32>
    %268 = arith.addf %266, %267 : vector<8x32xf32>
    %269 = math.tanh %268 : vector<8x32xf32>
    %270 = arith.mulf %265, %269 : vector<8x32xf32>
    %cst_74 = arith.constant dense<0.000000e+00> : vector<8x128xf32>
    %271 = tpu.matmul %270, %2, %cst_74 {dimension_numbers = #tpu.dot_dimension_numbers<[1], [0], [0], [1], [0, 0, 1, 1], [], []>} : vector<8x32xf32>, vector<32x128xf32>, vector<8x128xf32> -> vector<8x128xf32>
    %272 = arith.addf %271, %246 : vector<8x128xf32>
    %cst_75 = arith.constant 5.000000e-01 : f32
    %273 = vector.broadcast %cst_75 : f32 to vector<8x128xf32>
    %274 = arith.mulf %273, %272 : vector<8x128xf32>
    %275 = arith.select %15, %272, %274 : vector<8x128xi1>, vector<8x128xf32>
    %276 = math.tanh %275 : vector<8x128xf32>
    %cst_76 = arith.constant 5.000000e-01 : f32
    %277 = vector.broadcast %cst_76 : f32 to vector<8x128xf32>
    %278 = arith.mulf %277, %276 : vector<8x128xf32>
    %cst_77 = arith.constant 5.000000e-01 : f32
    %279 = vector.broadcast %cst_77 : f32 to vector<8x128xf32>
    %280 = arith.addf %278, %279 : vector<8x128xf32>
    %281 = arith.select %15, %276, %280 : vector<8x128xi1>, vector<8x128xf32>
    %282 = vector.extract_strided_slice %281 {offsets = [0, 0], sizes = [8, 32], strides = [1, 1]} : vector<8x128xf32> to vector<8x32xf32>
    %283 = vector.extract_strided_slice %281 {offsets = [0, 32], sizes = [8, 32], strides = [1, 1]} : vector<8x128xf32> to vector<8x32xf32>
    %284 = vector.extract_strided_slice %281 {offsets = [0, 64], sizes = [8, 32], strides = [1, 1]} : vector<8x128xf32> to vector<8x32xf32>
    %285 = vector.extract_strided_slice %281 {offsets = [0, 96], sizes = [8, 32], strides = [1, 1]} : vector<8x128xf32> to vector<8x32xf32>
    %286 = arith.mulf %283, %242 : vector<8x32xf32>
    %287 = arith.mulf %282, %284 : vector<8x32xf32>
    %288 = arith.addf %286, %287 : vector<8x32xf32>
    %289 = math.tanh %288 : vector<8x32xf32>
    %290 = arith.mulf %285, %289 : vector<8x32xf32>
    %cst_78 = arith.constant dense<0.000000e+00> : vector<8x128xf32>
    %291 = tpu.matmul %290, %3, %cst_78 {dimension_numbers = #tpu.dot_dimension_numbers<[1], [0], [0], [1], [0, 0, 1, 1], [], []>} : vector<8x32xf32>, vector<32x128xf32>, vector<8x128xf32> -> vector<8x128xf32>
    %292 = arith.addf %291, %9 : vector<8x128xf32>
    %c6 = arith.constant 6 : index
    %c0_79 = arith.constant 0 : index
    %c0_80 = arith.constant 0 : index
    %293 = vector.load %arg1[%c6, %c0_79, %c0_80] : memref<8x8x8xf32, #tpu.memory_space<vmem>>, vector<1x8x8xf32>
    %294 = vector.shape_cast %293 : vector<1x8x8xf32> to vector<8x8xf32>
    %cst_81 = arith.constant dense<0.000000e+00> : vector<8x128xf32>
    %295 = tpu.matmul %294, %0, %cst_81 {dimension_numbers = #tpu.dot_dimension_numbers<[1], [0], [0], [1], [0, 0, 1, 1], [], []>} : vector<8x8xf32>, vector<8x128xf32>, vector<8x128xf32> -> vector<8x128xf32>
    %296 = arith.addf %295, %6 : vector<8x128xf32>
    %cst_82 = arith.constant dense<0.000000e+00> : vector<8x128xf32>
    %297 = tpu.matmul %270, %1, %cst_82 {dimension_numbers = #tpu.dot_dimension_numbers<[1], [0], [0], [1], [0, 0, 1, 1], [], []>} : vector<8x32xf32>, vector<32x128xf32>, vector<8x128xf32> -> vector<8x128xf32>
    %298 = arith.addf %296, %297 : vector<8x128xf32>
    %cst_83 = arith.constant 5.000000e-01 : f32
    %299 = vector.broadcast %cst_83 : f32 to vector<8x128xf32>
    %300 = arith.mulf %299, %298 : vector<8x128xf32>
    %301 = arith.select %15, %298, %300 : vector<8x128xi1>, vector<8x128xf32>
    %302 = math.tanh %301 : vector<8x128xf32>
    %cst_84 = arith.constant 5.000000e-01 : f32
    %303 = vector.broadcast %cst_84 : f32 to vector<8x128xf32>
    %304 = arith.mulf %303, %302 : vector<8x128xf32>
    %cst_85 = arith.constant 5.000000e-01 : f32
    %305 = vector.broadcast %cst_85 : f32 to vector<8x128xf32>
    %306 = arith.addf %304, %305 : vector<8x128xf32>
    %307 = arith.select %15, %302, %306 : vector<8x128xi1>, vector<8x128xf32>
    %308 = vector.extract_strided_slice %307 {offsets = [0, 0], sizes = [8, 32], strides = [1, 1]} : vector<8x128xf32> to vector<8x32xf32>
    %309 = vector.extract_strided_slice %307 {offsets = [0, 32], sizes = [8, 32], strides = [1, 1]} : vector<8x128xf32> to vector<8x32xf32>
    %310 = vector.extract_strided_slice %307 {offsets = [0, 64], sizes = [8, 32], strides = [1, 1]} : vector<8x128xf32> to vector<8x32xf32>
    %311 = vector.extract_strided_slice %307 {offsets = [0, 96], sizes = [8, 32], strides = [1, 1]} : vector<8x128xf32> to vector<8x32xf32>
    %312 = arith.mulf %309, %268 : vector<8x32xf32>
    %313 = arith.mulf %308, %310 : vector<8x32xf32>
    %314 = arith.addf %312, %313 : vector<8x32xf32>
    %315 = math.tanh %314 : vector<8x32xf32>
    %316 = arith.mulf %311, %315 : vector<8x32xf32>
    %cst_86 = arith.constant dense<0.000000e+00> : vector<8x128xf32>
    %317 = tpu.matmul %316, %2, %cst_86 {dimension_numbers = #tpu.dot_dimension_numbers<[1], [0], [0], [1], [0, 0, 1, 1], [], []>} : vector<8x32xf32>, vector<32x128xf32>, vector<8x128xf32> -> vector<8x128xf32>
    %318 = arith.addf %317, %292 : vector<8x128xf32>
    %cst_87 = arith.constant 5.000000e-01 : f32
    %319 = vector.broadcast %cst_87 : f32 to vector<8x128xf32>
    %320 = arith.mulf %319, %318 : vector<8x128xf32>
    %321 = arith.select %15, %318, %320 : vector<8x128xi1>, vector<8x128xf32>
    %322 = math.tanh %321 : vector<8x128xf32>
    %cst_88 = arith.constant 5.000000e-01 : f32
    %323 = vector.broadcast %cst_88 : f32 to vector<8x128xf32>
    %324 = arith.mulf %323, %322 : vector<8x128xf32>
    %cst_89 = arith.constant 5.000000e-01 : f32
    %325 = vector.broadcast %cst_89 : f32 to vector<8x128xf32>
    %326 = arith.addf %324, %325 : vector<8x128xf32>
    %327 = arith.select %15, %322, %326 : vector<8x128xi1>, vector<8x128xf32>
    %328 = vector.extract_strided_slice %327 {offsets = [0, 0], sizes = [8, 32], strides = [1, 1]} : vector<8x128xf32> to vector<8x32xf32>
    %329 = vector.extract_strided_slice %327 {offsets = [0, 32], sizes = [8, 32], strides = [1, 1]} : vector<8x128xf32> to vector<8x32xf32>
    %330 = vector.extract_strided_slice %327 {offsets = [0, 64], sizes = [8, 32], strides = [1, 1]} : vector<8x128xf32> to vector<8x32xf32>
    %331 = vector.extract_strided_slice %327 {offsets = [0, 96], sizes = [8, 32], strides = [1, 1]} : vector<8x128xf32> to vector<8x32xf32>
    %332 = arith.mulf %329, %288 : vector<8x32xf32>
    %333 = arith.mulf %328, %330 : vector<8x32xf32>
    %334 = arith.addf %332, %333 : vector<8x32xf32>
    %335 = math.tanh %334 : vector<8x32xf32>
    %336 = arith.mulf %331, %335 : vector<8x32xf32>
    %cst_90 = arith.constant dense<0.000000e+00> : vector<8x128xf32>
    %337 = tpu.matmul %336, %3, %cst_90 {dimension_numbers = #tpu.dot_dimension_numbers<[1], [0], [0], [1], [0, 0, 1, 1], [], []>} : vector<8x32xf32>, vector<32x128xf32>, vector<8x128xf32> -> vector<8x128xf32>
    %338 = arith.addf %337, %9 : vector<8x128xf32>
    %c7 = arith.constant 7 : index
    %c0_91 = arith.constant 0 : index
    %c0_92 = arith.constant 0 : index
    %339 = vector.load %arg1[%c7, %c0_91, %c0_92] : memref<8x8x8xf32, #tpu.memory_space<vmem>>, vector<1x8x8xf32>
    %340 = vector.shape_cast %339 : vector<1x8x8xf32> to vector<8x8xf32>
    %cst_93 = arith.constant dense<0.000000e+00> : vector<8x128xf32>
    %341 = tpu.matmul %340, %0, %cst_93 {dimension_numbers = #tpu.dot_dimension_numbers<[1], [0], [0], [1], [0, 0, 1, 1], [], []>} : vector<8x8xf32>, vector<8x128xf32>, vector<8x128xf32> -> vector<8x128xf32>
    %342 = arith.addf %341, %6 : vector<8x128xf32>
    %cst_94 = arith.constant dense<0.000000e+00> : vector<8x128xf32>
    %343 = tpu.matmul %316, %1, %cst_94 {dimension_numbers = #tpu.dot_dimension_numbers<[1], [0], [0], [1], [0, 0, 1, 1], [], []>} : vector<8x32xf32>, vector<32x128xf32>, vector<8x128xf32> -> vector<8x128xf32>
    %344 = arith.addf %342, %343 : vector<8x128xf32>
    %cst_95 = arith.constant 5.000000e-01 : f32
    %345 = vector.broadcast %cst_95 : f32 to vector<8x128xf32>
    %346 = arith.mulf %345, %344 : vector<8x128xf32>
    %347 = arith.select %15, %344, %346 : vector<8x128xi1>, vector<8x128xf32>
    %348 = math.tanh %347 : vector<8x128xf32>
    %cst_96 = arith.constant 5.000000e-01 : f32
    %349 = vector.broadcast %cst_96 : f32 to vector<8x128xf32>
    %350 = arith.mulf %349, %348 : vector<8x128xf32>
    %cst_97 = arith.constant 5.000000e-01 : f32
    %351 = vector.broadcast %cst_97 : f32 to vector<8x128xf32>
    %352 = arith.addf %350, %351 : vector<8x128xf32>
    %353 = arith.select %15, %348, %352 : vector<8x128xi1>, vector<8x128xf32>
    %354 = vector.extract_strided_slice %353 {offsets = [0, 0], sizes = [8, 32], strides = [1, 1]} : vector<8x128xf32> to vector<8x32xf32>
    %355 = vector.extract_strided_slice %353 {offsets = [0, 32], sizes = [8, 32], strides = [1, 1]} : vector<8x128xf32> to vector<8x32xf32>
    %356 = vector.extract_strided_slice %353 {offsets = [0, 64], sizes = [8, 32], strides = [1, 1]} : vector<8x128xf32> to vector<8x32xf32>
    %357 = vector.extract_strided_slice %353 {offsets = [0, 96], sizes = [8, 32], strides = [1, 1]} : vector<8x128xf32> to vector<8x32xf32>
    %358 = arith.mulf %355, %314 : vector<8x32xf32>
    %359 = arith.mulf %354, %356 : vector<8x32xf32>
    %360 = arith.addf %358, %359 : vector<8x32xf32>
    %361 = math.tanh %360 : vector<8x32xf32>
    %362 = arith.mulf %357, %361 : vector<8x32xf32>
    %cst_98 = arith.constant dense<0.000000e+00> : vector<8x128xf32>
    %363 = tpu.matmul %362, %2, %cst_98 {dimension_numbers = #tpu.dot_dimension_numbers<[1], [0], [0], [1], [0, 0, 1, 1], [], []>} : vector<8x32xf32>, vector<32x128xf32>, vector<8x128xf32> -> vector<8x128xf32>
    %364 = arith.addf %363, %338 : vector<8x128xf32>
    %cst_99 = arith.constant 5.000000e-01 : f32
    %365 = vector.broadcast %cst_99 : f32 to vector<8x128xf32>
    %366 = arith.mulf %365, %364 : vector<8x128xf32>
    %367 = arith.select %15, %364, %366 : vector<8x128xi1>, vector<8x128xf32>
    %368 = math.tanh %367 : vector<8x128xf32>
    %cst_100 = arith.constant 5.000000e-01 : f32
    %369 = vector.broadcast %cst_100 : f32 to vector<8x128xf32>
    %370 = arith.mulf %369, %368 : vector<8x128xf32>
    %cst_101 = arith.constant 5.000000e-01 : f32
    %371 = vector.broadcast %cst_101 : f32 to vector<8x128xf32>
    %372 = arith.addf %370, %371 : vector<8x128xf32>
    %373 = arith.select %15, %368, %372 : vector<8x128xi1>, vector<8x128xf32>
    %374 = vector.extract_strided_slice %373 {offsets = [0, 0], sizes = [8, 32], strides = [1, 1]} : vector<8x128xf32> to vector<8x32xf32>
    %375 = vector.extract_strided_slice %373 {offsets = [0, 32], sizes = [8, 32], strides = [1, 1]} : vector<8x128xf32> to vector<8x32xf32>
    %376 = vector.extract_strided_slice %373 {offsets = [0, 64], sizes = [8, 32], strides = [1, 1]} : vector<8x128xf32> to vector<8x32xf32>
    %377 = vector.extract_strided_slice %373 {offsets = [0, 96], sizes = [8, 32], strides = [1, 1]} : vector<8x128xf32> to vector<8x32xf32>
    %378 = arith.mulf %375, %334 : vector<8x32xf32>
    %379 = arith.mulf %374, %376 : vector<8x32xf32>
    %380 = arith.addf %378, %379 : vector<8x32xf32>
    %381 = math.tanh %380 : vector<8x32xf32>
    %382 = arith.mulf %377, %381 : vector<8x32xf32>
    %c120 = arith.constant 120 : index
    %c0_102 = arith.constant 0 : index
    %383 = vector.load %arg2[%c120, %c0_102] : memref<128x128xf32, #tpu.memory_space<vmem>>, vector<1x128xf32>
    %384 = vector.extract_strided_slice %383 {offsets = [0, 0], sizes = [1, 32], strides = [1, 1]} : vector<1x128xf32> to vector<1x32xf32>
    %385 = vector.extract_strided_slice %383 {offsets = [0, 32], sizes = [1, 1], strides = [1, 1]} : vector<1x128xf32> to vector<1x1xf32>
    %386 = vector.broadcast %384 : vector<1x32xf32> to vector<8x32xf32>
    %387 = arith.mulf %382, %386 : vector<8x32xf32>
    %cst_103 = arith.constant dense<0.000000e+00> : vector<8xf32>
    %388 = vector.multi_reduction <add>, %387, %cst_103 [1] : vector<8x32xf32> to vector<8xf32>
    %389 = vector.shape_cast %388 : vector<8xf32> to vector<8x1xf32>
    %390 = vector.broadcast %385 : vector<1x1xf32> to vector<8x1xf32>
    %391 = arith.addf %389, %390 : vector<8x1xf32>
    %c0_104 = arith.constant 0 : index
    %c0_105 = arith.constant 0 : index
    %392 = vector.load %arg3[%c0_104, %c0_105] : memref<8x1xf32, #tpu.memory_space<vmem>>, vector<8x1xf32>
    tpu.vector_store %arg3[%c0_104, %c0_105], %391 {strides = array<i32>} : memref<8x1xf32, #tpu.memory_space<vmem>>, vector<8x1xf32>,
    return
  }
  func.func @transform_0(%arg0: i32) -> (i32, i32, i32) {
    %c0_i32 = arith.constant 0 : i32
    %c0_i32_0 = arith.constant 0 : i32
    %c0_i32_1 = arith.constant 0 : i32
    return %c0_i32, %arg0, %c0_i32_0 : i32, i32, i32
  }
  func.func @transform_1(%arg0: i32) -> (i32, i32) {
    %c0_i32 = arith.constant 0 : i32
    %c0_i32_0 = arith.constant 0 : i32
    %c0_i32_1 = arith.constant 0 : i32
    return %c0_i32, %c0_i32_0 : i32, i32
  }
  func.func @transform_2(%arg0: i32) -> (i32, i32) {
    %c0_i32 = arith.constant 0 : i32
    %c0_i32_0 = arith.constant 0 : i32
    return %arg0, %c0_i32 : i32, i32
  }
}

</mosaic_0001>

<llo_original>
// kernel: lstm_soc_forward.1
$region0: #{lstm_soc_forward.1}
  #allocation0 [shape = 'u32[]', space=smem, size = 0x4, offset = 0x4, fixed_abs, tag = 'smem constant byte address 0x4 - core index']
  #allocation1 [shape = 'u32[144,128]{1,0:T(1,128)}', space=vmem, size = 0x12000, scoped, tag = 'internal scratch']
  %s0 = inlined_call_operand.vmem [shape: f32[8,8,8], index: 0, kind: input, shape index: {}]
  %s1 = inlined_call_operand.vmem [shape: f32[128,128], index: 1, kind: input, shape index: {}]
  %s2 = inlined_call_operand.vmem [shape: f32[8,1], index: 2, kind: output, shape index: {}]
  %s3 = sld [smem:[#allocation0]]
  $region18: #{lstm_soc_forward.1} parent=0
    _
  %s5 = ssub.s32 1, %s3
  %s6 = scalar_select 0, %s5, %s3
  // Predicated region
  $region2: #{lstm_soc_forward.1} parent=0 // pred_check
    _
  $region3: #{lstm_soc_forward.1} parent=0 // pred_check_branch
    %8 = sbr.rel (0) target = $region5
  $region4: #{lstm_soc_forward.1} parent=0 // pred_region
    _
  $region5: #{lstm_soc_forward.1} parent=0 // pred_fallthru
    _
  // Predicated region
  $region6: #{lstm_soc_forward.1} parent=0 // pred_check
    _
  $region7: #{lstm_soc_forward.1} parent=0 // pred_check_branch
    %10 = sbr.rel (0) target = $region9
  $region8: #{lstm_soc_forward.1} parent=0 // pred_region
    _
  $region9: #{lstm_soc_forward.1} parent=0 // pred_fallthru
    _
  %v11 = vld [vmem:[%s1] sm:$0xff]
  %v12 = vld [vmem:[%s1 + $0x8] sm:$0xff]
  %v13 = vld [vmem:[%s1 + $0x10] sm:$0xff]
  %v14 = vld [vmem:[%s1 + $0x18] sm:$0xff]
  %v15 = vld [vmem:[%s1 + $0x20] sm:$0xff]
  %v16 = vld [vmem:[%s1 + $0x30] sm:$0xff]
  %v17 = vld [vmem:[%s1 + $0x38] sm:$0xff]
  %v18 = vld [vmem:[%s1 + $0x40] sm:$0xff]
  %v19 = vld [vmem:[%s1 + $0x48] sm:$0xff]
  %v20 = vld [vmem:[%s1 + $0x50] sm:$0xff]
  %v21 = vld [vmem:[%s1 + $0x58] sm:$0xff]
  %v22 = vld [vmem:[%s1 + $0x60] sm:$0xff]
  %v23 = vld [vmem:[%s1 + $0x68] sm:$0xff]
  %v24 = vld [vmem:[%s1 + $0x28] sm:$0x1]
  %v25 = vlaneseq
  %v26 = vshrl.u32 %v25, 7
  %v27 = vsub.s32 0, %v26
  %v28 = vrot.slane %v24, %v27
  %v29 = vld [vmem:[%s1 + $0x70] sm:$0x1]
  %v30 = vlaneseq
  %v31 = vshrl.u32 %v30, 7
  %v32 = vsub.s32 0, %v31
  %v33 = vrot.slane %v29, %v32
  %v34 = vlaneseq
  %v35 = vand.u32 %v34, 127
  %vm36 = vcmp.ge.s32.totalorder %v35, 64
  %vm37 = vcmp.lt.s32.totalorder %v35, 96
  %vm38 = vmand %vm36, %vm37
  %v39 = vld [vmem:[%s0] sm:$0xff]
  %vm40 = vcmask 64512
  %v42 = vsel %vm40, %v39, 0
  %44 = vmatprep.subr.mxu0 0.0
  %45 = vmatpush1.msra.mxu0 %v11
  %46 = vmatprep.subr.mxu0 0.0
  %47 = vmatpush1.msra.mxu0 0.0
  %48 = vmatprep.subr.mxu0 0.0
  %49 = vmatpush1.msra.mxu0 0.0
  %50 = vmatprep.subr.mxu0 0.0
  %51 = vmatpush1.msra.mxu0 0.0
  %52 = vmatprep.subr.mxu0 0.0
  %53 = vmatpush1.msra.mxu0 0.0
  %54 = vmatprep.subr.mxu0 0.0
  %55 = vmatpush1.msra.mxu0 0.0
  %56 = vmatprep.subr.mxu0 0.0
  %57 = vmatpush1.msra.mxu0 0.0
  %58 = vmatprep.subr.mxu0 0.0
  %59 = vmatpush1.msra.mxu0 0.0
  %60 = vmatprep.subr.mxu0 0.0
  %61 = vmatpush1.msra.mxu0 0.0
  %62 = vmatprep.subr.mxu0 0.0
  %63 = vmatpush1.msra.mxu0 0.0
  %64 = vmatprep.subr.mxu0 0.0
  %65 = vmatpush1.msra.mxu0 0.0
  %66 = vmatprep.subr.mxu0 0.0
  %67 = vmatpush1.msra.mxu0 0.0
  %68 = vmatprep.subr.mxu0 0.0
  %69 = vmatpush1.msra.mxu0 0.0
  %70 = vmatprep.subr.mxu0 0.0
  %71 = vmatpush1.msra.mxu0 0.0
  %72 = vmatprep.subr.mxu0 0.0
  %73 = vmatpush1.msra.mxu0 0.0
  %74 = vmatprep.subr.mxu0 0.0
  %75 = vmatpush1.msra.mxu0 0.0
  %76 = vmatprep.subr.mxu0 0.0
  %77 = vmatpush1.msra.mxu0 0.0
  %78 = vmatprep.subr.mxu0 0.0
  %79 = vmatpush1.msra.mxu0 0.0
  %80 = vmatprep.subr.mxu0 0.0
  %81 = vmatpush1.msra.mxu0 0.0
  %82 = vmatprep.subr.mxu0 0.0
  %83 = vmatpush1.msra.mxu0 0.0
  %84 = vmatprep.subr.mxu0 0.0
  %85 = vmatpush1.msra.mxu0 0.0
  %86 = vmatprep.subr.mxu0 0.0
  %87 = vmatpush1.msra.mxu0 0.0
  %88 = vmatprep.subr.mxu0 0.0
  %89 = vmatpush1.msra.mxu0 0.0
  %90 = vmatprep.subr.mxu0 0.0
  %91 = vmatpush1.msra.mxu0 0.0
  %92 = vmatprep.subr.mxu0 0.0
  %93 = vmatpush1.msra.mxu0 0.0
  %94 = vmatprep.subr.mxu0 0.0
  %95 = vmatpush1.msra.mxu0 0.0
  %96 = vmatprep.subr.mxu0 0.0
  %97 = vmatpush1.msra.mxu0 0.0
  %98 = vmatprep.subr.mxu0 0.0
  %99 = vmatpush1.msra.mxu0 0.0
  %100 = vmatprep.subr.mxu0 0.0
  %101 = vmatpush1.msra.mxu0 0.0
  %102 = vmatprep.subr.mxu0 0.0
  %103 = vmatpush1.msra.mxu0 0.0
  %104 = vmatprep.subr.mxu0 0.0
  %105 = vmatpush1.msra.mxu0 0.0
  %106 = vmatprep.subr.mxu0 0.0
  %107 = vmatpush1.msra.mxu0 0.0
  %108 = vmatprep.mubr.f32.mxu0 0.0
  %109 = vmatmul.mubr.f32.gmra.mrb[0].mxu0 %v42
  %v110 = vpop.f32.mrb[0].mxu0
  %v111 = vadd.f32 %v28, %v110
  %v112 = vpop.f32.mrb[0].mxu0
  %113 = vdwg.mxu0
  %vm114 = vcmask 261120
  %v116 = vsel %vm114, 0.0, 0
  %118 = vmatprep.subr.mxu0 0.0
  %119 = vmatpush1.msra.mxu0 %v12
  %120 = vmatprep.subr.mxu0 0.0
  %121 = vmatpush1.msra.mxu0 %v13
  %122 = vmatprep.subr.mxu0 0.0
  %123 = vmatpush1.msra.mxu0 %v14
  %124 = vmatprep.subr.mxu0 0.0
  %125 = vmatpush1.msra.mxu0 %v15
  %126 = vmatprep.subr.mxu0 0.0
  %127 = vmatpush1.msra.mxu0 0.0
  %128 = vmatprep.subr.mxu0 0.0
  %129 = vmatpush1.msra.mxu0 0.0
  %130 = vmatprep.subr.mxu0 0.0
  %131 = vmatpush1.msra.mxu0 0.0
  %132 = vmatprep.subr.mxu0 0.0
  %133 = vmatpush1.msra.mxu0 0.0
  %134 = vmatprep.subr.mxu0 0.0
  %135 = vmatpush1.msra.mxu0 0.0
  %136 = vmatprep.subr.mxu0 0.0
  %137 = vmatpush1.msra.mxu0 0.0
  %138 = vmatprep.subr.mxu0 0.0
  %139 = vmatpush1.msra.mxu0 0.0
  %140 = vmatprep.subr.mxu0 0.0
  %141 = vmatpush1.msra.mxu0 0.0
  %142 = vmatprep.subr.mxu0 0.0
  %143 = vmatpush1.msra.mxu0 0.0
  %144 = vmatprep.subr.mxu0 0.0
  %145 = vmatpush1.msra.mxu0 0.0
  %146 = vmatprep.subr.mxu0 0.0
  %147 = vmatpush1.msra.mxu0 0.0
  %148 = vmatprep.subr.mxu0 0.0
  %149 = vmatpush1.msra.mxu0 0.0
  %150 = vmatprep.subr.mxu0 0.0
  %151 = vmatpush1.msra.mxu0 0.0
  %152 = vmatprep.subr.mxu0 0.0
  %153 = vmatpush1.msra.mxu0 0.0
  %154 = vmatprep.subr.mxu0 0.0
  %155 = vmatpush1.msra.mxu0 0.0
  %156 = vmatprep.subr.mxu0 0.0
  %157 = vmatpush1.msra.mxu0 0.0
  %158 = vmatprep.subr.mxu0 0.0
  %159 = vmatpush1.msra.mxu0 0.0
  %160 = vmatprep.subr.mxu0 0.0
  %161 = vmatpush1.msra.mxu0 0.0
  %162 = vmatprep.subr.mxu0 0.0
  %163 = vmatpush1.msra.mxu0 0.0
  %164 = vmatprep.subr.mxu0 0.0
  %165 = vmatpush1.msra.mxu0 0.0
  %166 = vmatprep.subr.mxu0 0.0
  %167 = vmatpush1.msra.mxu0 0.0
  %168 = vmatprep.subr.mxu0 0.0
  %169 = vmatpush1.msra.mxu0 0.0
  %170 = vmatprep.subr.mxu0 0.0
  %171 = vmatpush1.msra.mxu0 0.0
  %172 = vmatprep.subr.mxu0 0.0
  %173 = vmatpush1.msra.mxu0 0.0
  %174 = vmatprep.subr.mxu0 0.0
  %175 = vmatpush1.msra.mxu0 0.0
  %176 = vmatprep.subr.mxu0 0.0
  %177 = vmatpush1.msra.mxu0 0.0
  %178 = vmatprep.subr.mxu0 0.0
  %179 = vmatpush1.msra.mxu0 0.0
  %180 = vmatprep.subr.mxu0 0.0
  %181 = vmatpush1.msra.mxu0 0.0
  %182 = vmatprep.mubr.f32.mxu0 0.0
  %183 = vmatmul.mubr.f32.gmra.mrb[0].mxu0 %v116
  %v184 = vpop.f32.mrb[0].mxu0
  %v185 = vadd.f32 0.0, %v184
  %v186 = vpop.f32.mrb[0].mxu0
  %187 = vdwg.mxu0
  %v188 = vadd.f32 %v111, %v185
  %v189 = vmul.f32 %v188, 0.5
  %v190 = vsel %vm38, %v188, %v189
  %v191 = vtanh.pop %v190
  %v192 = vmul.f32 %v191, 0.5
  %v193 = vadd.f32 %v192, 0.5
  %v194 = vsel %vm38, %v191, %v193
  %v195 = vmul.f32 %v194, 0.0
  %197 = vrot.lane.b32.xlu0 %v194, 64
  %v198 = vpop.permute.xlu0 %197
  %v200 = vmul.f32 %v194, %v198
  %202 = vrot.lane.b32.xlu0 %v200, 32
  %v203 = vpop.permute.xlu0 %202
  %v205 = vadd.f32 %v195, %v203
  %v206 = vtanh.pop %v205
  %208 = vrot.lane.b32.xlu0 %v206, 64
  %v209 = vpop.permute.xlu0 %208
  %v211 = vmul.f32 %v194, %v209
  %213 = vrot.lane.b32.xlu0 %v211, 32
  %v214 = vpop.permute.xlu0 %213
  %v215 = vsel %vm114, %v214, 0
  %217 = vmatprep.subr.mxu0 0.0
  %218 = vmatpush1.msra.mxu0 %v16
  %219 = vmatprep.subr.mxu0 0.0
  %220 = vmatpush1.msra.mxu0 %v17
  %221 = vmatprep.subr.mxu0 0.0
  %222 = vmatpush1.msra.mxu0 %v18
  %223 = vmatprep.subr.mxu0 0.0
  %224 = vmatpush1.msra.mxu0 %v19
  %225 = vmatprep.subr.mxu0 0.0
  %226 = vmatpush1.msra.mxu0 0.0
  %227 = vmatprep.subr.mxu0 0.0
  %228 = vmatpush1.msra.mxu0 0.0
  %229 = vmatprep.subr.mxu0 0.0
  %230 = vmatpush1.msra.mxu0 0.0
  %231 = vmatprep.subr.mxu0 0.0
  %232 = vmatpush1.msra.mxu0 0.0
  %233 = vmatprep.subr.mxu0 0.0
  %234 = vmatpush1.msra.mxu0 0.0
  %235 = vmatprep.subr.mxu0 0.0
  %236 = vmatpush1.msra.mxu0 0.0
  %237 = vmatprep.subr.mxu0 0.0
  %238 = vmatpush1.msra.mxu0 0.0
  %239 = vmatprep.subr.mxu0 0.0
  %240 = vmatpush1.msra.mxu0 0.0
  %241 = vmatprep.subr.mxu0 0.0
  %242 = vmatpush1.msra.mxu0 0.0
  %243 = vmatprep.subr.mxu0 0.0
  %244 = vmatpush1.msra.mxu0 0.0
  %245 = vmatprep.subr.mxu0 0.0
  %246 = vmatpush1.msra.mxu0 0.0
  %247 = vmatprep.subr.mxu0 0.0
  %248 = vmatpush1.msra.mxu0 0.0
  %249 = vmatprep.subr.mxu0 0.0
  %250 = vmatpush1.msra.mxu0 0.0
  %251 = vmatprep.subr.mxu0 0.0
  %252 = vmatpush1.msra.mxu0 0.0
  %253 = vmatprep.subr.mxu0 0.0
  %254 = vmatpush1.msra.mxu0 0.0
  %255 = vmatprep.subr.mxu0 0.0
  %256 = vmatpush1.msra.mxu0 0.0
  %257 = vmatprep.subr.mxu0 0.0
  %258 = vmatpush1.msra.mxu0 0.0
  %259 = vmatprep.subr.mxu0 0.0
  %260 = vmatpush1.msra.mxu0 0.0
  %261 = vmatprep.subr.mxu0 0.0
  %262 = vmatpush1.msra.mxu0 0.0
  %263 = vmatprep.subr.mxu0 0.0
  %264 = vmatpush1.msra.mxu0 0.0
  %265 = vmatprep.subr.mxu0 0.0
  %266 = vmatpush1.msra.mxu0 0.0
  %267 = vmatprep.subr.mxu0 0.0
  %268 = vmatpush1.msra.mxu0 0.0
  %269 = vmatprep.subr.mxu0 0.0
  %270 = vmatpush1.msra.mxu0 0.0
  %271 = vmatprep.subr.mxu0 0.0
  %272 = vmatpush1.msra.mxu0 0.0
  %273 = vmatprep.subr.mxu0 0.0
  %274 = vmatpush1.msra.mxu0 0.0
  %275 = vmatprep.subr.mxu0 0.0
  %276 = vmatpush1.msra.mxu0 0.0
  %277 = vmatprep.subr.mxu0 0.0
  %278 = vmatpush1.msra.mxu0 0.0
  %279 = vmatprep.subr.mxu0 0.0
  %280 = vmatpush1.msra.mxu0 0.0
  %281 = vmatprep.mubr.f32.mxu0 0.0
  %282 = vmatmul.mubr.f32.gmra.mrb[0].mxu0 %v215
  %v283 = vpop.f32.mrb[0].mxu0
  %v284 = vadd.f32 %v33, %v283
  %v285 = vpop.f32.mrb[0].mxu0
  %286 = vdwg.mxu0
  %v287 = vmul.f32 %v284, 0.5
  %v288 = vsel %vm38, %v284, %v287
  %v289 = vtanh.pop %v288
  %v290 = vmul.f32 %v289, 0.5
  %v291 = vadd.f32 %v290, 0.5
  %v292 = vsel %vm38, %v289, %v291
  %v293 = vmul.f32 %v292, 0.0
  %295 = vrot.lane.b32.xlu0 %v292, 64
  %v296 = vpop.permute.xlu0 %295
  %v298 = vmul.f32 %v292, %v296
  %300 = vrot.lane.b32.xlu0 %v298, 32
  %v301 = vpop.permute.xlu0 %300
  %v303 = vadd.f32 %v293, %v301
  %v304 = vtanh.pop %v303
  %306 = vrot.lane.b32.xlu0 %v304, 64
  %v307 = vpop.permute.xlu0 %306
  %v309 = vmul.f32 %v292, %v307
  %311 = vrot.lane.b32.xlu0 %v309, 32
  %v312 = vpop.permute.xlu0 %311
  %v313 = vsel %vm114, %v312, 0
  %315 = vmatprep.subr.mxu0 0.0
  %316 = vmatpush1.msra.mxu0 %v20
  %317 = vmatprep.subr.mxu0 0.0
  %318 = vmatpush1.msra.mxu0 %v21
  %319 = vmatprep.subr.mxu0 0.0
  %320 = vmatpush1.msra.mxu0 %v22
  %321 = vmatprep.subr.mxu0 0.0
  %322 = vmatpush1.msra.mxu0 %v23
  %323 = vmatprep.subr.mxu0 0.0
  %324 = vmatpush1.msra.mxu0 0.0
  %325 = vmatprep.subr.mxu0 0.0
  %326 = vmatpush1.msra.mxu0 0.0
  %327 = vmatprep.subr.mxu0 0.0
  %328 = vmatpush1.msra.mxu0 0.0
  %329 = vmatprep.subr.mxu0 0.0
  %330 = vmatpush1.msra.mxu0 0.0
  %331 = vmatprep.subr.mxu0 0.0
  %332 = vmatpush1.msra.mxu0 0.0
  %333 = vmatprep.subr.mxu0 0.0
  %334 = vmatpush1.msra.mxu0 0.0
  %335 = vmatprep.subr.mxu0 0.0
  %336 = vmatpush1.msra.mxu0 0.0
  %337 = vmatprep.subr.mxu0 0.0
  %338 = vmatpush1.msra.mxu0 0.0
  %339 = vmatprep.subr.mxu0 0.0
  %340 = vmatpush1.msra.mxu0 0.0
  %341 = vmatprep.subr.mxu0 0.0
  %342 = vmatpush1.msra.mxu0 0.0
  %343 = vmatprep.subr.mxu0 0.0
  %344 = vmatpush1.msra.mxu0 0.0
  %345 = vmatprep.subr.mxu0 0.0
  %346 = vmatpush1.msra.mxu0 0.0
  %347 = vmatprep.subr.mxu0 0.0
  %348 = vmatpush1.msra.mxu0 0.0
  %349 = vmatprep.subr.mxu0 0.0
  %350 = vmatpush1.msra.mxu0 0.0
  %351 = vmatprep.subr.mxu0 0.0
  %352 = vmatpush1.msra.mxu0 0.0
  %353 = vmatprep.subr.mxu0 0.0
  %354 = vmatpush1.msra.mxu0 0.0
  %355 = vmatprep.subr.mxu0 0.0
  %356 = vmatpush1.msra.mxu0 0.0
  %357 = vmatprep.subr.mxu0 0.0
  %358 = vmatpush1.msra.mxu0 0.0
  %359 = vmatprep.subr.mxu0 0.0
  %360 = vmatpush1.msra.mxu0 0.0
  %361 = vmatprep.subr.mxu0 0.0
  %362 = vmatpush1.msra.mxu0 0.0
  %363 = vmatprep.subr.mxu0 0.0
  %364 = vmatpush1.msra.mxu0 0.0
  %365 = vmatprep.subr.mxu0 0.0
  %366 = vmatpush1.msra.mxu0 0.0
  %367 = vmatprep.subr.mxu0 0.0
  %368 = vmatpush1.msra.mxu0 0.0
  %369 = vmatprep.subr.mxu0 0.0
  %370 = vmatpush1.msra.mxu0 0.0
  %371 = vmatprep.subr.mxu0 0.0
  %372 = vmatpush1.msra.mxu0 0.0
  %373 = vmatprep.subr.mxu0 0.0
  %374 = vmatpush1.msra.mxu0 0.0
  %375 = vmatprep.subr.mxu0 0.0
  %376 = vmatpush1.msra.mxu0 0.0
  %377 = vmatprep.subr.mxu0 0.0
  %378 = vmatpush1.msra.mxu0 0.0
  %379 = vmatprep.mubr.f32.mxu0 0.0
  %380 = vmatmul.mubr.f32.gmra.mrb[0].mxu0 %v313
  %v381 = vpop.f32.mrb[0].mxu0
  %v382 = vadd.f32 %v33, %v381
  %v383 = vpop.f32.mrb[0].mxu0
  %384 = vdwg.mxu0
  %s385 = scalar_lea.vmem %s0, 8
  %v386 = vld [vmem:[%s385] sm:$0xff]
  %v388 = vsel %vm40, %v386, 0
  %390 = vmatprep.subr.mxu0 0.0
  %391 = vmatpush1.msra.mxu0 %v11
  %392 = vmatprep.subr.mxu0 0.0
  %393 = vmatpush1.msra.mxu0 0.0
  %394 = vmatprep.subr.mxu0 0.0
  %395 = vmatpush1.msra.mxu0 0.0
  %396 = vmatprep.subr.mxu0 0.0
  %397 = vmatpush1.msra.mxu0 0.0
  %398 = vmatprep.subr.mxu0 0.0
  %399 = vmatpush1.msra.mxu0 0.0
  %400 = vmatprep.subr.mxu0 0.0
  %401 = vmatpush1.msra.mxu0 0.0
  %402 = vmatprep.subr.mxu0 0.0
  %403 = vmatpush1.msra.mxu0 0.0
  %404 = vmatprep.subr.mxu0 0.0
  %405 = vmatpush1.msra.mxu0 0.0
  %406 = vmatprep.subr.mxu0 0.0
  %407 = vmatpush1.msra.mxu0 0.0
  %408 = vmatprep.subr.mxu0 0.0
  %409 = vmatpush1.msra.mxu0 0.0
  %410 = vmatprep.subr.mxu0 0.0
  %411 = vmatpush1.msra.mxu0 0.0
  %412 = vmatprep.subr.mxu0 0.0
  %413 = vmatpush1.msra.mxu0 0.0
  %414 = vmatprep.subr.mxu0 0.0
  %415 = vmatpush1.msra.mxu0 0.0
  %416 = vmatprep.subr.mxu0 0.0
  %417 = vmatpush1.msra.mxu0 0.0
  %418 = vmatprep.subr.mxu0 0.0
  %419 = vmatpush1.msra.mxu0 0.0
  %420 = vmatprep.subr.mxu0 0.0
  %421 = vmatpush1.msra.mxu0 0.0
  %422 = vmatprep.subr.mxu0 0.0
  %423 = vmatpush1.msra.mxu0 0.0
  %424 = vmatprep.subr.mxu0 0.0
  %425 = vmatpush1.msra.mxu0 0.0
  %426 = vmatprep.subr.mxu0 0.0
  %427 = vmatpush1.msra.mxu0 0.0
  %428 = vmatprep.subr.mxu0 0.0
  %429 = vmatpush1.msra.mxu0 0.0
  %430 = vmatprep.subr.mxu0 0.0
  %431 = vmatpush1.msra.mxu0 0.0
  %432 = vmatprep.subr.mxu0 0.0
  %433 = vmatpush1.msra.mxu0 0.0
  %434 = vmatprep.subr.mxu0 0.0
  %435 = vmatpush1.msra.mxu0 0.0
  %436 = vmatprep.subr.mxu0 0.0
  %437 = vmatpush1.msra.mxu0 0.0
  %438 = vmatprep.subr.mxu0 0.0
  %439 = vmatpush1.msra.mxu0 0.0
  %440 = vmatprep.subr.mxu0 0.0
  %441 = vmatpush1.msra.mxu0 0.0
  %442 = vmatprep.subr.mxu0 0.0
  %443 = vmatpush1.msra.mxu0 0.0
  %444 = vmatprep.subr.mxu0 0.0
  %445 = vmatpush1.msra.mxu0 0.0
  %446 = vmatprep.subr.mxu0 0.0
  %447 = vmatpush1.msra.mxu0 0.0
  %448 = vmatprep.subr.mxu0 0.0
  %449 = vmatpush1.msra.mxu0 0.0
  %450 = vmatprep.subr.mxu0 0.0
  %451 = vmatpush1.msra.mxu0 0.0
  %452 = vmatprep.subr.mxu0 0.0
  %453 = vmatpush1.msra.mxu0 0.0
  %454 = vmatprep.mubr.f32.mxu0 0.0
  %455 = vmatmul.mubr.f32.gmra.mrb[0].mxu0 %v388
  %v456 = vpop.f32.mrb[0].mxu0
  %v457 = vadd.f32 %v28, %v456
  %v458 = vpop.f32.mrb[0].mxu0
  %459 = vdwg.mxu0
  %460 = vmatprep.subr.mxu0 0.0
  %461 = vmatpush1.msra.mxu0 %v12
  %462 = vmatprep.subr.mxu0 0.0
  %463 = vmatpush1.msra.mxu0 %v13
  %464 = vmatprep.subr.mxu0 0.0
  %465 = vmatpush1.msra.mxu0 %v14
  %466 = vmatprep.subr.mxu0 0.0
  %467 = vmatpush1.msra.mxu0 %v15
  %468 = vmatprep.subr.mxu0 0.0
  %469 = vmatpush1.msra.mxu0 0.0
  %470 = vmatprep.subr.mxu0 0.0
  %471 = vmatpush1.msra.mxu0 0.0
  %472 = vmatprep.subr.mxu0 0.0
  %473 = vmatpush1.msra.mxu0 0.0
  %474 = vmatprep.subr.mxu0 0.0
  %475 = vmatpush1.msra.mxu0 0.0
  %476 = vmatprep.subr.mxu0 0.0
  %477 = vmatpush1.msra.mxu0 0.0
  %478 = vmatprep.subr.mxu0 0.0
  %479 = vmatpush1.msra.mxu0 0.0
  %480 = vmatprep.subr.mxu0 0.0
  %481 = vmatpush1.msra.mxu0 0.0
  %482 = vmatprep.subr.mxu0 0.0
  %483 = vmatpush1.msra.mxu0 0.0
  %484 = vmatprep.subr.mxu0 0.0
  %485 = vmatpush1.msra.mxu0 0.0
  %486 = vmatprep.subr.mxu0 0.0
  %487 = vmatpush1.msra.mxu0 0.0
  %488 = vmatprep.subr.mxu0 0.0
  %489 = vmatpush1.msra.mxu0 0.0
  %490 = vmatprep.subr.mxu0 0.0
  %491 = vmatpush1.msra.mxu0 0.0
  %492 = vmatprep.subr.mxu0 0.0
  %493 = vmatpush1.msra.mxu0 0.0
  %494 = vmatprep.subr.mxu0 0.0
  %495 = vmatpush1.msra.mxu0 0.0
  %496 = vmatprep.subr.mxu0 0.0
  %497 = vmatpush1.msra.mxu0 0.0
  %498 = vmatprep.subr.mxu0 0.0
  %499 = vmatpush1.msra.mxu0 0.0
  %500 = vmatprep.subr.mxu0 0.0
  %501 = vmatpush1.msra.mxu0 0.0
  %502 = vmatprep.subr.mxu0 0.0
  %503 = vmatpush1.msra.mxu0 0.0
  %504 = vmatprep.subr.mxu0 0.0
  %505 = vmatpush1.msra.mxu0 0.0
  %506 = vmatprep.subr.mxu0 0.0
  %507 = vmatpush1.msra.mxu0 0.0
  %508 = vmatprep.subr.mxu0 0.0
  %509 = vmatpush1.msra.mxu0 0.0
  %510 = vmatprep.subr.mxu0 0.0
  %511 = vmatpush1.msra.mxu0 0.0
  %512 = vmatprep.subr.mxu0 0.0
  %513 = vmatpush1.msra.mxu0 0.0
  %514 = vmatprep.subr.mxu0 0.0
  %515 = vmatpush1.msra.mxu0 0.0
  %516 = vmatprep.subr.mxu0 0.0
  %517 = vmatpush1.msra.mxu0 0.0
  %518 = vmatprep.subr.mxu0 0.0
  %519 = vmatpush1.msra.mxu0 0.0
  %520 = vmatprep.subr.mxu0 0.0
  %521 = vmatpush1.msra.mxu0 0.0
  %522 = vmatprep.subr.mxu0 0.0
  %523 = vmatpush1.msra.mxu0 0.0
  %524 = vmatprep.mubr.f32.mxu0 0.0
  %525 = vmatmul.mubr.f32.gmra.mrb[0].mxu0 %v215
  %v526 = vpop.f32.mrb[0].mxu0
  %v527 = vadd.f32 0.0, %v526
  %v528 = vpop.f32.mrb[0].mxu0
  %529 = vdwg.mxu0
  %v530 = vadd.f32 %v457, %v527
  %v531 = vmul.f32 %v530, 0.5
  %v532 = vsel %vm38, %v530, %v531
  %v533 = vtanh.pop %v532
  %v534 = vmul.f32 %v533, 0.5
  %v535 = vadd.f32 %v534, 0.5
  %v536 = vsel %vm38, %v533, %v535
  %v537 = vmul.f32 %v536, %v205
  %539 = vrot.lane.b32.xlu0 %v536, 64
  %v540 = vpop.permute.xlu0 %539
  %v542 = vmul.f32 %v536, %v540
  %544 = vrot.lane.b32.xlu0 %v542, 32
  %v545 = vpop.permute.xlu0 %544
  %v547 = vadd.f32 %v537, %v545
  %v548 = vtanh.pop %v547
  %550 = vrot.lane.b32.xlu0 %v548, 64
  %v551 = vpop.permute.xlu0 %550
  %v553 = vmul.f32 %v536, %v551
  %555 = vrot.lane.b32.xlu0 %v553, 32
  %v556 = vpop.permute.xlu0 %555
  %v557 = vsel %vm114, %v556, 0
  %559 = vmatprep.subr.mxu0 0.0
  %560 = vmatpush1.msra.mxu0 %v16
  %561 = vmatprep.subr.mxu0 0.0
  %562 = vmatpush1.msra.mxu0 %v17
  %563 = vmatprep.subr.mxu0 0.0
  %564 = vmatpush1.msra.mxu0 %v18
  %565 = vmatprep.subr.mxu0 0.0
  %566 = vmatpush1.msra.mxu0 %v19
  %567 = vmatprep.subr.mxu0 0.0
  %568 = vmatpush1.msra.mxu0 0.0
  %569 = vmatprep.subr.mxu0 0.0
  %570 = vmatpush1.msra.mxu0 0.0
  %571 = vmatprep.subr.mxu0 0.0
  %572 = vmatpush1.msra.mxu0 0.0
  %573 = vmatprep.subr.mxu0 0.0
  %574 = vmatpush1.msra.mxu0 0.0
  %575 = vmatprep.subr.mxu0 0.0
  %576 = vmatpush1.msra.mxu0 0.0
  %577 = vmatprep.subr.mxu0 0.0
  %578 = vmatpush1.msra.mxu0 0.0
  %579 = vmatprep.subr.mxu0 0.0
  %580 = vmatpush1.msra.mxu0 0.0
  %581 = vmatprep.subr.mxu0 0.0
  %582 = vmatpush1.msra.mxu0 0.0
  %583 = vmatprep.subr.mxu0 0.0
  %584 = vmatpush1.msra.mxu0 0.0
  %585 = vmatprep.subr.mxu0 0.0
  %586 = vmatpush1.msra.mxu0 0.0
  %587 = vmatprep.subr.mxu0 0.0
  %588 = vmatpush1.msra.mxu0 0.0
  %589 = vmatprep.subr.mxu0 0.0
  %590 = vmatpush1.msra.mxu0 0.0
  %591 = vmatprep.subr.mxu0 0.0
  %592 = vmatpush1.msra.mxu0 0.0
  %593 = vmatprep.subr.mxu0 0.0
  %594 = vmatpush1.msra.mxu0 0.0
  %595 = vmatprep.subr.mxu0 0.0
  %596 = vmatpush1.msra.mxu0 0.0
  %597 = vmatprep.subr.mxu0 0.0
  %598 = vmatpush1.msra.mxu0 0.0
  %599 = vmatprep.subr.mxu0 0.0
  %600 = vmatpush1.msra.mxu0 0.0
  %601 = vmatprep.subr.mxu0 0.0
  %602 = vmatpush1.msra.mxu0 0.0
  %603 = vmatprep.subr.mxu0 0.0
  %604 = vmatpush1.msra.mxu0 0.0
  %605 = vmatprep.subr.mxu0 0.0
  %606 = vmatpush1.msra.mxu0 0.0
  %607 = vmatprep.subr.mxu0 0.0
  %608 = vmatpush1.msra.mxu0 0.0
  %609 = vmatprep.subr.mxu0 0.0
  %610 = vmatpush1.msra.mxu0 0.0
  %611 = vmatprep.subr.mxu0 0.0
  %612 = vmatpush1.msra.mxu0 0.0
  %613 = vmatprep.subr.mxu0 0.0
  %614 = vmatpush1.msra.mxu0 0.0
  %615 = vmatprep.subr.mxu0 0.0
  %616 = vmatpush1.msra.mxu0 0.0
  %617 = vmatprep.subr.mxu0 0.0
  %618 = vmatpush1.msra.mxu0 0.0
  %619 = vmatprep.subr.mxu0 0.0
  %620 = vmatpush1.msra.mxu0 0.0
  %621 = vmatprep.subr.mxu0 0.0
  %622 = vmatpush1.msra.mxu0 0.0
  %623 = vmatprep.mubr.f32.mxu0 0.0
  %624 = vmatmul.mubr.f32.gmra.mrb[0].mxu0 %v557
  %v625 = vpop.f32.mrb[0].mxu0
  %v626 = vadd.f32 %v382, %v625
  %v627 = vpop.f32.mrb[0].mxu0
  %628 = vdwg.mxu0
  %v629 = vmul.f32 %v626, 0.5
  %v630 = vsel %vm38, %v626, %v629
  %v631 = vtanh.pop %v630
  %v632 = vmul.f32 %v631, 0.5
  %v633 = vadd.f32 %v632, 0.5
  %v634 = vsel %vm38, %v631, %v633
  %v635 = vmul.f32 %v634, %v303
  %637 = vrot.lane.b32.xlu0 %v634, 64
  %v638 = vpop.permute.xlu0 %637
  %v640 = vmul.f32 %v634, %v638
  %642 = vrot.lane.b32.xlu0 %v640, 32
  %v643 = vpop.permute.xlu0 %642
  %v645 = vadd.f32 %v635, %v643
  %v646 = vtanh.pop %v645
  %648 = vrot.lane.b32.xlu0 %v646, 64
  %v649 = vpop.permute.xlu0 %648
  %v651 = vmul.f32 %v634, %v649
  %653 = vrot.lane.b32.xlu0 %v651, 32
  %v654 = vpop.permute.xlu0 %653
  %v655 = vsel %vm114, %v654, 0
  %657 = vmatprep.subr.mxu0 0.0
  %658 = vmatpush1.msra.mxu0 %v20
  %659 = vmatprep.subr.mxu0 0.0
  %660 = vmatpush1.msra.mxu0 %v21
  %661 = vmatprep.subr.mxu0 0.0
  %662 = vmatpush1.msra.mxu0 %v22
  %663 = vmatprep.subr.mxu0 0.0
  %664 = vmatpush1.msra.mxu0 %v23
  %665 = vmatprep.subr.mxu0 0.0
  %666 = vmatpush1.msra.mxu0 0.0
  %667 = vmatprep.subr.mxu0 0.0
  %668 = vmatpush1.msra.mxu0 0.0
  %669 = vmatprep.subr.mxu0 0.0
  %670 = vmatpush1.msra.mxu0 0.0
  %671 = vmatprep.subr.mxu0 0.0
  %672 = vmatpush1.msra.mxu0 0.0
  %673 = vmatprep.subr.mxu0 0.0
  %674 = vmatpush1.msra.mxu0 0.0
  %675 = vmatprep.subr.mxu0 0.0
  %676 = vmatpush1.msra.mxu0 0.0
  %677 = vmatprep.subr.mxu0 0.0
  %678 = vmatpush1.msra.mxu0 0.0
  %679 = vmatprep.subr.mxu0 0.0
  %680 = vmatpush1.msra.mxu0 0.0
  %681 = vmatprep.subr.mxu0 0.0
  %682 = vmatpush1.msra.mxu0 0.0
  %683 = vmatprep.subr.mxu0 0.0
  %684 = vmatpush1.msra.mxu0 0.0
  %685 = vmatprep.subr.mxu0 0.0
  %686 = vmatpush1.msra.mxu0 0.0
  %687 = vmatprep.subr.mxu0 0.0
  %688 = vmatpush1.msra.mxu0 0.0
  %689 = vmatprep.subr.mxu0 0.0
  %690 = vmatpush1.msra.mxu0 0.0
  %691 = vmatprep.subr.mxu0 0.0
  %692 = vmatpush1.msra.mxu0 0.0
  %693 = vmatprep.subr.mxu0 0.0
  %694 = vmatpush1.msra.mxu0 0.0
  %695 = vmatprep.subr.mxu0 0.0
  %696 = vmatpush1.msra.mxu0 0.0
  %697 = vmatprep.subr.mxu0 0.0
  %698 = vmatpush1.msra.mxu0 0.0
  %699 = vmatprep.subr.mxu0 0.0
  %700 = vmatpush1.msra.mxu0 0.0
  %701 = vmatprep.subr.mxu0 0.0
  %702 = vmatpush1.msra.mxu0 0.0
  %703 = vmatprep.subr.mxu0 0.0
  %704 = vmatpush1.msra.mxu0 0.0
  %705 = vmatprep.subr.mxu0 0.0
  %706 = vmatpush1.msra.mxu0 0.0
  %707 = vmatprep.subr.mxu0 0.0
  %708 = vmatpush1.msra.mxu0 0.0
  %709 = vmatprep.subr.mxu0 0.0
  %710 = vmatpush1.msra.mxu0 0.0
  %711 = vmatprep.subr.mxu0 0.0
  %712 = vmatpush1.msra.mxu0 0.0
  %713 = vmatprep.subr.mxu0 0.0
  %714 = vmatpush1.msra.mxu0 0.0
  %715 = vmatprep.subr.mxu0 0.0
  %716 = vmatpush1.msra.mxu0 0.0
  %717 = vmatprep.subr.mxu0 0.0
  %718 = vmatpush1.msra.mxu0 0.0
  %719 = vmatprep.subr.mxu0 0.0
  %720 = vmatpush1.msra.mxu0 0.0
  %721 = vmatprep.mubr.f32.mxu0 0.0
  %722 = vmatmul.mubr.f32.gmra.mrb[0].mxu0 %v655
  %v723 = vpop.f32.mrb[0].mxu0
  %v724 = vadd.f32 %v33, %v723
  %v725 = vpop.f32.mrb[0].mxu0
  %726 = vdwg.mxu0
  %s727 = scalar_lea.vmem %s0, 16
  %v728 = vld [vmem:[%s727] sm:$0xff]
  %v730 = vsel %vm40, %v728, 0
  %732 = vmatprep.subr.mxu0 0.0
  %733 = vmatpush1.msra.mxu0 %v11
  %734 = vmatprep.subr.mxu0 0.0
  %735 = vmatpush1.msra.mxu0 0.0
  %736 = vmatprep.subr.mxu0 0.0
  %737 = vmatpush1.msra.mxu0 0.0
  %738 = vmatprep.subr.mxu0 0.0
  %739 = vmatpush1.msra.mxu0 0.0
  %740 = vmatprep.subr.mxu0 0.0
  %741 = vmatpush1.msra.mxu0 0.0
  %742 = vmatprep.subr.mxu0 0.0
  %743 = vmatpush1.msra.mxu0 0.0
  %744 = vmatprep.subr.mxu0 0.0
  %745 = vmatpush1.msra.mxu0 0.0
  %746 = vmatprep.subr.mxu0 0.0
  %747 = vmatpush1.msra.mxu0 0.0
  %748 = vmatprep.subr.mxu0 0.0
  %749 = vmatpush1.msra.mxu0 0.0
  %750 = vmatprep.subr.mxu0 0.0
  %751 = vmatpush1.msra.mxu0 0.0
  %752 = vmatprep.subr.mxu0 0.0
  %753 = vmatpush1.msra.mxu0 0.0
  %754 = vmatprep.subr.mxu0 0.0
  %755 = vmatpush1.msra.mxu0 0.0
  %756 = vmatprep.subr.mxu0 0.0
  %757 = vmatpush1.msra.mxu0 0.0
  %758 = vmatprep.subr.mxu0 0.0
  %759 = vmatpush1.msra.mxu0 0.0
  %760 = vmatprep.subr.mxu0 0.0
  %761 = vmatpush1.msra.mxu0 0.0
  %762 = vmatprep.subr.mxu0 0.0
  %763 = vmatpush1.msra.mxu0 0.0
  %764 = vmatprep.subr.mxu0 0.0
  %765 = vmatpush1.msra.mxu0 0.0
  %766 = vmatprep.subr.mxu0 0.0
  %767 = vmatpush1.msra.mxu0 0.0
  %768 = vmatprep.subr.mxu0 0.0
  %769 = vmatpush1.msra.mxu0 0.0
  %770 = vmatprep.subr.mxu0 0.0
  %771 = vmatpush1.msra.mxu0 0.0
  %772 = vmatprep.subr.mxu0 0.0
  %773 = vmatpush1.msra.mxu0 0.0
  %774 = vmatprep.subr.mxu0 0.0
  %775 = vmatpush1.msra.mxu0 0.0
  %776 = vmatprep.subr.mxu0 0.0
  %777 = vmatpush1.msra.mxu0 0.0
  %778 = vmatprep.subr.mxu0 0.0
  %779 = vmatpush1.msra.mxu0 0.0
  %780 = vmatprep.subr.mxu0 0.0
  %781 = vmatpush1.msra.mxu0 0.0
  %782 = vmatprep.subr.mxu0 0.0
  %783 = vmatpush1.msra.mxu0 0.0
  %784 = vmatprep.subr.mxu0 0.0
  %785 = vmatpush1.msra.mxu0 0.0
  %786 = vmatprep.subr.mxu0 0.0
  %787 = vmatpush1.msra.mxu0 0.0
  %788 = vmatprep.subr.mxu0 0.0
  %789 = vmatpush1.msra.mxu0 0.0
  %790 = vmatprep.subr.mxu0 0.0
  %791 = vmatpush1.msra.mxu0 0.0
  %792 = vmatprep.subr.mxu0 0.0
  %793 = vmatpush1.msra.mxu0 0.0
  %794 = vmatprep.subr.mxu0 0.0
  %795 = vmatpush1.msra.mxu0 0.0
  %796 = vmatprep.mubr.f32.mxu0 0.0
  %797 = vmatmul.mubr.f32.gmra.mrb[0].mxu0 %v730
  %v798 = vpop.f32.mrb[0].mxu0
  %v799 = vadd.f32 %v28, %v798
  %v800 = vpop.f32.mrb[0].mxu0
  %801 = vdwg.mxu0
  %802 = vmatprep.subr.mxu0 0.0
  %803 = vmatpush1.msra.mxu0 %v12
  %804 = vmatprep.subr.mxu0 0.0
  %805 = vmatpush1.msra.mxu0 %v13
  %806 = vmatprep.subr.mxu0 0.0
  %807 = vmatpush1.msra.mxu0 %v14
  %808 = vmatprep.subr.mxu0 0.0
  %809 = vmatpush1.msra.mxu0 %v15
  %810 = vmatprep.subr.mxu0 0.0
  %811 = vmatpush1.msra.mxu0 0.0
  %812 = vmatprep.subr.mxu0 0.0
  %813 = vmatpush1.msra.mxu0 0.0
  %814 = vmatprep.subr.mxu0 0.0
  %815 = vmatpush1.msra.mxu0 0.0
  %816 = vmatprep.subr.mxu0 0.0
  %817 = vmatpush1.msra.mxu0 0.0
  %818 = vmatprep.subr.mxu0 0.0
  %819 = vmatpush1.msra.mxu0 0.0
  %820 = vmatprep.subr.mxu0 0.0
  %821 = vmatpush1.msra.mxu0 0.0
  %822 = vmatprep.subr.mxu0 0.0
  %823 = vmatpush1.msra.mxu0 0.0
  %824 = vmatprep.subr.mxu0 0.0
  %825 = vmatpush1.msra.mxu0 0.0
  %826 = vmatprep.subr.mxu0 0.0
  %827 = vmatpush1.msra.mxu0 0.0
  %828 = vmatprep.subr.mxu0 0.0
  %829 = vmatpush1.msra.mxu0 0.0
  %830 = vmatprep.subr.mxu0 0.0
  %831 = vmatpush1.msra.mxu0 0.0
  %832 = vmatprep.subr.mxu0 0.0
  %833 = vmatpush1.msra.mxu0 0.0
  %834 = vmatprep.subr.mxu0 0.0
  %835 = vmatpush1.msra.mxu0 0.0
  %836 = vmatprep.subr.mxu0 0.0
  %837 = vmatpush1.msra.mxu0 0.0
  %838 = vmatprep.subr.mxu0 0.0
  %839 = vmatpush1.msra.mxu0 0.0
  %840 = vmatprep.subr.mxu0 0.0
  %841 = vmatpush1.msra.mxu0 0.0
  %842 = vmatprep.subr.mxu0 0.0
  %843 = vmatpush1.msra.mxu0 0.0
  %844 = vmatprep.subr.mxu0 0.0
  %845 = vmatpush1.msra.mxu0 0.0
  %846 = vmatprep.subr.mxu0 0.0
  %847 = vmatpush1.msra.mxu0 0.0
  %848 = vmatprep.subr.mxu0 0.0
  %849 = vmatpush1.msra.mxu0 0.0
  %850 = vmatprep.subr.mxu0 0.0
  %851 = vmatpush1.msra.mxu0 0.0
  %852 = vmatprep.subr.mxu0 0.0
  %853 = vmatpush1.msra.mxu0 0.0
  %854 = vmatprep.subr.mxu0 0.0
  %855 = vmatpush1.msra.mxu0 0.0
  %856 = vmatprep.subr.mxu0 0.0
  %857 = vmatpush1.msra.mxu0 0.0
  %858 = vmatprep.subr.mxu0 0.0
  %859 = vmatpush1.msra.mxu0 0.0
  %860 = vmatprep.subr.mxu0 0.0
  %861 = vmatpush1.msra.mxu0 0.0
  %862 = vmatprep.subr.mxu0 0.0
  %863 = vmatpush1.msra.mxu0 0.0
  %864 = vmatprep.subr.mxu0 0.0
  %865 = vmatpush1.msra.mxu0 0.0
  %866 = vmatprep.mubr.f32.mxu0 0.0
  %867 = vmatmul.mubr.f32.gmra.mrb[0].mxu0 %v557
  %v868 = vpop.f32.mrb[0].mxu0
  %v869 = vadd.f32 0.0, %v868
  %v870 = vpop.f32.mrb[0].mxu0
  %871 = vdwg.mxu0
  %v872 = vadd.f32 %v799, %v869
  %v873 = vmul.f32 %v872, 0.5
  %v874 = vsel %vm38, %v872, %v873
  %v875 = vtanh.pop %v874
  %v876 = vmul.f32 %v875, 0.5
  %v877 = vadd.f32 %v876, 0.5
  %v878 = vsel %vm38, %v875, %v877
  %v879 = vmul.f32 %v878, %v547
  %881 = vrot.lane.b32.xlu0 %v878, 64
  %v882 = vpop.permute.xlu0 %881
  %v884 = vmul.f32 %v878, %v882
  %886 = vrot.lane.b32.xlu0 %v884, 32
  %v887 = vpop.permute.xlu0 %886
  %v889 = vadd.f32 %v879, %v887
  %v890 = vtanh.pop %v889
  %892 = vrot.lane.b32.xlu0 %v890, 64
  %v893 = vpop.permute.xlu0 %892
  %v895 = vmul.f32 %v878, %v893
  %897 = vrot.lane.b32.xlu0 %v895, 32
  %v898 = vpop.permute.xlu0 %897
  %v899 = vsel %vm114, %v898, 0
  %901 = vmatprep.subr.mxu0 0.0
  %902 = vmatpush1.msra.mxu0 %v16
  %903 = vmatprep.subr.mxu0 0.0
  %904 = vmatpush1.msra.mxu0 %v17
  %905 = vmatprep.subr.mxu0 0.0
  %906 = vmatpush1.msra.mxu0 %v18
  %907 = vmatprep.subr.mxu0 0.0
  %908 = vmatpush1.msra.mxu0 %v19
  %909 = vmatprep.subr.mxu0 0.0
  %910 = vmatpush1.msra.mxu0 0.0
  %911 = vmatprep.subr.mxu0 0.0
  %912 = vmatpush1.msra.mxu0 0.0
  %913 = vmatprep.subr.mxu0 0.0
  %914 = vmatpush1.msra.mxu0 0.0
  %915 = vmatprep.subr.mxu0 0.0
  %916 = vmatpush1.msra.mxu0 0.0
  %917 = vmatprep.subr.mxu0 0.0
  %918 = vmatpush1.msra.mxu0 0.0
  %919 = vmatprep.subr.mxu0 0.0
  %920 = vmatpush1.msra.mxu0 0.0
  %921 = vmatprep.subr.mxu0 0.0
  %922 = vmatpush1.msra.mxu0 0.0
  %923 = vmatprep.subr.mxu0 0.0
  %924 = vmatpush1.msra.mxu0 0.0
  %925 = vmatprep.subr.mxu0 0.0
  %926 = vmatpush1.msra.mxu0 0.0
  %927 = vmatprep.subr.mxu0 0.0
  %928 = vmatpush1.msra.mxu0 0.0
  %929 = vmatprep.subr.mxu0 0.0
  %930 = vmatpush1.msra.mxu0 0.0
  %931 = vmatprep.subr.mxu0 0.0
  %932 = vmatpush1.msra.mxu0 0.0
  %933 = vmatprep.subr.mxu0 0.0
  %934 = vmatpush1.msra.mxu0 0.0
  %935 = vmatprep.subr.mxu0 0.0
  %936 = vmatpush1.msra.mxu0 0.0
  %937 = vmatprep.subr.mxu0 0.0
  %938 = vmatpush1.msra.mxu0 0.0
  %939 = vmatprep.subr.mxu0 0.0
  %940 = vmatpush1.msra.mxu0 0.0
  %941 = vmatprep.subr.mxu0 0.0
  %942 = vmatpush1.msra.mxu0 0.0
  %943 = vmatprep.subr.mxu0 0.0
  %944 = vmatpush1.msra.mxu0 0.0
  %945 = vmatprep.subr.mxu0 0.0
  %946 = vmatpush1.msra.mxu0 0.0
  %947 = vmatprep.subr.mxu0 0.0
  %948 = vmatpush1.msra.mxu0 0.0
  %949 = vmatprep.subr.mxu0 0.0
  %950 = vmatpush1.msra.mxu0 0.0
  %951 = vmatprep.subr.mxu0 0.0
  %952 = vmatpush1.msra.mxu0 0.0
  %953 = vmatprep.subr.mxu0 0.0
  %954 = vmatpush1.msra.mxu0 0.0
  %955 = vmatprep.subr.mxu0 0.0
  %956 = vmatpush1.msra.mxu0 0.0
  %957 = vmatprep.subr.mxu0 0.0
  %958 = vmatpush1.msra.mxu0 0.0
  %959 = vmatprep.subr.mxu0 0.0
  %960 = vmatpush1.msra.mxu0 0.0
  %961 = vmatprep.subr.mxu0 0.0
  %962 = vmatpush1.msra.mxu0 0.0
  %963 = vmatprep.subr.mxu0 0.0
  %964 = vmatpush1.msra.mxu0 0.0
  %965 = vmatprep.mubr.f32.mxu0 0.0
  %966 = vmatmul.mubr.f32.gmra.mrb[0].mxu0 %v899
  %v967 = vpop.f32.mrb[0].mxu0
  %v968 = vadd.f32 %v724, %v967
  %v969 = vpop.f32.mrb[0].mxu0
  %970 = vdwg.mxu0
  %v971 = vmul.f32 %v968, 0.5
  %v972 = vsel %vm38, %v968, %v971
  %v973 = vtanh.pop %v972
  %v974 = vmul.f32 %v973, 0.5
  %v975 = vadd.f32 %v974, 0.5
  %v976 = vsel %vm38, %v973, %v975
  %v977 = vmul.f32 %v976, %v645
  %979 = vrot.lane.b32.xlu0 %v976, 64
  %v980 = vpop.permute.xlu0 %979
  %v982 = vmul.f32 %v976, %v980
  %984 = vrot.lane.b32.xlu0 %v982, 32
  %v985 = vpop.permute.xlu0 %984
  %v987 = vadd.f32 %v977, %v985
  %v988 = vtanh.pop %v987
  %990 = vrot.lane.b32.xlu0 %v988, 64
  %v991 = vpop.permute.xlu0 %990
  %v993 = vmul.f32 %v976, %v991
  %995 = vrot.lane.b32.xlu0 %v993, 32
  %v996 = vpop.permute.xlu0 %995
  %v997 = vsel %vm114, %v996, 0
  %999 = vmatprep.subr.mxu0 0.0
  %1000 = vmatpush1.msra.mxu0 %v20
  %1001 = vmatprep.subr.mxu0 0.0
  %1002 = vmatpush1.msra.mxu0 %v21
  %1003 = vmatprep.subr.mxu0 0.0
  %1004 = vmatpush1.msra.mxu0 %v22
  %1005 = vmatprep.subr.mxu0 0.0
  %1006 = vmatpush1.msra.mxu0 %v23
  %1007 = vmatprep.subr.mxu0 0.0
  %1008 = vmatpush1.msra.mxu0 0.0
  %1009 = vmatprep.subr.mxu0 0.0
  %1010 = vmatpush1.msra.mxu0 0.0
  %1011 = vmatprep.subr.mxu0 0.0
  %1012 = vmatpush1.msra.mxu0 0.0
  %1013 = vmatprep.subr.mxu0 0.0
  %1014 = vmatpush1.msra.mxu0 0.0
  %1015 = vmatprep.subr.mxu0 0.0
  %1016 = vmatpush1.msra.mxu0 0.0
  %1017 = vmatprep.subr.mxu0 0.0
  %1018 = vmatpush1.msra.mxu0 0.0
  %1019 = vmatprep.subr.mxu0 0.0
  %1020 = vmatpush1.msra.mxu0 0.0
  %1021 = vmatprep.subr.mxu0 0.0
  %1022 = vmatpush1.msra.mxu0 0.0
  %1023 = vmatprep.subr.mxu0 0.0
  %1024 = vmatpush1.msra.mxu0 0.0
  %1025 = vmatprep.subr.mxu0 0.0
  %1026 = vmatpush1.msra.mxu0 0.0
  %1027 = vmatprep.subr.mxu0 0.0
  %1028 = vmatpush1.msra.mxu0 0.0
  %1029 = vmatprep.subr.mxu0 0.0
  %1030 = vmatpush1.msra.mxu0 0.0
  %1031 = vmatprep.subr.mxu0 0.0
  %1032 = vmatpush1.msra.mxu0 0.0
  %1033 = vmatprep.subr.mxu0 0.0
  %1034 = vmatpush1.msra.mxu0 0.0
  %1035 = vmatprep.subr.mxu0 0.0
  %1036 = vmatpush1.msra.mxu0 0.0
  %1037 = vmatprep.subr.mxu0 0.0
  %1038 = vmatpush1.msra.mxu0 0.0
  %1039 = vmatprep.subr.mxu0 0.0
  %1040 = vmatpush1.msra.mxu0 0.0
  %1041 = vmatprep.subr.mxu0 0.0
  %1042 = vmatpush1.msra.mxu0 0.0
  %1043 = vmatprep.subr.mxu0 0.0
  %1044 = vmatpush1.msra.mxu0 0.0
  %1045 = vmatprep.subr.mxu0 0.0
  %1046 = vmatpush1.msra.mxu0 0.0
  %1047 = vmatprep.subr.mxu0 0.0
  %1048 = vmatpush1.msra.mxu0 0.0
  %1049 = vmatprep.subr.mxu0 0.0
  %1050 = vmatpush1.msra.mxu0 0.0
  %1051 = vmatprep.subr.mxu0 0.0
  %1052 = vmatpush1.msra.mxu0 0.0
  %1053 = vmatprep.subr.mxu0 0.0
  %1054 = vmatpush1.msra.mxu0 0.0
  %1055 = vmatprep.subr.mxu0 0.0
  %1056 = vmatpush1.msra.mxu0 0.0
  %1057 = vmatprep.subr.mxu0 0.0
  %1058 = vmatpush1.msra.mxu0 0.0
  %1059 = vmatprep.subr.mxu0 0.0
  %1060 = vmatpush1.msra.mxu0 0.0
  %1061 = vmatprep.subr.mxu0 0.0
  %1062 = vmatpush1.msra.mxu0 0.0
  %1063 = vmatprep.mubr.f32.mxu0 0.0
  %1064 = vmatmul.mubr.f32.gmra.mrb[0].mxu0 %v997
  %v1065 = vpop.f32.mrb[0].mxu0
  %v1066 = vadd.f32 %v33, %v1065
  %v1067 = vpop.f32.mrb[0].mxu0
  %1068 = vdwg.mxu0
  %s1069 = scalar_lea.vmem %s0, 24
  %v1070 = vld [vmem:[%s1069] sm:$0xff]
  %v1072 = vsel %vm40, %v1070, 0
  %1074 = vmatprep.subr.mxu0 0.0
  %1075 = vmatpush1.msra.mxu0 %v11
  %1076 = vmatprep.subr.mxu0 0.0
  %1077 = vmatpush1.msra.mxu0 0.0
  %1078 = vmatprep.subr.mxu0 0.0
  %1079 = vmatpush1.msra.mxu0 0.0
  %1080 = vmatprep.subr.mxu0 0.0
  %1081 = vmatpush1.msra.mxu0 0.0
  %1082 = vmatprep.subr.mxu0 0.0
  %1083 = vmatpush1.msra.mxu0 0.0
  %1084 = vmatprep.subr.mxu0 0.0
  %1085 = vmatpush1.msra.mxu0 0.0
  %1086 = vmatprep.subr.mxu0 0.0
  %1087 = vmatpush1.msra.mxu0 0.0
  %1088 = vmatprep.subr.mxu0 0.0
  %1089 = vmatpush1.msra.mxu0 0.0
  %1090 = vmatprep.subr.mxu0 0.0
  %1091 = vmatpush1.msra.mxu0 0.0
  %1092 = vmatprep.subr.mxu0 0.0
  %1093 = vmatpush1.msra.mxu0 0.0
  %1094 = vmatprep.subr.mxu0 0.0
  %1095 = vmatpush1.msra.mxu0 0.0
  %1096 = vmatprep.subr.mxu0 0.0
  %1097 = vmatpush1.msra.mxu0 0.0
  %1098 = vmatprep.subr.mxu0 0.0
  %1099 = vmatpush1.msra.mxu0 0.0
  %1100 = vmatprep.subr.mxu0 0.0
  %1101 = vmatpush1.msra.mxu0 0.0
  %1102 = vmatprep.subr.mxu0 0.0
  %1103 = vmatpush1.msra.mxu0 0.0
  %1104 = vmatprep.subr.mxu0 0.0
  %1105 = vmatpush1.msra.mxu0 0.0
  %1106 = vmatprep.subr.mxu0 0.0
  %1107 = vmatpush1.msra.mxu0 0.0
  %1108 = vmatprep.subr.mxu0 0.0
  %1109 = vmatpush1.msra.mxu0 0.0
  %1110 = vmatprep.subr.mxu0 0.0
  %1111 = vmatpush1.msra.mxu0 0.0
  %1112 = vmatprep.subr.mxu0 0.0
  %1113 = vmatpush1.msra.mxu0 0.0
  %1114 = vmatprep.subr.mxu0 0.0
  %1115 = vmatpush1.msra.mxu0 0.0
  %1116 = vmatprep.subr.mxu0 0.0
  %1117 = vmatpush1.msra.mxu0 0.0
  %1118 = vmatprep.subr.mxu0 0.0
  %1119 = vmatpush1.msra.mxu0 0.0
  %1120 = vmatprep.subr.mxu0 0.0
  %1121 = vmatpush1.msra.mxu0 0.0
  %1122 = vmatprep.subr.mxu0 0.0
  %1123 = vmatpush1.msra.mxu0 0.0
  %1124 = vmatprep.subr.mxu0 0.0
  %1125 = vmatpush1.msra.mxu0 0.0
  %1126 = vmatprep.subr.mxu0 0.0
  %1127 = vmatpush1.msra.mxu0 0.0
  %1128 = vmatprep.subr.mxu0 0.0
  %1129 = vmatpush1.msra.mxu0 0.0
  %1130 = vmatprep.subr.mxu0 0.0
  %1131 = vmatpush1.msra.mxu0 0.0
  %1132 = vmatprep.subr.mxu0 0.0
  %1133 = vmatpush1.msra.mxu0 0.0
  %1134 = vmatprep.subr.mxu0 0.0
  %1135 = vmatpush1.msra.mxu0 0.0
  %1136 = vmatprep.subr.mxu0 0.0
  %1137 = vmatpush1.msra.mxu0 0.0
  %1138 = vmatprep.mubr.f32.mxu0 0.0
  %1139 = vmatmul.mubr.f32.gmra.mrb[0].mxu0 %v1072
  %v1140 = vpop.f32.mrb[0].mxu0
  %v1141 = vadd.f32 %v28, %v1140
  %v1142 = vpop.f32.mrb[0].mxu0
  %1143 = vdwg.mxu0
  %1144 = vmatprep.subr.mxu0 0.0
  %1145 = vmatpush1.msra.mxu0 %v12
  %1146 = vmatprep.subr.mxu0 0.0
  %1147 = vmatpush1.msra.mxu0 %v13
  %1148 = vmatprep.subr.mxu0 0.0
  %1149 = vmatpush1.msra.mxu0 %v14
  %1150 = vmatprep.subr.mxu0 0.0
  %1151 = vmatpush1.msra.mxu0 %v15
  %1152 = vmatprep.subr.mxu0 0.0
  %1153 = vmatpush1.msra.mxu0 0.0
  %1154 = vmatprep.subr.mxu0 0.0
  %1155 = vmatpush1.msra.mxu0 0.0
  %1156 = vmatprep.subr.mxu0 0.0
  %1157 = vmatpush1.msra.mxu0 0.0
  %1158 = vmatprep.subr.mxu0 0.0
  %1159 = vmatpush1.msra.mxu0 0.0
  %1160 = vmatprep.subr.mxu0 0.0
  %1161 = vmatpush1.msra.mxu0 0.0
  %1162 = vmatprep.subr.mxu0 0.0
  %1163 = vmatpush1.msra.mxu0 0.0
  %1164 = vmatprep.subr.mxu0 0.0
  %1165 = vmatpush1.msra.mxu0 0.0
  %1166 = vmatprep.subr.mxu0 0.0
  %1167 = vmatpush1.msra.mxu0 0.0
  %1168 = vmatprep.subr.mxu0 0.0
  %1169 = vmatpush1.msra.mxu0 0.0
  %1170 = vmatprep.subr.mxu0 0.0
  %1171 = vmatpush1.msra.mxu0 0.0
  %1172 = vmatprep.subr.mxu0 0.0
  %1173 = vmatpush1.msra.mxu0 0.0
  %1174 = vmatprep.subr.mxu0 0.0
  %1175 = vmatpush1.msra.mxu0 0.0
  %1176 = vmatprep.subr.mxu0 0.0
  %1177 = vmatpush1.msra.mxu0 0.0
  %1178 = vmatprep.subr.mxu0 0.0
  %1179 = vmatpush1.msra.mxu0 0.0
  %1180 = vmatprep.subr.mxu0 0.0
  %1181 = vmatpush1.msra.mxu0 0.0
  %1182 = vmatprep.subr.mxu0 0.0
  %1183 = vmatpush1.msra.mxu0 0.0
  %1184 = vmatprep.subr.mxu0 0.0
  %1185 = vmatpush1.msra.mxu0 0.0
  %1186 = vmatprep.subr.mxu0 0.0
  %1187 = vmatpush1.msra.mxu0 0.0
  %1188 = vmatprep.subr.mxu0 0.0
  %1189 = vmatpush1.msra.mxu0 0.0
  %1190 = vmatprep.subr.mxu0 0.0
  %1191 = vmatpush1.msra.mxu0 0.0
  %1192 = vmatprep.subr.mxu0 0.0
  %1193 = vmatpush1.msra.mxu0 0.0
  %1194 = vmatprep.subr.mxu0 0.0
  %1195 = vmatpush1.msra.mxu0 0.0
  %1196 = vmatprep.subr.mxu0 0.0
  %1197 = vmatpush1.msra.mxu0 0.0
  %1198 = vmatprep.subr.mxu0 0.0
  %1199 = vmatpush1.msra.mxu0 0.0
  %1200 = vmatprep.subr.mxu0 0.0
  %1201 = vmatpush1.msra.mxu0 0.0
  %1202 = vmatprep.subr.mxu0 0.0
  %1203 = vmatpush1.msra.mxu0 0.0
  %1204 = vmatprep.subr.mxu0 0.0
  %1205 = vmatpush1.msra.mxu0 0.0
  %1206 = vmatprep.subr.mxu0 0.0
  %1207 = vmatpush1.msra.mxu0 0.0
  %1208 = vmatprep.mubr.f32.mxu0 0.0
  %1209 = vmatmul.mubr.f32.gmra.mrb[0].mxu0 %v899
  %v1210 = vpop.f32.mrb[0].mxu0
  %v1211 = vadd.f32 0.0, %v1210
  %v1212 = vpop.f32.mrb[0].mxu0
  %1213 = vdwg.mxu0
  %v1214 = vadd.f32 %v1141, %v1211
  %v1215 = vmul.f32 %v1214, 0.5
  %v1216 = vsel %vm38, %v1214, %v1215
  %v1217 = vtanh.pop %v1216
  %v1218 = vmul.f32 %v1217, 0.5
  %v1219 = vadd.f32 %v1218, 0.5
  %v1220 = vsel %vm38, %v1217, %v1219
  %v1221 = vmul.f32 %v1220, %v889
  %1223 = vrot.lane.b32.xlu0 %v1220, 64
  %v1224 = vpop.permute.xlu0 %1223
  %v1226 = vmul.f32 %v1220, %v1224
  %1228 = vrot.lane.b32.xlu0 %v1226, 32
  %v1229 = vpop.permute.xlu0 %1228
  %v1231 = vadd.f32 %v1221, %v1229
  %v1232 = vtanh.pop %v1231
  %1234 = vrot.lane.b32.xlu0 %v1232, 64
  %v1235 = vpop.permute.xlu0 %1234
  %v1237 = vmul.f32 %v1220, %v1235
  %1239 = vrot.lane.b32.xlu0 %v1237, 32
  %v1240 = vpop.permute.xlu0 %1239
  %v1241 = vsel %vm114, %v1240, 0
  %1243 = vmatprep.subr.mxu0 0.0
  %1244 = vmatpush1.msra.mxu0 %v16
  %1245 = vmatprep.subr.mxu0 0.0
  %1246 = vmatpush1.msra.mxu0 %v17
  %1247 = vmatprep.subr.mxu0 0.0
  %1248 = vmatpush1.msra.mxu0 %v18
  %1249 = vmatprep.subr.mxu0 0.0
  %1250 = vmatpush1.msra.mxu0 %v19
  %1251 = vmatprep.subr.mxu0 0.0
  %1252 = vmatpush1.msra.mxu0 0.0
  %1253 = vmatprep.subr.mxu0 0.0
  %1254 = vmatpush1.msra.mxu0 0.0
  %1255 = vmatprep.subr.mxu0 0.0
  %1256 = vmatpush1.msra.mxu0 0.0
  %1257 = vmatprep.subr.mxu0 0.0
  %1258 = vmatpush1.msra.mxu0 0.0
  %1259 = vmatprep.subr.mxu0 0.0
  %1260 = vmatpush1.msra.mxu0 0.0
  %1261 = vmatprep.subr.mxu0 0.0
  %1262 = vmatpush1.msra.mxu0 0.0
  %1263 = vmatprep.subr.mxu0 0.0
  %1264 = vmatpush1.msra.mxu0 0.0
  %1265 = vmatprep.subr.mxu0 0.0
  %1266 = vmatpush1.msra.mxu0 0.0
  %1267 = vmatprep.subr.mxu0 0.0
  %1268 = vmatpush1.msra.mxu0 0.0
  %1269 = vmatprep.subr.mxu0 0.0
  %1270 = vmatpush1.msra.mxu0 0.0
  %1271 = vmatprep.subr.mxu0 0.0
  %1272 = vmatpush1.msra.mxu0 0.0
  %1273 = vmatprep.subr.mxu0 0.0
  %1274 = vmatpush1.msra.mxu0 0.0
  %1275 = vmatprep.subr.mxu0 0.0
  %1276 = vmatpush1.msra.mxu0 0.0
  %1277 = vmatprep.subr.mxu0 0.0
  %1278 = vmatpush1.msra.mxu0 0.0
  %1279 = vmatprep.subr.mxu0 0.0
  %1280 = vmatpush1.msra.mxu0 0.0
  %1281 = vmatprep.subr.mxu0 0.0
  %1282 = vmatpush1.msra.mxu0 0.0
  %1283 = vmatprep.subr.mxu0 0.0
  %1284 = vmatpush1.msra.mxu0 0.0
  %1285 = vmatprep.subr.mxu0 0.0
  %1286 = vmatpush1.msra.mxu0 0.0
  %1287 = vmatprep.subr.mxu0 0.0
  %1288 = vmatpush1.msra.mxu0 0.0
  %1289 = vmatprep.subr.mxu0 0.0
  %1290 = vmatpush1.msra.mxu0 0.0
  %1291 = vmatprep.subr.mxu0 0.0
  %1292 = vmatpush1.msra.mxu0 0.0
  %1293 = vmatprep.subr.mxu0 0.0
  %1294 = vmatpush1.msra.mxu0 0.0
  %1295 = vmatprep.subr.mxu0 0.0
  %1296 = vmatpush1.msra.mxu0 0.0
  %1297 = vmatprep.subr.mxu0 0.0
  %1298 = vmatpush1.msra.mxu0 0.0
  %1299 = vmatprep.subr.mxu0 0.0
  %1300 = vmatpush1.msra.mxu0 0.0
  %1301 = vmatprep.subr.mxu0 0.0
  %1302 = vmatpush1.msra.mxu0 0.0
  %1303 = vmatprep.subr.mxu0 0.0
  %1304 = vmatpush1.msra.mxu0 0.0
  %1305 = vmatprep.subr.mxu0 0.0
  %1306 = vmatpush1.msra.mxu0 0.0
  %1307 = vmatprep.mubr.f32.mxu0 0.0
  %1308 = vmatmul.mubr.f32.gmra.mrb[0].mxu0 %v1241
  %v1309 = vpop.f32.mrb[0].mxu0
  %v1310 = vadd.f32 %v1066, %v1309
  %v1311 = vpop.f32.mrb[0].mxu0
  %1312 = vdwg.mxu0
  %v1313 = vmul.f32 %v1310, 0.5
  %v1314 = vsel %vm38, %v1310, %v1313
  %v1315 = vtanh.pop %v1314
  %v1316 = vmul.f32 %v1315, 0.5
  %v1317 = vadd.f32 %v1316, 0.5
  %v1318 = vsel %vm38, %v1315, %v1317
  %v1319 = vmul.f32 %v1318, %v987
  %1321 = vrot.lane.b32.xlu0 %v1318, 64
  %v1322 = vpop.permute.xlu0 %1321
  %v1324 = vmul.f32 %v1318, %v1322
  %1326 = vrot.lane.b32.xlu0 %v1324, 32
  %v1327 = vpop.permute.xlu0 %1326
  %v1329 = vadd.f32 %v1319, %v1327
  %v1330 = vtanh.pop %v1329
  %1332 = vrot.lane.b32.xlu0 %v1330, 64
  %v1333 = vpop.permute.xlu0 %1332
  %v1335 = vmul.f32 %v1318, %v1333
  %1337 = vrot.lane.b32.xlu0 %v1335, 32
  %v1338 = vpop.permute.xlu0 %1337
  %v1339 = vsel %vm114, %v1338, 0
  %1341 = vmatprep.subr.mxu0 0.0
  %1342 = vmatpush1.msra.mxu0 %v20
  %1343 = vmatprep.subr.mxu0 0.0
  %1344 = vmatpush1.msra.mxu0 %v21
  %1345 = vmatprep.subr.mxu0 0.0
  %1346 = vmatpush1.msra.mxu0 %v22
  %1347 = vmatprep.subr.mxu0 0.0
  %1348 = vmatpush1.msra.mxu0 %v23
  %1349 = vmatprep.subr.mxu0 0.0
  %1350 = vmatpush1.msra.mxu0 0.0
  %1351 = vmatprep.subr.mxu0 0.0
  %1352 = vmatpush1.msra.mxu0 0.0
  %1353 = vmatprep.subr.mxu0 0.0
  %1354 = vmatpush1.msra.mxu0 0.0
  %1355 = vmatprep.subr.mxu0 0.0
  %1356 = vmatpush1.msra.mxu0 0.0
  %1357 = vmatprep.subr.mxu0 0.0
  %1358 = vmatpush1.msra.mxu0 0.0
  %1359 = vmatprep.subr.mxu0 0.0
  %1360 = vmatpush1.msra.mxu0 0.0
  %1361 = vmatprep.subr.mxu0 0.0
  %1362 = vmatpush1.msra.mxu0 0.0
  %1363 = vmatprep.subr.mxu0 0.0
  %1364 = vmatpush1.msra.mxu0 0.0
  %1365 = vmatprep.subr.mxu0 0.0
  %1366 = vmatpush1.msra.mxu0 0.0
  %1367 = vmatprep.subr.mxu0 0.0
  %1368 = vmatpush1.msra.mxu0 0.0
  %1369 = vmatprep.subr.mxu0 0.0
  %1370 = vmatpush1.msra.mxu0 0.0
  %1371 = vmatprep.subr.mxu0 0.0
  %1372 = vmatpush1.msra.mxu0 0.0
  %1373 = vmatprep.subr.mxu0 0.0
  %1374 = vmatpush1.msra.mxu0 0.0
  %1375 = vmatprep.subr.mxu0 0.0
  %1376 = vmatpush1.msra.mxu0 0.0
  %1377 = vmatprep.subr.mxu0 0.0
  %1378 = vmatpush1.msra.mxu0 0.0
  %1379 = vmatprep.subr.mxu0 0.0
  %1380 = vmatpush1.msra.mxu0 0.0
  %1381 = vmatprep.subr.mxu0 0.0
  %1382 = vmatpush1.msra.mxu0 0.0
  %1383 = vmatprep.subr.mxu0 0.0
  %1384 = vmatpush1.msra.mxu0 0.0
  %1385 = vmatprep.subr.mxu0 0.0
  %1386 = vmatpush1.msra.mxu0 0.0
  %1387 = vmatprep.subr.mxu0 0.0
  %1388 = vmatpush1.msra.mxu0 0.0
  %1389 = vmatprep.subr.mxu0 0.0
  %1390 = vmatpush1.msra.mxu0 0.0
  %1391 = vmatprep.subr.mxu0 0.0
  %1392 = vmatpush1.msra.mxu0 0.0
  %1393 = vmatprep.subr.mxu0 0.0
  %1394 = vmatpush1.msra.mxu0 0.0
  %1395 = vmatprep.subr.mxu0 0.0
  %1396 = vmatpush1.msra.mxu0 0.0
  %1397 = vmatprep.subr.mxu0 0.0
  %1398 = vmatpush1.msra.mxu0 0.0
  %1399 = vmatprep.subr.mxu0 0.0
  %1400 = vmatpush1.msra.mxu0 0.0
  %1401 = vmatprep.subr.mxu0 0.0
  %1402 = vmatpush1.msra.mxu0 0.0
  %1403 = vmatprep.subr.mxu0 0.0
  %1404 = vmatpush1.msra.mxu0 0.0
  %1405 = vmatprep.mubr.f32.mxu0 0.0
  %1406 = vmatmul.mubr.f32.gmra.mrb[0].mxu0 %v1339
  %v1407 = vpop.f32.mrb[0].mxu0
  %v1408 = vadd.f32 %v33, %v1407
  %v1409 = vpop.f32.mrb[0].mxu0
  %1410 = vdwg.mxu0
  %s1411 = scalar_lea.vmem %s0, 32
  %v1412 = vld [vmem:[%s1411] sm:$0xff]
  %v1414 = vsel %vm40, %v1412, 0
  %1416 = vmatprep.subr.mxu0 0.0
  %1417 = vmatpush1.msra.mxu0 %v11
  %1418 = vmatprep.subr.mxu0 0.0
  %1419 = vmatpush1.msra.mxu0 0.0
  %1420 = vmatprep.subr.mxu0 0.0
  %1421 = vmatpush1.msra.mxu0 0.0
  %1422 = vmatprep.subr.mxu0 0.0
  %1423 = vmatpush1.msra.mxu0 0.0
  %1424 = vmatprep.subr.mxu0 0.0
  %1425 = vmatpush1.msra.mxu0 0.0
  %1426 = vmatprep.subr.mxu0 0.0
  %1427 = vmatpush1.msra.mxu0 0.0
  %1428 = vmatprep.subr.mxu0 0.0
  %1429 = vmatpush1.msra.mxu0 0.0
  %1430 = vmatprep.subr.mxu0 0.0
  %1431 = vmatpush1.msra.mxu0 0.0
  %1432 = vmatprep.subr.mxu0 0.0
  %1433 = vmatpush1.msra.mxu0 0.0
  %1434 = vmatprep.subr.mxu0 0.0
  %1435 = vmatpush1.msra.mxu0 0.0
  %1436 = vmatprep.subr.mxu0 0.0
  %1437 = vmatpush1.msra.mxu0 0.0
  %1438 = vmatprep.subr.mxu0 0.0
  %1439 = vmatpush1.msra.mxu0 0.0
  %1440 = vmatprep.subr.mxu0 0.0
  %1441 = vmatpush1.msra.mxu0 0.0
  %1442 = vmatprep.subr.mxu0 0.0
  %1443 = vmatpush1.msra.mxu0 0.0
  %1444 = vmatprep.subr.mxu0 0.0
  %1445 = vmatpush1.msra.mxu0 0.0
  %1446 = vmatprep.subr.mxu0 0.0
  %1447 = vmatpush1.msra.mxu0 0.0
  %1448 = vmatprep.subr.mxu0 0.0
  %1449 = vmatpush1.msra.mxu0 0.0
  %1450 = vmatprep.subr.mxu0 0.0
  %1451 = vmatpush1.msra.mxu0 0.0
  %1452 = vmatprep.subr.mxu0 0.0
  %1453 = vmatpush1.msra.mxu0 0.0
  %1454 = vmatprep.subr.mxu0 0.0
  %1455 = vmatpush1.msra.mxu0 0.0
  %1456 = vmatprep.subr.mxu0 0.0
  %1457 = vmatpush1.msra.mxu0 0.0
  %1458 = vmatprep.subr.mxu0 0.0
  %1459 = vmatpush1.msra.mxu0 0.0
  %1460 = vmatprep.subr.mxu0 0.0
  %1461 = vmatpush1.msra.mxu0 0.0
  %1462 = vmatprep.subr.mxu0 0.0
  %1463 = vmatpush1.msra.mxu0 0.0
  %1464 = vmatprep.subr.mxu0 0.0
  %1465 = vmatpush1.msra.mxu0 0.0
  %1466 = vmatprep.subr.mxu0 0.0
  %1467 = vmatpush1.msra.mxu0 0.0
  %1468 = vmatprep.subr.mxu0 0.0
  %1469 = vmatpush1.msra.mxu0 0.0
  %1470 = vmatprep.subr.mxu0 0.0
  %1471 = vmatpush1.msra.mxu0 0.0
  %1472 = vmatprep.subr.mxu0 0.0
  %1473 = vmatpush1.msra.mxu0 0.0
  %1474 = vmatprep.subr.mxu0 0.0
  %1475 = vmatpush1.msra.mxu0 0.0
  %1476 = vmatprep.subr.mxu0 0.0
  %1477 = vmatpush1.msra.mxu0 0.0
  %1478 = vmatprep.subr.mxu0 0.0
  %1479 = vmatpush1.msra.mxu0 0.0
  %1480 = vmatprep.mubr.f32.mxu0 0.0
  %1481 = vmatmul.mubr.f32.gmra.mrb[0].mxu0 %v1414
  %v1482 = vpop.f32.mrb[0].mxu0
  %v1483 = vadd.f32 %v28, %v1482
  %v1484 = vpop.f32.mrb[0].mxu0
  %1485 = vdwg.mxu0
  %1486 = vmatprep.subr.mxu0 0.0
  %1487 = vmatpush1.msra.mxu0 %v12
  %1488 = vmatprep.subr.mxu0 0.0
  %1489 = vmatpush1.msra.mxu0 %v13
  %1490 = vmatprep.subr.mxu0 0.0
  %1491 = vmatpush1.msra.mxu0 %v14
  %1492 = vmatprep.subr.mxu0 0.0
  %1493 = vmatpush1.msra.mxu0 %v15
  %1494 = vmatprep.subr.mxu0 0.0
  %1495 = vmatpush1.msra.mxu0 0.0
  %1496 = vmatprep.subr.mxu0 0.0
  %1497 = vmatpush1.msra.mxu0 0.0
  %1498 = vmatprep.subr.mxu0 0.0
  %1499 = vmatpush1.msra.mxu0 0.0
  %1500 = vmatprep.subr.mxu0 0.0
  %1501 = vmatpush1.msra.mxu0 0.0
  %1502 = vmatprep.subr.mxu0 0.0
  %1503 = vmatpush1.msra.mxu0 0.0
  %1504 = vmatprep.subr.mxu0 0.0
  %1505 = vmatpush1.msra.mxu0 0.0
  %1506 = vmatprep.subr.mxu0 0.0
  %1507 = vmatpush1.msra.mxu0 0.0
  %1508 = vmatprep.subr.mxu0 0.0
  %1509 = vmatpush1.msra.mxu0 0.0
  %1510 = vmatprep.subr.mxu0 0.0
  %1511 = vmatpush1.msra.mxu0 0.0
  %1512 = vmatprep.subr.mxu0 0.0
  %1513 = vmatpush1.msra.mxu0 0.0
  %1514 = vmatprep.subr.mxu0 0.0
  %1515 = vmatpush1.msra.mxu0 0.0
  %1516 = vmatprep.subr.mxu0 0.0
  %1517 = vmatpush1.msra.mxu0 0.0
  %1518 = vmatprep.subr.mxu0 0.0
  %1519 = vmatpush1.msra.mxu0 0.0
  %1520 = vmatprep.subr.mxu0 0.0
  %1521 = vmatpush1.msra.mxu0 0.0
  %1522 = vmatprep.subr.mxu0 0.0
  %1523 = vmatpush1.msra.mxu0 0.0
  %1524 = vmatprep.subr.mxu0 0.0
  %1525 = vmatpush1.msra.mxu0 0.0
  %1526 = vmatprep.subr.mxu0 0.0
  %1527 = vmatpush1.msra.mxu0 0.0
  %1528 = vmatprep.subr.mxu0 0.0
  %1529 = vmatpush1.msra.mxu0 0.0
  %1530 = vmatprep.subr.mxu0 0.0
  %1531 = vmatpush1.msra.mxu0 0.0
  %1532 = vmatprep.subr.mxu0 0.0
  %1533 = vmatpush1.msra.mxu0 0.0
  %1534 = vmatprep.subr.mxu0 0.0
  %1535 = vmatpush1.msra.mxu0 0.0
  %1536 = vmatprep.subr.mxu0 0.0
  %1537 = vmatpush1.msra.mxu0 0.0
  %1538 = vmatprep.subr.mxu0 0.0
  %1539 = vmatpush1.msra.mxu0 0.0
  %1540 = vmatprep.subr.mxu0 0.0
  %1541 = vmatpush1.msra.mxu0 0.0
  %1542 = vmatprep.subr.mxu0 0.0
  %1543 = vmatpush1.msra.mxu0 0.0
  %1544 = vmatprep.subr.mxu0 0.0
  %1545 = vmatpush1.msra.mxu0 0.0
  %1546 = vmatprep.subr.mxu0 0.0
  %1547 = vmatpush1.msra.mxu0 0.0
  %1548 = vmatprep.subr.mxu0 0.0
  %1549 = vmatpush1.msra.mxu0 0.0
  %1550 = vmatprep.mubr.f32.mxu0 0.0
  %1551 = vmatmul.mubr.f32.gmra.mrb[0].mxu0 %v1241
  %v1552 = vpop.f32.mrb[0].mxu0
  %v1553 = vadd.f32 0.0, %v1552
  %v1554 = vpop.f32.mrb[0].mxu0
  %1555 = vdwg.mxu0
  %v1556 = vadd.f32 %v1483, %v1553
  %v1557 = vmul.f32 %v1556, 0.5
  %v1558 = vsel %vm38, %v1556, %v1557
  %v1559 = vtanh.pop %v1558
  %v1560 = vmul.f32 %v1559, 0.5
  %v1561 = vadd.f32 %v1560, 0.5
  %v1562 = vsel %vm38, %v1559, %v1561
  %v1563 = vmul.f32 %v1562, %v1231
  %1565 = vrot.lane.b32.xlu0 %v1562, 64
  %v1566 = vpop.permute.xlu0 %1565
  %v1568 = vmul.f32 %v1562, %v1566
  %1570 = vrot.lane.b32.xlu0 %v1568, 32
  %v1571 = vpop.permute.xlu0 %1570
  %v1573 = vadd.f32 %v1563, %v1571
  %v1574 = vtanh.pop %v1573
  %1576 = vrot.lane.b32.xlu0 %v1574, 64
  %v1577 = vpop.permute.xlu0 %1576
  %v1579 = vmul.f32 %v1562, %v1577
  %1581 = vrot.lane.b32.xlu0 %v1579, 32
  %v1582 = vpop.permute.xlu0 %1581
  %v1583 = vsel %vm114, %v1582, 0
  %1585 = vmatprep.subr.mxu0 0.0
  %1586 = vmatpush1.msra.mxu0 %v16
  %1587 = vmatprep.subr.mxu0 0.0
  %1588 = vmatpush1.msra.mxu0 %v17
  %1589 = vmatprep.subr.mxu0 0.0
  %1590 = vmatpush1.msra.mxu0 %v18
  %1591 = vmatprep.subr.mxu0 0.0
  %1592 = vmatpush1.msra.mxu0 %v19
  %1593 = vmatprep.subr.mxu0 0.0
  %1594 = vmatpush1.msra.mxu0 0.0
  %1595 = vmatprep.subr.mxu0 0.0
  %1596 = vmatpush1.msra.mxu0 0.0
  %1597 = vmatprep.subr.mxu0 0.0
  %1598 = vmatpush1.msra.mxu0 0.0
  %1599 = vmatprep.subr.mxu0 0.0
  %1600 = vmatpush1.msra.mxu0 0.0
  %1601 = vmatprep.subr.mxu0 0.0
  %1602 = vmatpush1.msra.mxu0 0.0
  %1603 = vmatprep.subr.mxu0 0.0
  %1604 = vmatpush1.msra.mxu0 0.0
  %1605 = vmatprep.subr.mxu0 0.0
  %1606 = vmatpush1.msra.mxu0 0.0
  %1607 = vmatprep.subr.mxu0 0.0
  %1608 = vmatpush1.msra.mxu0 0.0
  %1609 = vmatprep.subr.mxu0 0.0
  %1610 = vmatpush1.msra.mxu0 0.0
  %1611 = vmatprep.subr.mxu0 0.0
  %1612 = vmatpush1.msra.mxu0 0.0
  %1613 = vmatprep.subr.mxu0 0.0
  %1614 = vmatpush1.msra.mxu0 0.0
  %1615 = vmatprep.subr.mxu0 0.0
  %1616 = vmatpush1.msra.mxu0 0.0
  %1617 = vmatprep.subr.mxu0 0.0
  %1618 = vmatpush1.msra.mxu0 0.0
  %1619 = vmatprep.subr.mxu0 0.0
  %1620 = vmatpush1.msra.mxu0 0.0
  %1621 = vmatprep.subr.mxu0 0.0
  %1622 = vmatpush1.msra.mxu0 0.0
  %1623 = vmatprep.subr.mxu0 0.0
  %1624 = vmatpush1.msra.mxu0 0.0
  %1625 = vmatprep.subr.mxu0 0.0
  %1626 = vmatpush1.msra.mxu0 0.0
  %1627 = vmatprep.subr.mxu0 0.0
  %1628 = vmatpush1.msra.mxu0 0.0
  %1629 = vmatprep.subr.mxu0 0.0
  %1630 = vmatpush1.msra.mxu0 0.0
  %1631 = vmatprep.subr.mxu0 0.0
  %1632 = vmatpush1.msra.mxu0 0.0
  %1633 = vmatprep.subr.mxu0 0.0
  %1634 = vmatpush1.msra.mxu0 0.0
  %1635 = vmatprep.subr.mxu0 0.0
  %1636 = vmatpush1.msra.mxu0 0.0
  %1637 = vmatprep.subr.mxu0 0.0
  %1638 = vmatpush1.msra.mxu0 0.0
  %1639 = vmatprep.subr.mxu0 0.0
  %1640 = vmatpush1.msra.mxu0 0.0
  %1641 = vmatprep.subr.mxu0 0.0
  %1642 = vmatpush1.msra.mxu0 0.0
  %1643 = vmatprep.subr.mxu0 0.0
  %1644 = vmatpush1.msra.mxu0 0.0
  %1645 = vmatprep.subr.mxu0 0.0
  %1646 = vmatpush1.msra.mxu0 0.0
  %1647 = vmatprep.subr.mxu0 0.0
  %1648 = vmatpush1.msra.mxu0 0.0
  %1649 = vmatprep.mubr.f32.mxu0 0.0
  %1650 = vmatmul.mubr.f32.gmra.mrb[0].mxu0 %v1583
  %v1651 = vpop.f32.mrb[0].mxu0
  %v1652 = vadd.f32 %v1408, %v1651
  %v1653 = vpop.f32.mrb[0].mxu0
  %1654 = vdwg.mxu0
  %v1655 = vmul.f32 %v1652, 0.5
  %v1656 = vsel %vm38, %v1652, %v1655
  %v1657 = vtanh.pop %v1656
  %v1658 = vmul.f32 %v1657, 0.5
  %v1659 = vadd.f32 %v1658, 0.5
  %v1660 = vsel %vm38, %v1657, %v1659
  %v1661 = vmul.f32 %v1660, %v1329
  %1663 = vrot.lane.b32.xlu0 %v1660, 64
  %v1664 = vpop.permute.xlu0 %1663
  %v1666 = vmul.f32 %v1660, %v1664
  %1668 = vrot.lane.b32.xlu0 %v1666, 32
  %v1669 = vpop.permute.xlu0 %1668
  %v1671 = vadd.f32 %v1661, %v1669
  %v1672 = vtanh.pop %v1671
  %1674 = vrot.lane.b32.xlu0 %v1672, 64
  %v1675 = vpop.permute.xlu0 %1674
  %v1677 = vmul.f32 %v1660, %v1675
  %1679 = vrot.lane.b32.xlu0 %v1677, 32
  %v1680 = vpop.permute.xlu0 %1679
  %v1681 = vsel %vm114, %v1680, 0
  %1683 = vmatprep.subr.mxu0 0.0
  %1684 = vmatpush1.msra.mxu0 %v20
  %1685 = vmatprep.subr.mxu0 0.0
  %1686 = vmatpush1.msra.mxu0 %v21
  %1687 = vmatprep.subr.mxu0 0.0
  %1688 = vmatpush1.msra.mxu0 %v22
  %1689 = vmatprep.subr.mxu0 0.0
  %1690 = vmatpush1.msra.mxu0 %v23
  %1691 = vmatprep.subr.mxu0 0.0
  %1692 = vmatpush1.msra.mxu0 0.0
  %1693 = vmatprep.subr.mxu0 0.0
  %1694 = vmatpush1.msra.mxu0 0.0
  %1695 = vmatprep.subr.mxu0 0.0
  %1696 = vmatpush1.msra.mxu0 0.0
  %1697 = vmatprep.subr.mxu0 0.0
  %1698 = vmatpush1.msra.mxu0 0.0
  %1699 = vmatprep.subr.mxu0 0.0
  %1700 = vmatpush1.msra.mxu0 0.0
  %1701 = vmatprep.subr.mxu0 0.0
  %1702 = vmatpush1.msra.mxu0 0.0
  %1703 = vmatprep.subr.mxu0 0.0
  %1704 = vmatpush1.msra.mxu0 0.0
  %1705 = vmatprep.subr.mxu0 0.0
  %1706 = vmatpush1.msra.mxu0 0.0
  %1707 = vmatprep.subr.mxu0 0.0
  %1708 = vmatpush1.msra.mxu0 0.0
  %1709 = vmatprep.subr.mxu0 0.0
  %1710 = vmatpush1.msra.mxu0 0.0
  %1711 = vmatprep.subr.mxu0 0.0
  %1712 = vmatpush1.msra.mxu0 0.0
  %1713 = vmatprep.subr.mxu0 0.0
  %1714 = vmatpush1.msra.mxu0 0.0
  %1715 = vmatprep.subr.mxu0 0.0
  %1716 = vmatpush1.msra.mxu0 0.0
  %1717 = vmatprep.subr.mxu0 0.0
  %1718 = vmatpush1.msra.mxu0 0.0
  %1719 = vmatprep.subr.mxu0 0.0
  %1720 = vmatpush1.msra.mxu0 0.0
  %1721 = vmatprep.subr.mxu0 0.0
  %1722 = vmatpush1.msra.mxu0 0.0
  %1723 = vmatprep.subr.mxu0 0.0
  %1724 = vmatpush1.msra.mxu0 0.0
  %1725 = vmatprep.subr.mxu0 0.0
  %1726 = vmatpush1.msra.mxu0 0.0
  %1727 = vmatprep.subr.mxu0 0.0
  %1728 = vmatpush1.msra.mxu0 0.0
  %1729 = vmatprep.subr.mxu0 0.0
  %1730 = vmatpush1.msra.mxu0 0.0
  %1731 = vmatprep.subr.mxu0 0.0
  %1732 = vmatpush1.msra.mxu0 0.0
  %1733 = vmatprep.subr.mxu0 0.0
  %1734 = vmatpush1.msra.mxu0 0.0
  %1735 = vmatprep.subr.mxu0 0.0
  %1736 = vmatpush1.msra.mxu0 0.0
  %1737 = vmatprep.subr.mxu0 0.0
  %1738 = vmatpush1.msra.mxu0 0.0
  %1739 = vmatprep.subr.mxu0 0.0
  %1740 = vmatpush1.msra.mxu0 0.0
  %1741 = vmatprep.subr.mxu0 0.0
  %1742 = vmatpush1.msra.mxu0 0.0
  %1743 = vmatprep.subr.mxu0 0.0
  %1744 = vmatpush1.msra.mxu0 0.0
  %1745 = vmatprep.subr.mxu0 0.0
  %1746 = vmatpush1.msra.mxu0 0.0
  %1747 = vmatprep.mubr.f32.mxu0 0.0
  %1748 = vmatmul.mubr.f32.gmra.mrb[0].mxu0 %v1681
  %v1749 = vpop.f32.mrb[0].mxu0
  %v1750 = vadd.f32 %v33, %v1749
  %v1751 = vpop.f32.mrb[0].mxu0
  %1752 = vdwg.mxu0
  %s1753 = scalar_lea.vmem %s0, 40
  %v1754 = vld [vmem:[%s1753] sm:$0xff]
  %v1756 = vsel %vm40, %v1754, 0
  %1758 = vmatprep.subr.mxu0 0.0
  %1759 = vmatpush1.msra.mxu0 %v11
  %1760 = vmatprep.subr.mxu0 0.0
  %1761 = vmatpush1.msra.mxu0 0.0
  %1762 = vmatprep.subr.mxu0 0.0
  %1763 = vmatpush1.msra.mxu0 0.0
  %1764 = vmatprep.subr.mxu0 0.0
  %1765 = vmatpush1.msra.mxu0 0.0
  %1766 = vmatprep.subr.mxu0 0.0
  %1767 = vmatpush1.msra.mxu0 0.0
  %1768 = vmatprep.subr.mxu0 0.0
  %1769 = vmatpush1.msra.mxu0 0.0
  %1770 = vmatprep.subr.mxu0 0.0
  %1771 = vmatpush1.msra.mxu0 0.0
  %1772 = vmatprep.subr.mxu0 0.0
  %1773 = vmatpush1.msra.mxu0 0.0
  %1774 = vmatprep.subr.mxu0 0.0
  %1775 = vmatpush1.msra.mxu0 0.0
  %1776 = vmatprep.subr.mxu0 0.0
  %1777 = vmatpush1.msra.mxu0 0.0
  %1778 = vmatprep.subr.mxu0 0.0
  %1779 = vmatpush1.msra.mxu0 0.0
  %1780 = vmatprep.subr.mxu0 0.0
  %1781 = vmatpush1.msra.mxu0 0.0
  %1782 = vmatprep.subr.mxu0 0.0
  %1783 = vmatpush1.msra.mxu0 0.0
  %1784 = vmatprep.subr.mxu0 0.0
  %1785 = vmatpush1.msra.mxu0 0.0
  %1786 = vmatprep.subr.mxu0 0.0
  %1787 = vmatpush1.msra.mxu0 0.0
  %1788 = vmatprep.subr.mxu0 0.0
  %1789 = vmatpush1.msra.mxu0 0.0
  %1790 = vmatprep.subr.mxu0 0.0
  %1791 = vmatpush1.msra.mxu0 0.0
  %1792 = vmatprep.subr.mxu0 0.0
  %1793 = vmatpush1.msra.mxu0 0.0
  %1794 = vmatprep.subr.mxu0 0.0
  %1795 = vmatpush1.msra.mxu0 0.0
  %1796 = vmatprep.subr.mxu0 0.0
  %1797 = vmatpush1.msra.mxu0 0.0
  %1798 = vmatprep.subr.mxu0 0.0
  %1799 = vmatpush1.msra.mxu0 0.0
  %1800 = vmatprep.subr.mxu0 0.0
  %1801 = vmatpush1.msra.mxu0 0.0
  %1802 = vmatprep.subr.mxu0 0.0
  %1803 = vmatpush1.msra.mxu0 0.0
  %1804 = vmatprep.subr.mxu0 0.0
  %1805 = vmatpush1.msra.mxu0 0.0
  %1806 = vmatprep.subr.mxu0 0.0
  %1807 = vmatpush1.msra.mxu0 0.0
  %1808 = vmatprep.subr.mxu0 0.0
  %1809 = vmatpush1.msra.mxu0 0.0
  %1810 = vmatprep.subr.mxu0 0.0
  %1811 = vmatpush1.msra.mxu0 0.0
  %1812 = vmatprep.subr.mxu0 0.0
  %1813 = vmatpush1.msra.mxu0 0.0
  %1814 = vmatprep.subr.mxu0 0.0
  %1815 = vmatpush1.msra.mxu0 0.0
  %1816 = vmatprep.subr.mxu0 0.0
  %1817 = vmatpush1.msra.mxu0 0.0
  %1818 = vmatprep.subr.mxu0 0.0
  %1819 = vmatpush1.msra.mxu0 0.0
  %1820 = vmatprep.subr.mxu0 0.0
  %1821 = vmatpush1.msra.mxu0 0.0
  %1822 = vmatprep.mubr.f32.mxu0 0.0
  %1823 = vmatmul.mubr.f32.gmra.mrb[0].mxu0 %v1756
  %v1824 = vpop.f32.mrb[0].mxu0
  %v1825 = vadd.f32 %v28, %v1824
  %v1826 = vpop.f32.mrb[0].mxu0
  %1827 = vdwg.mxu0
  %1828 = vmatprep.subr.mxu0 0.0
  %1829 = vmatpush1.msra.mxu0 %v12
  %1830 = vmatprep.subr.mxu0 0.0
  %1831 = vmatpush1.msra.mxu0 %v13
  %1832 = vmatprep.subr.mxu0 0.0
  %1833 = vmatpush1.msra.mxu0 %v14
  %1834 = vmatprep.subr.mxu0 0.0
  %1835 = vmatpush1.msra.mxu0 %v15
  %1836 = vmatprep.subr.mxu0 0.0
  %1837 = vmatpush1.msra.mxu0 0.0
  %1838 = vmatprep.subr.mxu0 0.0
  %1839 = vmatpush1.msra.mxu0 0.0
  %1840 = vmatprep.subr.mxu0 0.0
  %1841 = vmatpush1.msra.mxu0 0.0
  %1842 = vmatprep.subr.mxu0 0.0
  %1843 = vmatpush1.msra.mxu0 0.0
  %1844 = vmatprep.subr.mxu0 0.0
  %1845 = vmatpush1.msra.mxu0 0.0
  %1846 = vmatprep.subr.mxu0 0.0
  %1847 = vmatpush1.msra.mxu0 0.0
  %1848 = vmatprep.subr.mxu0 0.0
  %1849 = vmatpush1.msra.mxu0 0.0
  %1850 = vmatprep.subr.mxu0 0.0
  %1851 = vmatpush1.msra.mxu0 0.0
  %1852 = vmatprep.subr.mxu0 0.0
  %1853 = vmatpush1.msra.mxu0 0.0
  %1854 = vmatprep.subr.mxu0 0.0
  %1855 = vmatpush1.msra.mxu0 0.0
  %1856 = vmatprep.subr.mxu0 0.0
  %1857 = vmatpush1.msra.mxu0 0.0
  %1858 = vmatprep.subr.mxu0 0.0
  %1859 = vmatpush1.msra.mxu0 0.0
  %1860 = vmatprep.subr.mxu0 0.0
  %1861 = vmatpush1.msra.mxu0 0.0
  %1862 = vmatprep.subr.mxu0 0.0
  %1863 = vmatpush1.msra.mxu0 0.0
  %1864 = vmatprep.subr.mxu0 0.0
  %1865 = vmatpush1.msra.mxu0 0.0
  %1866 = vmatprep.subr.mxu0 0.0
  %1867 = vmatpush1.msra.mxu0 0.0
  %1868 = vmatprep.subr.mxu0 0.0
  %1869 = vmatpush1.msra.mxu0 0.0
  %1870 = vmatprep.subr.mxu0 0.0
  %1871 = vmatpush1.msra.mxu0 0.0
  %1872 = vmatprep.subr.mxu0 0.0
  %1873 = vmatpush1.msra.mxu0 0.0
  %1874 = vmatprep.subr.mxu0 0.0
  %1875 = vmatpush1.msra.mxu0 0.0
  %1876 = vmatprep.subr.mxu0 0.0
  %1877 = vmatpush1.msra.mxu0 0.0
  %1878 = vmatprep.subr.mxu0 0.0
  %1879 = vmatpush1.msra.mxu0 0.0
  %1880 = vmatprep.subr.mxu0 0.0
  %1881 = vmatpush1.msra.mxu0 0.0
  %1882 = vmatprep.subr.mxu0 0.0
  %1883 = vmatpush1.msra.mxu0 0.0
  %1884 = vmatprep.subr.mxu0 0.0
  %1885 = vmatpush1.msra.mxu0 0.0
  %1886 = vmatprep.subr.mxu0 0.0
  %1887 = vmatpush1.msra.mxu0 0.0
  %1888 = vmatprep.subr.mxu0 0.0
  %1889 = vmatpush1.msra.mxu0 0.0
  %1890 = vmatprep.subr.mxu0 0.0
  %1891 = vmatpush1.msra.mxu0 0.0
  %1892 = vmatprep.mubr.f32.mxu0 0.0
  %1893 = vmatmul.mubr.f32.gmra.mrb[0].mxu0 %v1583
  %v1894 = vpop.f32.mrb[0].mxu0
  %v1895 = vadd.f32 0.0, %v1894
  %v1896 = vpop.f32.mrb[0].mxu0
  %1897 = vdwg.mxu0
  %v1898 = vadd.f32 %v1825, %v1895
  %v1899 = vmul.f32 %v1898, 0.5
  %v1900 = vsel %vm38, %v1898, %v1899
  %v1901 = vtanh.pop %v1900
  %v1902 = vmul.f32 %v1901, 0.5
  %v1903 = vadd.f32 %v1902, 0.5
  %v1904 = vsel %vm38, %v1901, %v1903
  %v1905 = vmul.f32 %v1904, %v1573
  %1907 = vrot.lane.b32.xlu0 %v1904, 64
  %v1908 = vpop.permute.xlu0 %1907
  %v1910 = vmul.f32 %v1904, %v1908
  %1912 = vrot.lane.b32.xlu0 %v1910, 32
  %v1913 = vpop.permute.xlu0 %1912
  %v1915 = vadd.f32 %v1905, %v1913
  %v1916 = vtanh.pop %v1915
  %1918 = vrot.lane.b32.xlu0 %v1916, 64
  %v1919 = vpop.permute.xlu0 %1918
  %v1921 = vmul.f32 %v1904, %v1919
  %1923 = vrot.lane.b32.xlu0 %v1921, 32
  %v1924 = vpop.permute.xlu0 %1923
  %v1925 = vsel %vm114, %v1924, 0
  %1927 = vmatprep.subr.mxu0 0.0
  %1928 = vmatpush1.msra.mxu0 %v16
  %1929 = vmatprep.subr.mxu0 0.0
  %1930 = vmatpush1.msra.mxu0 %v17
  %1931 = vmatprep.subr.mxu0 0.0
  %1932 = vmatpush1.msra.mxu0 %v18
  %1933 = vmatprep.subr.mxu0 0.0
  %1934 = vmatpush1.msra.mxu0 %v19
  %1935 = vmatprep.subr.mxu0 0.0
  %1936 = vmatpush1.msra.mxu0 0.0
  %1937 = vmatprep.subr.mxu0 0.0
  %1938 = vmatpush1.msra.mxu0 0.0
  %1939 = vmatprep.subr.mxu0 0.0
  %1940 = vmatpush1.msra.mxu0 0.0
  %1941 = vmatprep.subr.mxu0 0.0
  %1942 = vmatpush1.msra.mxu0 0.0
  %1943 = vmatprep.subr.mxu0 0.0
  %1944 = vmatpush1.msra.mxu0 0.0
  %1945 = vmatprep.subr.mxu0 0.0
  %1946 = vmatpush1.msra.mxu0 0.0
  %1947 = vmatprep.subr.mxu0 0.0
  %1948 = vmatpush1.msra.mxu0 0.0
  %1949 = vmatprep.subr.mxu0 0.0
  %1950 = vmatpush1.msra.mxu0 0.0
  %1951 = vmatprep.subr.mxu0 0.0
  %1952 = vmatpush1.msra.mxu0 0.0
  %1953 = vmatprep.subr.mxu0 0.0
  %1954 = vmatpush1.msra.mxu0 0.0
  %1955 = vmatprep.subr.mxu0 0.0
  %1956 = vmatpush1.msra.mxu0 0.0
  %1957 = vmatprep.subr.mxu0 0.0
  %1958 = vmatpush1.msra.mxu0 0.0
  %1959 = vmatprep.subr.mxu0 0.0
  %1960 = vmatpush1.msra.mxu0 0.0
  %1961 = vmatprep.subr.mxu0 0.0
  %1962 = vmatpush1.msra.mxu0 0.0
  %1963 = vmatprep.subr.mxu0 0.0
  %1964 = vmatpush1.msra.mxu0 0.0
  %1965 = vmatprep.subr.mxu0 0.0
  %1966 = vmatpush1.msra.mxu0 0.0
  %1967 = vmatprep.subr.mxu0 0.0
  %1968 = vmatpush1.msra.mxu0 0.0
  %1969 = vmatprep.subr.mxu0 0.0
  %1970 = vmatpush1.msra.mxu0 0.0
  %1971 = vmatprep.subr.mxu0 0.0
  %1972 = vmatpush1.msra.mxu0 0.0
  %1973 = vmatprep.subr.mxu0 0.0
  %1974 = vmatpush1.msra.mxu0 0.0
  %1975 = vmatprep.subr.mxu0 0.0
  %1976 = vmatpush1.msra.mxu0 0.0
  %1977 = vmatprep.subr.mxu0 0.0
  %1978 = vmatpush1.msra.mxu0 0.0
  %1979 = vmatprep.subr.mxu0 0.0
  %1980 = vmatpush1.msra.mxu0 0.0
  %1981 = vmatprep.subr.mxu0 0.0
  %1982 = vmatpush1.msra.mxu0 0.0
  %1983 = vmatprep.subr.mxu0 0.0
  %1984 = vmatpush1.msra.mxu0 0.0
  %1985 = vmatprep.subr.mxu0 0.0
  %1986 = vmatpush1.msra.mxu0 0.0
  %1987 = vmatprep.subr.mxu0 0.0
  %1988 = vmatpush1.msra.mxu0 0.0
  %1989 = vmatprep.subr.mxu0 0.0
  %1990 = vmatpush1.msra.mxu0 0.0
  %1991 = vmatprep.mubr.f32.mxu0 0.0
  %1992 = vmatmul.mubr.f32.gmra.mrb[0].mxu0 %v1925
  %v1993 = vpop.f32.mrb[0].mxu0
  %v1994 = vadd.f32 %v1750, %v1993
  %v1995 = vpop.f32.mrb[0].mxu0
  %1996 = vdwg.mxu0
  %v1997 = vmul.f32 %v1994, 0.5
  %v1998 = vsel %vm38, %v1994, %v1997
  %v1999 = vtanh.pop %v1998
  %v2000 = vmul.f32 %v1999, 0.5
  %v2001 = vadd.f32 %v2000, 0.5
  %v2002 = vsel %vm38, %v1999, %v2001
  %v2003 = vmul.f32 %v2002, %v1671
  %2005 = vrot.lane.b32.xlu0 %v2002, 64
  %v2006 = vpop.permute.xlu0 %2005
  %v2008 = vmul.f32 %v2002, %v2006
  %2010 = vrot.lane.b32.xlu0 %v2008, 32
  %v2011 = vpop.permute.xlu0 %2010
  %v2013 = vadd.f32 %v2003, %v2011
  %v2014 = vtanh.pop %v2013
  %2016 = vrot.lane.b32.xlu0 %v2014, 64
  %v2017 = vpop.permute.xlu0 %2016
  %v2019 = vmul.f32 %v2002, %v2017
  %2021 = vrot.lane.b32.xlu0 %v2019, 32
  %v2022 = vpop.permute.xlu0 %2021
  %v2023 = vsel %vm114, %v2022, 0
  %2025 = vmatprep.subr.mxu0 0.0
  %2026 = vmatpush1.msra.mxu0 %v20
  %2027 = vmatprep.subr.mxu0 0.0
  %2028 = vmatpush1.msra.mxu0 %v21
  %2029 = vmatprep.subr.mxu0 0.0
  %2030 = vmatpush1.msra.mxu0 %v22
  %2031 = vmatprep.subr.mxu0 0.0
  %2032 = vmatpush1.msra.mxu0 %v23
  %2033 = vmatprep.subr.mxu0 0.0
  %2034 = vmatpush1.msra.mxu0 0.0
  %2035 = vmatprep.subr.mxu0 0.0
  %2036 = vmatpush1.msra.mxu0 0.0
  %2037 = vmatprep.subr.mxu0 0.0
  %2038 = vmatpush1.msra.mxu0 0.0
  %2039 = vmatprep.subr.mxu0 0.0
  %2040 = vmatpush1.msra.mxu0 0.0
  %2041 = vmatprep.subr.mxu0 0.0
  %2042 = vmatpush1.msra.mxu0 0.0
  %2043 = vmatprep.subr.mxu0 0.0
  %2044 = vmatpush1.msra.mxu0 0.0
  %2045 = vmatprep.subr.mxu0 0.0
  %2046 = vmatpush1.msra.mxu0 0.0
  %2047 = vmatprep.subr.mxu0 0.0
  %2048 = vmatpush1.msra.mxu0 0.0
  %2049 = vmatprep.subr.mxu0 0.0
  %2050 = vmatpush1.msra.mxu0 0.0
  %2051 = vmatprep.subr.mxu0 0.0
  %2052 = vmatpush1.msra.mxu0 0.0
  %2053 = vmatprep.subr.mxu0 0.0
  %2054 = vmatpush1.msra.mxu0 0.0
  %2055 = vmatprep.subr.mxu0 0.0
  %2056 = vmatpush1.msra.mxu0 0.0
  %2057 = vmatprep.subr.mxu0 0.0
  %2058 = vmatpush1.msra.mxu0 0.0
  %2059 = vmatprep.subr.mxu0 0.0
  %2060 = vmatpush1.msra.mxu0 0.0
  %2061 = vmatprep.subr.mxu0 0.0
  %2062 = vmatpush1.msra.mxu0 0.0
  %2063 = vmatprep.subr.mxu0 0.0
  %2064 = vmatpush1.msra.mxu0 0.0
  %2065 = vmatprep.subr.mxu0 0.0
  %2066 = vmatpush1.msra.mxu0 0.0
  %2067 = vmatprep.subr.mxu0 0.0
  %2068 = vmatpush1.msra.mxu0 0.0
  %2069 = vmatprep.subr.mxu0 0.0
  %2070 = vmatpush1.msra.mxu0 0.0
  %2071 = vmatprep.subr.mxu0 0.0
  %2072 = vmatpush1.msra.mxu0 0.0
  %2073 = vmatprep.subr.mxu0 0.0
  %2074 = vmatpush1.msra.mxu0 0.0
  %2075 = vmatprep.subr.mxu0 0.0
  %2076 = vmatpush1.msra.mxu0 0.0
  %2077 = vmatprep.subr.mxu0 0.0
  %2078 = vmatpush1.msra.mxu0 0.0
  %2079 = vmatprep.subr.mxu0 0.0
  %2080 = vmatpush1.msra.mxu0 0.0
  %2081 = vmatprep.subr.mxu0 0.0
  %2082 = vmatpush1.msra.mxu0 0.0
  %2083 = vmatprep.subr.mxu0 0.0
  %2084 = vmatpush1.msra.mxu0 0.0
  %2085 = vmatprep.subr.mxu0 0.0
  %2086 = vmatpush1.msra.mxu0 0.0
  %2087 = vmatprep.subr.mxu0 0.0
  %2088 = vmatpush1.msra.mxu0 0.0
  %2089 = vmatprep.mubr.f32.mxu0 0.0
  %2090 = vmatmul.mubr.f32.gmra.mrb[0].mxu0 %v2023
  %v2091 = vpop.f32.mrb[0].mxu0
  %v2092 = vadd.f32 %v33, %v2091
  %v2093 = vpop.f32.mrb[0].mxu0
  %2094 = vdwg.mxu0
  %s2095 = scalar_lea.vmem %s0, 48
  %v2096 = vld [vmem:[%s2095] sm:$0xff]
  %v2098 = vsel %vm40, %v2096, 0
  %2100 = vmatprep.subr.mxu0 0.0
  %2101 = vmatpush1.msra.mxu0 %v11
  %2102 = vmatprep.subr.mxu0 0.0
  %2103 = vmatpush1.msra.mxu0 0.0
  %2104 = vmatprep.subr.mxu0 0.0
  %2105 = vmatpush1.msra.mxu0 0.0
  %2106 = vmatprep.subr.mxu0 0.0
  %2107 = vmatpush1.msra.mxu0 0.0
  %2108 = vmatprep.subr.mxu0 0.0
  %2109 = vmatpush1.msra.mxu0 0.0
  %2110 = vmatprep.subr.mxu0 0.0
  %2111 = vmatpush1.msra.mxu0 0.0
  %2112 = vmatprep.subr.mxu0 0.0
  %2113 = vmatpush1.msra.mxu0 0.0
  %2114 = vmatprep.subr.mxu0 0.0
  %2115 = vmatpush1.msra.mxu0 0.0
  %2116 = vmatprep.subr.mxu0 0.0
  %2117 = vmatpush1.msra.mxu0 0.0
  %2118 = vmatprep.subr.mxu0 0.0
  %2119 = vmatpush1.msra.mxu0 0.0
  %2120 = vmatprep.subr.mxu0 0.0
  %2121 = vmatpush1.msra.mxu0 0.0
  %2122 = vmatprep.subr.mxu0 0.0
  %2123 = vmatpush1.msra.mxu0 0.0
  %2124 = vmatprep.subr.mxu0 0.0
  %2125 = vmatpush1.msra.mxu0 0.0
  %2126 = vmatprep.subr.mxu0 0.0
  %2127 = vmatpush1.msra.mxu0 0.0
  %2128 = vmatprep.subr.mxu0 0.0
  %2129 = vmatpush1.msra.mxu0 0.0
  %2130 = vmatprep.subr.mxu0 0.0
  %2131 = vmatpush1.msra.mxu0 0.0
  %2132 = vmatprep.subr.mxu0 0.0
  %2133 = vmatpush1.msra.mxu0 0.0
  %2134 = vmatprep.subr.mxu0 0.0
  %2135 = vmatpush1.msra.mxu0 0.0
  %2136 = vmatprep.subr.mxu0 0.0
  %2137 = vmatpush1.msra.mxu0 0.0
  %2138 = vmatprep.subr.mxu0 0.0
  %2139 = vmatpush1.msra.mxu0 0.0
  %2140 = vmatprep.subr.mxu0 0.0
  %2141 = vmatpush1.msra.mxu0 0.0
  %2142 = vmatprep.subr.mxu0 0.0
  %2143 = vmatpush1.msra.mxu0 0.0
  %2144 = vmatprep.subr.mxu0 0.0
  %2145 = vmatpush1.msra.mxu0 0.0
  %2146 = vmatprep.subr.mxu0 0.0
  %2147 = vmatpush1.msra.mxu0 0.0
  %2148 = vmatprep.subr.mxu0 0.0
  %2149 = vmatpush1.msra.mxu0 0.0
  %2150 = vmatprep.subr.mxu0 0.0
  %2151 = vmatpush1.msra.mxu0 0.0
  %2152 = vmatprep.subr.mxu0 0.0
  %2153 = vmatpush1.msra.mxu0 0.0
  %2154 = vmatprep.subr.mxu0 0.0
  %2155 = vmatpush1.msra.mxu0 0.0
  %2156 = vmatprep.subr.mxu0 0.0
  %2157 = vmatpush1.msra.mxu0 0.0
  %2158 = vmatprep.subr.mxu0 0.0
  %2159 = vmatpush1.msra.mxu0 0.0
  %2160 = vmatprep.subr.mxu0 0.0
  %2161 = vmatpush1.msra.mxu0 0.0
  %2162 = vmatprep.subr.mxu0 0.0
  %2163 = vmatpush1.msra.mxu0 0.0
  %2164 = vmatprep.mubr.f32.mxu0 0.0
  %2165 = vmatmul.mubr.f32.gmra.mrb[0].mxu0 %v2098
  %v2166 = vpop.f32.mrb[0].mxu0
  %v2167 = vadd.f32 %v28, %v2166
  %v2168 = vpop.f32.mrb[0].mxu0
  %2169 = vdwg.mxu0
  %2170 = vmatprep.subr.mxu0 0.0
  %2171 = vmatpush1.msra.mxu0 %v12
  %2172 = vmatprep.subr.mxu0 0.0
  %2173 = vmatpush1.msra.mxu0 %v13
  %2174 = vmatprep.subr.mxu0 0.0
  %2175 = vmatpush1.msra.mxu0 %v14
  %2176 = vmatprep.subr.mxu0 0.0
  %2177 = vmatpush1.msra.mxu0 %v15
  %2178 = vmatprep.subr.mxu0 0.0
  %2179 = vmatpush1.msra.mxu0 0.0
  %2180 = vmatprep.subr.mxu0 0.0
  %2181 = vmatpush1.msra.mxu0 0.0
  %2182 = vmatprep.subr.mxu0 0.0
  %2183 = vmatpush1.msra.mxu0 0.0
  %2184 = vmatprep.subr.mxu0 0.0
  %2185 = vmatpush1.msra.mxu0 0.0
  %2186 = vmatprep.subr.mxu0 0.0
  %2187 = vmatpush1.msra.mxu0 0.0
  %2188 = vmatprep.subr.mxu0 0.0
  %2189 = vmatpush1.msra.mxu0 0.0
  %2190 = vmatprep.subr.mxu0 0.0
  %2191 = vmatpush1.msra.mxu0 0.0
  %2192 = vmatprep.subr.mxu0 0.0
  %2193 = vmatpush1.msra.mxu0 0.0
  %2194 = vmatprep.subr.mxu0 0.0
  %2195 = vmatpush1.msra.mxu0 0.0
  %2196 = vmatprep.subr.mxu0 0.0
  %2197 = vmatpush1.msra.mxu0 0.0
  %2198 = vmatprep.subr.mxu0 0.0
  %2199 = vmatpush1.msra.mxu0 0.0
  %2200 = vmatprep.subr.mxu0 0.0
  %2201 = vmatpush1.msra.mxu0 0.0
  %2202 = vmatprep.subr.mxu0 0.0
  %2203 = vmatpush1.msra.mxu0 0.0
  %2204 = vmatprep.subr.mxu0 0.0
  %2205 = vmatpush1.msra.mxu0 0.0
  %2206 = vmatprep.subr.mxu0 0.0
  %2207 = vmatpush1.msra.mxu0 0.0
  %2208 = vmatprep.subr.mxu0 0.0
  %2209 = vmatpush1.msra.mxu0 0.0
  %2210 = vmatprep.subr.mxu0 0.0
  %2211 = vmatpush1.msra.mxu0 0.0
  %2212 = vmatprep.subr.mxu0 0.0
  %2213 = vmatpush1.msra.mxu0 0.0
  %2214 = vmatprep.subr.mxu0 0.0
  %2215 = vmatpush1.msra.mxu0 0.0
  %2216 = vmatprep.subr.mxu0 0.0
  %2217 = vmatpush1.msra.mxu0 0.0
  %2218 = vmatprep.subr.mxu0 0.0
  %2219 = vmatpush1.msra.mxu0 0.0
  %2220 = vmatprep.subr.mxu0 0.0
  %2221 = vmatpush1.msra.mxu0 0.0
  %2222 = vmatprep.subr.mxu0 0.0
  %2223 = vmatpush1.msra.mxu0 0.0
  %2224 = vmatprep.subr.mxu0 0.0
  %2225 = vmatpush1.msra.mxu0 0.0
  %2226 = vmatprep.subr.mxu0 0.0
  %2227 = vmatpush1.msra.mxu0 0.0
  %2228 = vmatprep.subr.mxu0 0.0
  %2229 = vmatpush1.msra.mxu0 0.0
  %2230 = vmatprep.subr.mxu0 0.0
  %2231 = vmatpush1.msra.mxu0 0.0
  %2232 = vmatprep.subr.mxu0 0.0
  %2233 = vmatpush1.msra.mxu0 0.0
  %2234 = vmatprep.mubr.f32.mxu0 0.0
  %2235 = vmatmul.mubr.f32.gmra.mrb[0].mxu0 %v1925
  %v2236 = vpop.f32.mrb[0].mxu0
  %v2237 = vadd.f32 0.0, %v2236
  %v2238 = vpop.f32.mrb[0].mxu0
  %2239 = vdwg.mxu0
  %v2240 = vadd.f32 %v2167, %v2237
  %v2241 = vmul.f32 %v2240, 0.5
  %v2242 = vsel %vm38, %v2240, %v2241
  %v2243 = vtanh.pop %v2242
  %v2244 = vmul.f32 %v2243, 0.5
  %v2245 = vadd.f32 %v2244, 0.5
  %v2246 = vsel %vm38, %v2243, %v2245
  %v2247 = vmul.f32 %v2246, %v1915
  %2249 = vrot.lane.b32.xlu0 %v2246, 64
  %v2250 = vpop.permute.xlu0 %2249
  %v2252 = vmul.f32 %v2246, %v2250
  %2254 = vrot.lane.b32.xlu0 %v2252, 32
  %v2255 = vpop.permute.xlu0 %2254
  %v2257 = vadd.f32 %v2247, %v2255
  %v2258 = vtanh.pop %v2257
  %2260 = vrot.lane.b32.xlu0 %v2258, 64
  %v2261 = vpop.permute.xlu0 %2260
  %v2263 = vmul.f32 %v2246, %v2261
  %2265 = vrot.lane.b32.xlu0 %v2263, 32
  %v2266 = vpop.permute.xlu0 %2265
  %v2267 = vsel %vm114, %v2266, 0
  %2269 = vmatprep.subr.mxu0 0.0
  %2270 = vmatpush1.msra.mxu0 %v16
  %2271 = vmatprep.subr.mxu0 0.0
  %2272 = vmatpush1.msra.mxu0 %v17
  %2273 = vmatprep.subr.mxu0 0.0
  %2274 = vmatpush1.msra.mxu0 %v18
  %2275 = vmatprep.subr.mxu0 0.0
  %2276 = vmatpush1.msra.mxu0 %v19
  %2277 = vmatprep.subr.mxu0 0.0
  %2278 = vmatpush1.msra.mxu0 0.0
  %2279 = vmatprep.subr.mxu0 0.0
  %2280 = vmatpush1.msra.mxu0 0.0
  %2281 = vmatprep.subr.mxu0 0.0
  %2282 = vmatpush1.msra.mxu0 0.0
  %2283 = vmatprep.subr.mxu0 0.0
  %2284 = vmatpush1.msra.mxu0 0.0
  %2285 = vmatprep.subr.mxu0 0.0
  %2286 = vmatpush1.msra.mxu0 0.0
  %2287 = vmatprep.subr.mxu0 0.0
  %2288 = vmatpush1.msra.mxu0 0.0
  %2289 = vmatprep.subr.mxu0 0.0
  %2290 = vmatpush1.msra.mxu0 0.0
  %2291 = vmatprep.subr.mxu0 0.0
  %2292 = vmatpush1.msra.mxu0 0.0
  %2293 = vmatprep.subr.mxu0 0.0
  %2294 = vmatpush1.msra.mxu0 0.0
  %2295 = vmatprep.subr.mxu0 0.0
  %2296 = vmatpush1.msra.mxu0 0.0
  %2297 = vmatprep.subr.mxu0 0.0
  %2298 = vmatpush1.msra.mxu0 0.0
  %2299 = vmatprep.subr.mxu0 0.0
  %2300 = vmatpush1.msra.mxu0 0.0
  %2301 = vmatprep.subr.mxu0 0.0
  %2302 = vmatpush1.msra.mxu0 0.0
  %2303 = vmatprep.subr.mxu0 0.0
  %2304 = vmatpush1.msra.mxu0 0.0
  %2305 = vmatprep.subr.mxu0 0.0
  %2306 = vmatpush1.msra.mxu0 0.0
  %2307 = vmatprep.subr.mxu0 0.0
  %2308 = vmatpush1.msra.mxu0 0.0
  %2309 = vmatprep.subr.mxu0 0.0
  %2310 = vmatpush1.msra.mxu0 0.0
  %2311 = vmatprep.subr.mxu0 0.0
  %2312 = vmatpush1.msra.mxu0 0.0
  %2313 = vmatprep.subr.mxu0 0.0
  %2314 = vmatpush1.msra.mxu0 0.0
  %2315 = vmatprep.subr.mxu0 0.0
  %2316 = vmatpush1.msra.mxu0 0.0
  %2317 = vmatprep.subr.mxu0 0.0
  %2318 = vmatpush1.msra.mxu0 0.0
  %2319 = vmatprep.subr.mxu0 0.0
  %2320 = vmatpush1.msra.mxu0 0.0
  %2321 = vmatprep.subr.mxu0 0.0
  %2322 = vmatpush1.msra.mxu0 0.0
  %2323 = vmatprep.subr.mxu0 0.0
  %2324 = vmatpush1.msra.mxu0 0.0
  %2325 = vmatprep.subr.mxu0 0.0
  %2326 = vmatpush1.msra.mxu0 0.0
  %2327 = vmatprep.subr.mxu0 0.0
  %2328 = vmatpush1.msra.mxu0 0.0
  %2329 = vmatprep.subr.mxu0 0.0
  %2330 = vmatpush1.msra.mxu0 0.0
  %2331 = vmatprep.subr.mxu0 0.0
  %2332 = vmatpush1.msra.mxu0 0.0
  %2333 = vmatprep.mubr.f32.mxu0 0.0
  %2334 = vmatmul.mubr.f32.gmra.mrb[0].mxu0 %v2267
  %v2335 = vpop.f32.mrb[0].mxu0
  %v2336 = vadd.f32 %v2092, %v2335
  %v2337 = vpop.f32.mrb[0].mxu0
  %2338 = vdwg.mxu0
  %v2339 = vmul.f32 %v2336, 0.5
  %v2340 = vsel %vm38, %v2336, %v2339
  %v2341 = vtanh.pop %v2340
  %v2342 = vmul.f32 %v2341, 0.5
  %v2343 = vadd.f32 %v2342, 0.5
  %v2344 = vsel %vm38, %v2341, %v2343
  %v2345 = vmul.f32 %v2344, %v2013
  %2347 = vrot.lane.b32.xlu0 %v2344, 64
  %v2348 = vpop.permute.xlu0 %2347
  %v2350 = vmul.f32 %v2344, %v2348
  %2352 = vrot.lane.b32.xlu0 %v2350, 32
  %v2353 = vpop.permute.xlu0 %2352
  %v2355 = vadd.f32 %v2345, %v2353
  %v2356 = vtanh.pop %v2355
  %2358 = vrot.lane.b32.xlu0 %v2356, 64
  %v2359 = vpop.permute.xlu0 %2358
  %v2361 = vmul.f32 %v2344, %v2359
  %2363 = vrot.lane.b32.xlu0 %v2361, 32
  %v2364 = vpop.permute.xlu0 %2363
  %v2365 = vsel %vm114, %v2364, 0
  %2367 = vmatprep.subr.mxu0 0.0
  %2368 = vmatpush1.msra.mxu0 %v20
  %2369 = vmatprep.subr.mxu0 0.0
  %2370 = vmatpush1.msra.mxu0 %v21
  %2371 = vmatprep.subr.mxu0 0.0
  %2372 = vmatpush1.msra.mxu0 %v22
  %2373 = vmatprep.subr.mxu0 0.0
  %2374 = vmatpush1.msra.mxu0 %v23
  %2375 = vmatprep.subr.mxu0 0.0
  %2376 = vmatpush1.msra.mxu0 0.0
  %2377 = vmatprep.subr.mxu0 0.0
  %2378 = vmatpush1.msra.mxu0 0.0
  %2379 = vmatprep.subr.mxu0 0.0
  %2380 = vmatpush1.msra.mxu0 0.0
  %2381 = vmatprep.subr.mxu0 0.0
  %2382 = vmatpush1.msra.mxu0 0.0
  %2383 = vmatprep.subr.mxu0 0.0
  %2384 = vmatpush1.msra.mxu0 0.0
  %2385 = vmatprep.subr.mxu0 0.0
  %2386 = vmatpush1.msra.mxu0 0.0
  %2387 = vmatprep.subr.mxu0 0.0
  %2388 = vmatpush1.msra.mxu0 0.0
  %2389 = vmatprep.subr.mxu0 0.0
  %2390 = vmatpush1.msra.mxu0 0.0
  %2391 = vmatprep.subr.mxu0 0.0
  %2392 = vmatpush1.msra.mxu0 0.0
  %2393 = vmatprep.subr.mxu0 0.0
  %2394 = vmatpush1.msra.mxu0 0.0
  %2395 = vmatprep.subr.mxu0 0.0
  %2396 = vmatpush1.msra.mxu0 0.0
  %2397 = vmatprep.subr.mxu0 0.0
  %2398 = vmatpush1.msra.mxu0 0.0
  %2399 = vmatprep.subr.mxu0 0.0
  %2400 = vmatpush1.msra.mxu0 0.0
  %2401 = vmatprep.subr.mxu0 0.0
  %2402 = vmatpush1.msra.mxu0 0.0
  %2403 = vmatprep.subr.mxu0 0.0
  %2404 = vmatpush1.msra.mxu0 0.0
  %2405 = vmatprep.subr.mxu0 0.0
  %2406 = vmatpush1.msra.mxu0 0.0
  %2407 = vmatprep.subr.mxu0 0.0
  %2408 = vmatpush1.msra.mxu0 0.0
  %2409 = vmatprep.subr.mxu0 0.0
  %2410 = vmatpush1.msra.mxu0 0.0
  %2411 = vmatprep.subr.mxu0 0.0
  %2412 = vmatpush1.msra.mxu0 0.0
  %2413 = vmatprep.subr.mxu0 0.0
  %2414 = vmatpush1.msra.mxu0 0.0
  %2415 = vmatprep.subr.mxu0 0.0
  %2416 = vmatpush1.msra.mxu0 0.0
  %2417 = vmatprep.subr.mxu0 0.0
  %2418 = vmatpush1.msra.mxu0 0.0
  %2419 = vmatprep.subr.mxu0 0.0
  %2420 = vmatpush1.msra.mxu0 0.0
  %2421 = vmatprep.subr.mxu0 0.0
  %2422 = vmatpush1.msra.mxu0 0.0
  %2423 = vmatprep.subr.mxu0 0.0
  %2424 = vmatpush1.msra.mxu0 0.0
  %2425 = vmatprep.subr.mxu0 0.0
  %2426 = vmatpush1.msra.mxu0 0.0
  %2427 = vmatprep.subr.mxu0 0.0
  %2428 = vmatpush1.msra.mxu0 0.0
  %2429 = vmatprep.subr.mxu0 0.0
  %2430 = vmatpush1.msra.mxu0 0.0
  %2431 = vmatprep.mubr.f32.mxu0 0.0
  %2432 = vmatmul.mubr.f32.gmra.mrb[0].mxu0 %v2365
  %v2433 = vpop.f32.mrb[0].mxu0
  %v2434 = vadd.f32 %v33, %v2433
  %v2435 = vpop.f32.mrb[0].mxu0
  %2436 = vdwg.mxu0
  %s2437 = scalar_lea.vmem %s0, 56
  %v2438 = vld [vmem:[%s2437] sm:$0xff]
  %v2440 = vsel %vm40, %v2438, 0
  %2442 = vmatprep.subr.mxu0 0.0
  %2443 = vmatpush1.msra.mxu0 %v11
  %2444 = vmatprep.subr.mxu0 0.0
  %2445 = vmatpush1.msra.mxu0 0.0
  %2446 = vmatprep.subr.mxu0 0.0
  %2447 = vmatpush1.msra.mxu0 0.0
  %2448 = vmatprep.subr.mxu0 0.0
  %2449 = vmatpush1.msra.mxu0 0.0
  %2450 = vmatprep.subr.mxu0 0.0
  %2451 = vmatpush1.msra.mxu0 0.0
  %2452 = vmatprep.subr.mxu0 0.0
  %2453 = vmatpush1.msra.mxu0 0.0
  %2454 = vmatprep.subr.mxu0 0.0
  %2455 = vmatpush1.msra.mxu0 0.0
  %2456 = vmatprep.subr.mxu0 0.0
  %2457 = vmatpush1.msra.mxu0 0.0
  %2458 = vmatprep.subr.mxu0 0.0
  %2459 = vmatpush1.msra.mxu0 0.0
  %2460 = vmatprep.subr.mxu0 0.0
  %2461 = vmatpush1.msra.mxu0 0.0
  %2462 = vmatprep.subr.mxu0 0.0
  %2463 = vmatpush1.msra.mxu0 0.0
  %2464 = vmatprep.subr.mxu0 0.0
  %2465 = vmatpush1.msra.mxu0 0.0
  %2466 = vmatprep.subr.mxu0 0.0
  %2467 = vmatpush1.msra.mxu0 0.0
  %2468 = vmatprep.subr.mxu0 0.0
  %2469 = vmatpush1.msra.mxu0 0.0
  %2470 = vmatprep.subr.mxu0 0.0
  %2471 = vmatpush1.msra.mxu0 0.0
  %2472 = vmatprep.subr.mxu0 0.0
  %2473 = vmatpush1.msra.mxu0 0.0
  %2474 = vmatprep.subr.mxu0 0.0
  %2475 = vmatpush1.msra.mxu0 0.0
  %2476 = vmatprep.subr.mxu0 0.0
  %2477 = vmatpush1.msra.mxu0 0.0
  %2478 = vmatprep.subr.mxu0 0.0
  %2479 = vmatpush1.msra.mxu0 0.0
  %2480 = vmatprep.subr.mxu0 0.0
  %2481 = vmatpush1.msra.mxu0 0.0
  %2482 = vmatprep.subr.mxu0 0.0
  %2483 = vmatpush1.msra.mxu0 0.0
  %2484 = vmatprep.subr.mxu0 0.0
  %2485 = vmatpush1.msra.mxu0 0.0
  %2486 = vmatprep.subr.mxu0 0.0
  %2487 = vmatpush1.msra.mxu0 0.0
  %2488 = vmatprep.subr.mxu0 0.0
  %2489 = vmatpush1.msra.mxu0 0.0
  %2490 = vmatprep.subr.mxu0 0.0
  %2491 = vmatpush1.msra.mxu0 0.0
  %2492 = vmatprep.subr.mxu0 0.0
  %2493 = vmatpush1.msra.mxu0 0.0
  %2494 = vmatprep.subr.mxu0 0.0
  %2495 = vmatpush1.msra.mxu0 0.0
  %2496 = vmatprep.subr.mxu0 0.0
  %2497 = vmatpush1.msra.mxu0 0.0
  %2498 = vmatprep.subr.mxu0 0.0
  %2499 = vmatpush1.msra.mxu0 0.0
  %2500 = vmatprep.subr.mxu0 0.0
  %2501 = vmatpush1.msra.mxu0 0.0
  %2502 = vmatprep.subr.mxu0 0.0
  %2503 = vmatpush1.msra.mxu0 0.0
  %2504 = vmatprep.subr.mxu0 0.0
  %2505 = vmatpush1.msra.mxu0 0.0
  %2506 = vmatprep.mubr.f32.mxu0 0.0
  %2507 = vmatmul.mubr.f32.gmra.mrb[0].mxu0 %v2440
  %v2508 = vpop.f32.mrb[0].mxu0
  %v2509 = vadd.f32 %v28, %v2508
  %v2510 = vpop.f32.mrb[0].mxu0
  %2511 = vdwg.mxu0
  %2512 = vmatprep.subr.mxu0 0.0
  %2513 = vmatpush1.msra.mxu0 %v12
  %2514 = vmatprep.subr.mxu0 0.0
  %2515 = vmatpush1.msra.mxu0 %v13
  %2516 = vmatprep.subr.mxu0 0.0
  %2517 = vmatpush1.msra.mxu0 %v14
  %2518 = vmatprep.subr.mxu0 0.0
  %2519 = vmatpush1.msra.mxu0 %v15
  %2520 = vmatprep.subr.mxu0 0.0
  %2521 = vmatpush1.msra.mxu0 0.0
  %2522 = vmatprep.subr.mxu0 0.0
  %2523 = vmatpush1.msra.mxu0 0.0
  %2524 = vmatprep.subr.mxu0 0.0
  %2525 = vmatpush1.msra.mxu0 0.0
  %2526 = vmatprep.subr.mxu0 0.0
  %2527 = vmatpush1.msra.mxu0 0.0
  %2528 = vmatprep.subr.mxu0 0.0
  %2529 = vmatpush1.msra.mxu0 0.0
  %2530 = vmatprep.subr.mxu0 0.0
  %2531 = vmatpush1.msra.mxu0 0.0
  %2532 = vmatprep.subr.mxu0 0.0
  %2533 = vmatpush1.msra.mxu0 0.0
  %2534 = vmatprep.subr.mxu0 0.0
  %2535 = vmatpush1.msra.mxu0 0.0
  %2536 = vmatprep.subr.mxu0 0.0
  %2537 = vmatpush1.msra.mxu0 0.0
  %2538 = vmatprep.subr.mxu0 0.0
  %2539 = vmatpush1.msra.mxu0 0.0
  %2540 = vmatprep.subr.mxu0 0.0
  %2541 = vmatpush1.msra.mxu0 0.0
  %2542 = vmatprep.subr.mxu0 0.0
  %2543 = vmatpush1.msra.mxu0 0.0
  %2544 = vmatprep.subr.mxu0 0.0
  %2545 = vmatpush1.msra.mxu0 0.0
  %2546 = vmatprep.subr.mxu0 0.0
  %2547 = vmatpush1.msra.mxu0 0.0
  %2548 = vmatprep.subr.mxu0 0.0
  %2549 = vmatpush1.msra.mxu0 0.0
  %2550 = vmatprep.subr.mxu0 0.0
  %2551 = vmatpush1.msra.mxu0 0.0
  %2552 = vmatprep.subr.mxu0 0.0
  %2553 = vmatpush1.msra.mxu0 0.0
  %2554 = vmatprep.subr.mxu0 0.0
  %2555 = vmatpush1.msra.mxu0 0.0
  %2556 = vmatprep.subr.mxu0 0.0
  %2557 = vmatpush1.msra.mxu0 0.0
  %2558 = vmatprep.subr.mxu0 0.0
  %2559 = vmatpush1.msra.mxu0 0.0
  %2560 = vmatprep.subr.mxu0 0.0
  %2561 = vmatpush1.msra.mxu0 0.0
  %2562 = vmatprep.subr.mxu0 0.0
  %2563 = vmatpush1.msra.mxu0 0.0
  %2564 = vmatprep.subr.mxu0 0.0
  %2565 = vmatpush1.msra.mxu0 0.0
  %2566 = vmatprep.subr.mxu0 0.0
  %2567 = vmatpush1.msra.mxu0 0.0
  %2568 = vmatprep.subr.mxu0 0.0
  %2569 = vmatpush1.msra.mxu0 0.0
  %2570 = vmatprep.subr.mxu0 0.0
  %2571 = vmatpush1.msra.mxu0 0.0
  %2572 = vmatprep.subr.mxu0 0.0
  %2573 = vmatpush1.msra.mxu0 0.0
  %2574 = vmatprep.subr.mxu0 0.0
  %2575 = vmatpush1.msra.mxu0 0.0
  %2576 = vmatprep.mubr.f32.mxu0 0.0
  %2577 = vmatmul.mubr.f32.gmra.mrb[0].mxu0 %v2267
  %v2578 = vpop.f32.mrb[0].mxu0
  %v2579 = vadd.f32 0.0, %v2578
  %v2580 = vpop.f32.mrb[0].mxu0
  %2581 = vdwg.mxu0
  %v2582 = vadd.f32 %v2509, %v2579
  %v2583 = vmul.f32 %v2582, 0.5
  %v2584 = vsel %vm38, %v2582, %v2583
  %v2585 = vtanh.pop %v2584
  %v2586 = vmul.f32 %v2585, 0.5
  %v2587 = vadd.f32 %v2586, 0.5
  %v2588 = vsel %vm38, %v2585, %v2587
  %v2589 = vmul.f32 %v2588, %v2257
  %2591 = vrot.lane.b32.xlu0 %v2588, 64
  %v2592 = vpop.permute.xlu0 %2591
  %v2594 = vmul.f32 %v2588, %v2592
  %2596 = vrot.lane.b32.xlu0 %v2594, 32
  %v2597 = vpop.permute.xlu0 %2596
  %v2599 = vadd.f32 %v2589, %v2597
  %v2600 = vtanh.pop %v2599
  %2602 = vrot.lane.b32.xlu0 %v2600, 64
  %v2603 = vpop.permute.xlu0 %2602
  %v2605 = vmul.f32 %v2588, %v2603
  %2607 = vrot.lane.b32.xlu0 %v2605, 32
  %v2608 = vpop.permute.xlu0 %2607
  %v2609 = vsel %vm114, %v2608, 0
  %2611 = vmatprep.subr.mxu0 0.0
  %2612 = vmatpush1.msra.mxu0 %v16
  %2613 = vmatprep.subr.mxu0 0.0
  %2614 = vmatpush1.msra.mxu0 %v17
  %2615 = vmatprep.subr.mxu0 0.0
  %2616 = vmatpush1.msra.mxu0 %v18
  %2617 = vmatprep.subr.mxu0 0.0
  %2618 = vmatpush1.msra.mxu0 %v19
  %2619 = vmatprep.subr.mxu0 0.0
  %2620 = vmatpush1.msra.mxu0 0.0
  %2621 = vmatprep.subr.mxu0 0.0
  %2622 = vmatpush1.msra.mxu0 0.0
  %2623 = vmatprep.subr.mxu0 0.0
  %2624 = vmatpush1.msra.mxu0 0.0
  %2625 = vmatprep.subr.mxu0 0.0
  %2626 = vmatpush1.msra.mxu0 0.0
  %2627 = vmatprep.subr.mxu0 0.0
  %2628 = vmatpush1.msra.mxu0 0.0
  %2629 = vmatprep.subr.mxu0 0.0
  %2630 = vmatpush1.msra.mxu0 0.0
  %2631 = vmatprep.subr.mxu0 0.0
  %2632 = vmatpush1.msra.mxu0 0.0
  %2633 = vmatprep.subr.mxu0 0.0
  %2634 = vmatpush1.msra.mxu0 0.0
  %2635 = vmatprep.subr.mxu0 0.0
  %2636 = vmatpush1.msra.mxu0 0.0
  %2637 = vmatprep.subr.mxu0 0.0
  %2638 = vmatpush1.msra.mxu0 0.0
  %2639 = vmatprep.subr.mxu0 0.0
  %2640 = vmatpush1.msra.mxu0 0.0
  %2641 = vmatprep.subr.mxu0 0.0
  %2642 = vmatpush1.msra.mxu0 0.0
  %2643 = vmatprep.subr.mxu0 0.0
  %2644 = vmatpush1.msra.mxu0 0.0
  %2645 = vmatprep.subr.mxu0 0.0
  %2646 = vmatpush1.msra.mxu0 0.0
  %2647 = vmatprep.subr.mxu0 0.0
  %2648 = vmatpush1.msra.mxu0 0.0
  %2649 = vmatprep.subr.mxu0 0.0
  %2650 = vmatpush1.msra.mxu0 0.0
  %2651 = vmatprep.subr.mxu0 0.0
  %2652 = vmatpush1.msra.mxu0 0.0
  %2653 = vmatprep.subr.mxu0 0.0
  %2654 = vmatpush1.msra.mxu0 0.0
  %2655 = vmatprep.subr.mxu0 0.0
  %2656 = vmatpush1.msra.mxu0 0.0
  %2657 = vmatprep.subr.mxu0 0.0
  %2658 = vmatpush1.msra.mxu0 0.0
  %2659 = vmatprep.subr.mxu0 0.0
  %2660 = vmatpush1.msra.mxu0 0.0
  %2661 = vmatprep.subr.mxu0 0.0
  %2662 = vmatpush1.msra.mxu0 0.0
  %2663 = vmatprep.subr.mxu0 0.0
  %2664 = vmatpush1.msra.mxu0 0.0
  %2665 = vmatprep.subr.mxu0 0.0
  %2666 = vmatpush1.msra.mxu0 0.0
  %2667 = vmatprep.subr.mxu0 0.0
  %2668 = vmatpush1.msra.mxu0 0.0
  %2669 = vmatprep.subr.mxu0 0.0
  %2670 = vmatpush1.msra.mxu0 0.0
  %2671 = vmatprep.subr.mxu0 0.0
  %2672 = vmatpush1.msra.mxu0 0.0
  %2673 = vmatprep.subr.mxu0 0.0
  %2674 = vmatpush1.msra.mxu0 0.0
  %2675 = vmatprep.mubr.f32.mxu0 0.0
  %2676 = vmatmul.mubr.f32.gmra.mrb[0].mxu0 %v2609
  %v2677 = vpop.f32.mrb[0].mxu0
  %v2678 = vadd.f32 %v2434, %v2677
  %v2679 = vpop.f32.mrb[0].mxu0
  %2680 = vdwg.mxu0
  %v2681 = vmul.f32 %v2678, 0.5
  %v2682 = vsel %vm38, %v2678, %v2681
  %v2683 = vtanh.pop %v2682
  %v2684 = vmul.f32 %v2683, 0.5
  %v2685 = vadd.f32 %v2684, 0.5
  %v2686 = vsel %vm38, %v2683, %v2685
  %v2687 = vmul.f32 %v2686, %v2355
  %2689 = vrot.lane.b32.xlu0 %v2686, 64
  %v2690 = vpop.permute.xlu0 %2689
  %v2692 = vmul.f32 %v2686, %v2690
  %2694 = vrot.lane.b32.xlu0 %v2692, 32
  %v2695 = vpop.permute.xlu0 %2694
  %v2697 = vadd.f32 %v2687, %v2695
  %v2698 = vtanh.pop %v2697
  %2700 = vrot.lane.b32.xlu0 %v2698, 64
  %v2701 = vpop.permute.xlu0 %2700
  %v2703 = vmul.f32 %v2686, %v2701
  %v2704 = vld [vmem:[%s1 + $0x78] sm:$0x1]
  %v2705 = vlaneseq
  %v2706 = vshrl.u32 %v2705, 7
  %v2707 = vsub.s32 0, %v2706
  %v2708 = vrot.slane %v2704, %v2707
  %2710 = vrot.lane.b32.xlu0 %v2708, 96
  %v2711 = vpop.permute.xlu0 %2710
  %v2713 = vmul.f32 %v2703, %v2711
  %2715 = vrot.lane.b32.xlu0 %v2713, 32
  %v2716 = vpop.permute.xlu0 %2715
  %v2718 = vsel %vm114, %v2716, 0.0
  %2719 = vadd.xlane.f32.xlu0 %v2718
  %v2720 = vpop.xlane.xlu0 %2719
  %v2721 = vadd.f32 %v2720, %v2708
  %2723 = vrot.lane.b32.xlu0 %v2721, 96
  %v2724 = vpop.permute.xlu0 %2723
  %vm2726 = vcmask 7168
  %2727 = vst.msk [vmem:[%s2] sm:$0xff] %vm2726, %v2724
  // Predicated region
  $region10: #{lstm_soc_forward.1} parent=0 // pred_check
    _
  $region11: #{lstm_soc_forward.1} parent=0 // pred_check_branch
    %2729 = sbr.rel (0) target = $region13
  $region12: #{lstm_soc_forward.1} parent=0 // pred_region
    _
  $region13: #{lstm_soc_forward.1} parent=0 // pred_fallthru
    _
  // Predicated region
  $region14: #{lstm_soc_forward.1} parent=0 // pred_check
    _
  $region15: #{lstm_soc_forward.1} parent=0 // pred_check_branch
    %2731 = sbr.rel (0) target = $region17
  $region16: #{lstm_soc_forward.1} parent=0 // pred_region
    _
  $region17: #{lstm_soc_forward.1} parent=0 // pred_fallthru
    _

</llo_original>
